<compile_context>
chip_gen: v6e
topology: v6e:2x2x1
jax: 0.10.0
libtpu: 0.0.40
codegen_flags: <defaults>
</compile_context>

<pallas_src>
import functools

import jax
import jax.numpy as jnp
from jax.experimental import pallas as pl
from jax.experimental.pallas import tpu as pltpu

_BN_EPS = 1e-5
_MATMUL_DTYPE = jnp.bfloat16   # MXU operand dtype (accumulation stays f32)


# ---------------------------------------------------------------------------
# In-kernel helpers
# ---------------------------------------------------------------------------
def _bn_relu(acc, gamma, beta):
    # training-mode BatchNorm2d over the lane axis (all N*H*W positions), biased variance
    mean = jnp.mean(acc, axis=1, keepdims=True)
    ctr = acc - mean
    var = jnp.mean(ctr * ctr, axis=1, keepdims=True)
    return jnp.maximum(ctr * jax.lax.rsqrt(var + _BN_EPS) * gamma + beta, 0.0)


def _cp():
    return pltpu.CompilerParams(vmem_limit_bytes=32 * 1024 * 1024)


# ---------------------------------------------------------------------------
# Pallas kernels (single full-slab invocation; everything fits comfortably in VMEM)
# ---------------------------------------------------------------------------
def _inconv_down_yis_kernel(px_ref, vm_ref, win_ref, bin_ref, wd_ref, bd_ref,
                            g_ref, beta_ref, l0_ref, yis_ref, *, ks, pad):
    """relu(conv1x1(x)) fused per-tap into conv ks x ks /s2 + BN + ReLU -> l0.

    Taps (kh,kw) with kh-pad, kw-pad in {0,1} sample exactly the original pixels
    (2*ho+i, 2*wo+j); their relu'd in_conv result is the sub-pixel (i,j) plane of the
    inverse pixel shuffle of y, stored straight into yis (no extra matmul work)."""
    ngf, m1 = l0_ref.shape
    win = win_ref[...]
    b_in = bin_ref[...]
    acc = jnp.zeros((ngf, m1), jnp.float32)
    for kh in range(ks):                       # static unrolled loop over conv taps
        for kw in range(ks):
            t = kh * ks + kw
            yt = jnp.dot(win, px_ref[t], preferred_element_type=jnp.float32)
            yt = jnp.maximum(yt + b_in, 0.0)
            i, j = kh - pad, kw - pad
            if 0 <= i <= 1 and 0 <= j <= 1:    # always-valid tap -> sub-pixel s = 2i + j of y
                yis_ref[i * 2 + j] = yt.astype(yis_ref.dtype)
            # mask kills in_conv bias/ReLU applied to zero-padded positions
            acc = acc + jnp.dot(wd_ref[t], (yt * vm_ref[t]).astype(wd_ref.dtype),
                                preferred_element_type=jnp.float32)
    acc = acc + bd_ref[...]                    # conv bias (cancelled by BN mean; kept for fidelity)
    l0_ref[...] = _bn_relu(acc, g_ref[...], beta_ref[...]).astype(l0_ref.dtype)


def _down_bn_relu_kernel(p_ref, wd_ref, bd_ref, g_ref, beta_ref, out_ref, *, taps):
    """conv ks x ks /s2 (per-tap accumulation) + BN + ReLU (no in_conv path)."""
    ngf, m1 = out_ref.shape
    acc = jnp.zeros((ngf, m1), jnp.float32)
    for t in range(taps):
        acc = acc + jnp.dot(wd_ref[t], p_ref[t], preferred_element_type=jnp.float32)
    acc = acc + bd_ref[...]
    out_ref[...] = _bn_relu(acc, g_ref[...], beta_ref[...]).astype(out_ref.dtype)


def _down_bn_relu_add_kernel(p_ref, wd_ref, bd_ref, g_ref, beta_ref, res_ref,
                             out_ref, *, taps):
    """conv ks x ks /s2 + BN + ReLU + residual add."""
    ngf, m1 = out_ref.shape
    acc = jnp.zeros((ngf, m1), jnp.float32)
    for t in range(taps):
        acc = acc + jnp.dot(wd_ref[t], p_ref[t], preferred_element_type=jnp.float32)
    acc = acc + bd_ref[...]
    out_ref[...] = (_bn_relu(acc, g_ref[...], beta_ref[...])
                    + res_ref[...]).astype(out_ref.dtype)


def _up_bn_relu_sub_kernel(p_ref, wu_ref, bu_ref, g_ref, b_ref, yis_ref,
                           out_ref, *, taps):
    """conv3x3 -> PixelShuffle-equivalent grouped BN -> ReLU -> subtract y (pre-shuffle layout).

    Rows are sub-pixel-major (s*ngf + c), so post-shuffle per-channel BN statistics are a plain
    reduction over the leading sub-pixel axis and the lane axis."""
    r2, ngf, m1 = out_ref.shape
    acc = jnp.zeros((r2 * ngf, m1), jnp.float32)
    for t in range(taps):
        acc = acc + jnp.dot(wu_ref[t], p_ref[t], preferred_element_type=jnp.float32)
    acc = acc + bu_ref[...]
    a3 = acc.reshape(r2, ngf, m1)              # sublane-tile-aligned split; no data movement

    def gmean(v):                              # post-shuffle per-channel mean -> (ngf, 1)
        return jnp.sum(jnp.sum(v, axis=0), axis=-1, keepdims=True) / (r2 * m1)

    mean = gmean(a3)
    ctr = a3 - mean
    var = gmean(ctr * ctr)
    h0 = jnp.maximum(ctr * jax.lax.rsqrt(var + _BN_EPS) * g_ref[...] + b_ref[...], 0.0)
    out_ref[...] = (h0 - yis_ref[...]).astype(out_ref.dtype)


# ---------------------------------------------------------------------------
# Plain-JAX layout glue (no arithmetic happens here — only padding / relayout)
# ---------------------------------------------------------------------------
def _tap_patches(x_cnhw, ks, st, pad, dtype):
    """Per-tap stack (ks*ks, C, N*Ho*Wo) of the zero-padded channel-first input."""
    C, N, H, W = x_cnhw.shape
    xp = jnp.pad(x_cnhw, ((0, 0), (0, 0), (pad, pad), (pad, pad)))
    Ho = (H + 2 * pad - ks) // st + 1
    Wo = (W + 2 * pad - ks) // st + 1
    taps = []
    for kh in range(ks):
        for kw in range(ks):
            sl = xp[:, :, kh:kh + st * (Ho - 1) + 1:st, kw:kw + st * (Wo - 1) + 1:st]
            taps.append(sl.reshape(1, C, N * Ho * Wo))
    return jnp.concatenate(taps, axis=0).astype(dtype), Ho, Wo


def _tap_valid_mask(N, H, W, ks, st, pad):
    """(ks*ks, 1, M1) mask: 1 where the tap samples a real pixel, 0 where it samples padding."""
    Ho = (H + 2 * pad - ks) // st + 1
    Wo = (W + 2 * pad - ks) // st + 1
    r = st * jnp.arange(Ho)
    c = st * jnp.arange(Wo)
    rows = []
    for kh in range(ks):
        for kw in range(ks):
            vr = ((r + kh) >= pad) & ((r + kh) < H + pad)
            vc = ((c + kw) >= pad) & ((c + kw) < W + pad)
            v = vr[:, None] & vc[None, :]
            v = jnp.broadcast_to(v[None], (N, Ho, Wo)).reshape(1, 1, N * Ho * Wo)
            rows.append(v)
    return jnp.concatenate(rows, axis=0).astype(jnp.float32)


def _per_tap_weights(w_oihw, dtype):
    co, ci, kh, kw = w_oihw.shape
    return jnp.transpose(w_oihw, (2, 3, 0, 1)).reshape(kh * kw, co, ci).astype(dtype)


def _inv_pixel_shuffle_smajor(y_cnhw, r):
    """(C, N, H, W) -> (r*r, C, N*(H/r)*(W/r)) with leading index s = i*r + j (sub-pixel major)."""
    C, N, H, W = y_cnhw.shape
    y = y_cnhw.reshape(C, N, H // r, r, W // r, r)      # (C, N, Hs, i, Ws, j)
    y = jnp.transpose(y, (3, 5, 0, 1, 2, 4))            # (i, j, C, N, Hs, Ws)
    return y.reshape(r * r, C, N * (H // r) * (W // r))


def _pixel_shuffle_smajor(h_pre, C, N, Hs, Ws, r):
    """(r*r, C, N*Hs*Ws) sub-pixel-major pre-shuffle layout -> (C, N, Hs*r, Ws*r)."""
    h = h_pre.reshape(r, r, C, N, Hs, Ws)               # (i, j, C, N, Hs, Ws)
    h = jnp.transpose(h, (2, 3, 4, 0, 5, 1))            # (C, N, Hs, i, Ws, j)
    return h.reshape(C, N, Hs * r, Ws * r)


# ---------------------------------------------------------------------------
# Parameters + forward
# ---------------------------------------------------------------------------
def init_params(key, in_channel, out_channel, ks=4):
    ngf = out_channel
    keys = jax.random.split(key, 12)

    def conv_w(k, co, ci, kh, kw):
        return 0.1 * jax.random.normal(k, (co, ci, kh, kw), jnp.float32)

    params = {}
    if in_channel != out_channel:
        params["in_conv"] = dict(
            w=conv_w(keys[0], ngf, in_channel, 1, 1),
            b=0.05 * jax.random.normal(keys[1], (ngf,), jnp.float32))
    params["down_conv1"] = dict(
        w=conv_w(keys[2], ngf, ngf, ks, ks),
        b=0.05 * jax.random.normal(keys[3], (ngf,), jnp.float32),
        gamma=1.0 + 0.1 * jax.random.normal(keys[4], (ngf,), jnp.float32),
        beta=0.1 * jax.random.normal(keys[5], (ngf,), jnp.float32))
    params["up_conv1"] = dict(
        w=conv_w(keys[6], ngf * 4, ngf, 3, 3),
        b=0.05 * jax.random.normal(keys[7], (ngf * 4,), jnp.float32),
        gamma=1.0 + 0.1 * jax.random.normal(keys[8], (ngf,), jnp.float32),
        beta=0.1 * jax.random.normal(keys[9], (ngf,), jnp.float32))
    # down_conv2 exists in __init__ but is never used in forward(); kept for parity.
    params["down_conv2"] = dict(
        w=conv_w(keys[10], ngf, ngf, ks, ks),
        b=0.05 * jax.random.normal(keys[11], (ngf,), jnp.float32),
        gamma=jnp.ones((ngf,), jnp.float32),
        beta=jnp.zeros((ngf,), jnp.float32))
    return params


def db_downsample_forward(x_nchw, params, ks=4, st=2):
    pad = (ks - 1) // 2
    x = jnp.transpose(x_nchw.astype(jnp.float32), (1, 0, 2, 3))   # (Cin, N, H, W)
    cin, N, H, W = x.shape

    p_d1 = params["down_conv1"]
    ngf = p_d1["w"].shape[0]
    wd = _per_tap_weights(p_d1["w"], _MATMUL_DTYPE)               # (ks*ks, ngf, ngf)
    bd = p_d1["b"].reshape(ngf, 1).astype(jnp.float32)
    gd = p_d1["gamma"].reshape(ngf, 1).astype(jnp.float32)
    betad = p_d1["beta"].reshape(ngf, 1).astype(jnp.float32)

    px, Ho, Wo = _tap_patches(x, ks, st, pad, _MATMUL_DTYPE)      # (ks*ks, cin, M1)
    M1 = N * Ho * Wo
    # h0 - x only type-checks when the stride-2 down conv exactly halves the resolution.
    assert 2 * Ho == H and 2 * Wo == W, "module requires stride-2 halving geometry"

    if "in_conv" in params:
        # TODO(synk): fused yis extraction assumes default down-conv geometry (st=2, pad=(ks-1)//2).
        assert st == 2 and pad + 1 <= ks - 1, "fused in_conv/yis path needs default geometry"
        p_in = params["in_conv"]
        w_in = p_in["w"].reshape(ngf, cin).astype(_MATMUL_DTYPE)
        b_in = p_in["b"].reshape(ngf, 1).astype(jnp.float32)
        vmask = _tap_valid_mask(N, H, W, ks, st, pad)
        l0_flat, yis = pl.pallas_call(
            functools.partial(_inconv_down_yis_kernel, ks=ks, pad=pad),
            out_shape=(jax.ShapeDtypeStruct((ngf, M1), jnp.float32),
                       jax.ShapeDtypeStruct((4, ngf, M1), jnp.float32)),
            compiler_params=_cp(),
        )(px, vmask, w_in, b_in, wd, bd, gd, betad)
    else:
        # in_channel == out_channel: no in_conv, y is just x
        l0_flat = pl.pallas_call(
            functools.partial(_down_bn_relu_kernel, taps=ks * ks),
            out_shape=jax.ShapeDtypeStruct((ngf, M1), jnp.float32),
            compiler_params=_cp(),
        )(px, wd, bd, gd, betad)
        yis = _inv_pixel_shuffle_smajor(x, 2)                     # (4, ngf, M1) f32

    # --- up_conv1: conv3x3 + (grouped, pre-shuffle) BN + ReLU + subtract y ---
    p_u = params["up_conv1"]
    c4 = p_u["w"].shape[0]                                        # 4 * ngf
    # reorder torch output channels o = c*4 + s into sub-pixel-major rows q = s*ngf + c
    perm = (jnp.arange(c4) % ngf) * 4 + (jnp.arange(c4) // ngf)
    wu = _per_tap_weights(p_u["w"][perm], _MATMUL_DTYPE)          # (9, 4*ngf, ngf)
    bu = p_u["b"][perm].reshape(c4, 1).astype(jnp.float32)
    gu = p_u["gamma"].reshape(ngf, 1).astype(jnp.float32)
    betau = p_u["beta"].reshape(ngf, 1).astype(jnp.float32)

    pl0, _, _ = _tap_patches(l0_flat.reshape(ngf, N, Ho, Wo), 3, 1, 1, _MATMUL_DTYPE)
    diff_pre = pl.pallas_call(
        functools.partial(_up_bn_relu_sub_kernel, taps=9),
        out_shape=jax.ShapeDtypeStruct((4, ngf, M1), _MATMUL_DTYPE),
        compiler_params=_cp(),
    )(pl0, wu, bu, gu, betau, yis)

    # --- second application of down_conv1 (shared weights + BN) on diff, + residual l0 ---
    diff_cnhw = _pixel_shuffle_smajor(diff_pre, ngf, N, Ho, Wo, 2)   # (ngf, N, H, W) bf16
    pd, _, _ = _tap_patches(diff_cnhw, ks, st, pad, _MATMUL_DTYPE)
    out_flat = pl.pallas_call(
        functools.partial(_down_bn_relu_add_kernel, taps=ks * ks),
        out_shape=jax.ShapeDtypeStruct((ngf, M1), jnp.float32),
        compiler_params=_cp(),
    )(pd, wd, bd, gd, betad, l0_flat)

    out = out_flat.reshape(ngf, N, Ho, Wo)
    return jnp.transpose(out, (1, 0, 2, 3))                       # -> NCHW


# ---------------------------------------------------------------------------
if __name__ == "__main__":
    key = jax.random.PRNGKey(0)
    kx, kp = jax.random.split(key)

    # PyTorch-style NCHW input: batch=2, in_channel=4, spatial 16x16
    x = jax.random.normal(kx, (2, 4, 16, 16), jnp.float32)
    params = init_params(kp, in_channel=4, out_channel=8, ks=4)

    out = jax.jit(db_downsample_forward)(x, params)
    out = jax.block_until_ready(out)
    assert out.shape == (2, 8, 8, 8), out.shape
    assert bool(jnp.all(jnp.isfinite(out)))
    print("KERNEL_OK")
</pallas_src>

<mosaic_0001>
module attributes {stable_mosaic.version = 11 : i64} {
  func.func @_inconv_down_yis_kernel(%arg0: memref<16x4x128xbf16, #tpu.memory_space<vmem>>, %arg1: memref<16x1x128xf32, #tpu.memory_space<vmem>>, %arg2: memref<8x4xbf16, #tpu.memory_space<vmem>>, %arg3: memref<8x1xf32, #tpu.memory_space<vmem>>, %arg4: memref<16x8x8xbf16, #tpu.memory_space<vmem>>, %arg5: memref<8x1xf32, #tpu.memory_space<vmem>>, %arg6: memref<8x1xf32, #tpu.memory_space<vmem>>, %arg7: memref<8x1xf32, #tpu.memory_space<vmem>>, %arg8: memref<8x128xf32, #tpu.memory_space<vmem>>, %arg9: memref<4x8x128xf32, #tpu.memory_space<vmem>>) attributes {dimension_semantics = [], scalar_prefetch = 0 : i64, scratch_operands = 0 : i64, tpu.core_type = #tpu.core_type<tc>} {
    %c0 = arith.constant 0 : index
    %c0_0 = arith.constant 0 : index
    %0 = vector.load %arg2[%c0, %c0_0] : memref<8x4xbf16, #tpu.memory_space<vmem>>, vector<8x4xbf16>
    %c0_1 = arith.constant 0 : index
    %c0_2 = arith.constant 0 : index
    %1 = vector.load %arg3[%c0_1, %c0_2] : memref<8x1xf32, #tpu.memory_space<vmem>>, vector<8x1xf32>
    %cst = arith.constant 0.000000e+00 : f32
    %2 = vector.broadcast %cst : f32 to vector<8x128xf32>
    %c0_3 = arith.constant 0 : index
    %c0_4 = arith.constant 0 : index
    %c0_5 = arith.constant 0 : index
    %3 = vector.load %arg0[%c0_3, %c0_4, %c0_5] : memref<16x4x128xbf16, #tpu.memory_space<vmem>>, vector<1x4x128xbf16>
    %4 = vector.shape_cast %3 : vector<1x4x128xbf16> to vector<4x128xbf16>
    %cst_6 = arith.constant dense<0.000000e+00> : vector<8x128xf32>
    %5 = tpu.matmul %0, %4, %cst_6 {dimension_numbers = #tpu.dot_dimension_numbers<[1], [0], [0], [1], [0, 0, 1, 1], [], []>} : vector<8x4xbf16>, vector<4x128xbf16>, vector<8x128xf32> -> vector<8x128xf32>
    %6 = vector.broadcast %1 : vector<8x1xf32> to vector<8x128xf32>
    %7 = arith.addf %5, %6 : vector<8x128xf32>
    %cst_7 = arith.constant 0.000000e+00 : f32
    %8 = vector.broadcast %cst_7 : f32 to vector<8x128xf32>
    %9 = arith.maximumf %7, %8 : vector<8x128xf32>
    %c0_8 = arith.constant 0 : index
    %c0_9 = arith.constant 0 : index
    %c0_10 = arith.constant 0 : index
    %10 = vector.load %arg4[%c0_8, %c0_9, %c0_10] : memref<16x8x8xbf16, #tpu.memory_space<vmem>>, vector<1x8x8xbf16>
    %11 = vector.shape_cast %10 : vector<1x8x8xbf16> to vector<8x8xbf16>
    %c0_11 = arith.constant 0 : index
    %c0_12 = arith.constant 0 : index
    %c0_13 = arith.constant 0 : index
    %12 = vector.load %arg1[%c0_11, %c0_12, %c0_13] : memref<16x1x128xf32, #tpu.memory_space<vmem>>, vector<1x1x128xf32>
    %13 = vector.shape_cast %12 : vector<1x1x128xf32> to vector<1x128xf32>
    %14 = vector.broadcast %13 : vector<1x128xf32> to vector<8x128xf32>
    %15 = arith.mulf %9, %14 : vector<8x128xf32>
    %16 = arith.truncf %15 : vector<8x128xf32> to vector<8x128xbf16>
    %cst_14 = arith.constant dense<0.000000e+00> : vector<8x128xf32>
    %17 = tpu.matmul %11, %16, %cst_14 {dimension_numbers = #tpu.dot_dimension_numbers<[1], [0], [0], [1], [0, 0, 1, 1], [], []>} : vector<8x8xbf16>, vector<8x128xbf16>, vector<8x128xf32> -> vector<8x128xf32>
    %18 = arith.addf %2, %17 : vector<8x128xf32>
    %c1 = arith.constant 1 : index
    %c0_15 = arith.constant 0 : index
    %c0_16 = arith.constant 0 : index
    %19 = vector.load %arg0[%c1, %c0_15, %c0_16] : memref<16x4x128xbf16, #tpu.memory_space<vmem>>, vector<1x4x128xbf16>
    %20 = vector.shape_cast %19 : vector<1x4x128xbf16> to vector<4x128xbf16>
    %cst_17 = arith.constant dense<0.000000e+00> : vector<8x128xf32>
    %21 = tpu.matmul %0, %20, %cst_17 {dimension_numbers = #tpu.dot_dimension_numbers<[1], [0], [0], [1], [0, 0, 1, 1], [], []>} : vector<8x4xbf16>, vector<4x128xbf16>, vector<8x128xf32> -> vector<8x128xf32>
    %22 = vector.broadcast %1 : vector<8x1xf32> to vector<8x128xf32>
    %23 = arith.addf %21, %22 : vector<8x128xf32>
    %cst_18 = arith.constant 0.000000e+00 : f32
    %24 = vector.broadcast %cst_18 : f32 to vector<8x128xf32>
    %25 = arith.maximumf %23, %24 : vector<8x128xf32>
    %c1_19 = arith.constant 1 : index
    %c0_20 = arith.constant 0 : index
    %c0_21 = arith.constant 0 : index
    %26 = vector.load %arg4[%c1_19, %c0_20, %c0_21] : memref<16x8x8xbf16, #tpu.memory_space<vmem>>, vector<1x8x8xbf16>
    %27 = vector.shape_cast %26 : vector<1x8x8xbf16> to vector<8x8xbf16>
    %c1_22 = arith.constant 1 : index
    %c0_23 = arith.constant 0 : index
    %c0_24 = arith.constant 0 : index
    %28 = vector.load %arg1[%c1_22, %c0_23, %c0_24] : memref<16x1x128xf32, #tpu.memory_space<vmem>>, vector<1x1x128xf32>
    %29 = vector.shape_cast %28 : vector<1x1x128xf32> to vector<1x128xf32>
    %30 = vector.broadcast %29 : vector<1x128xf32> to vector<8x128xf32>
    %31 = arith.mulf %25, %30 : vector<8x128xf32>
    %32 = arith.truncf %31 : vector<8x128xf32> to vector<8x128xbf16>
    %cst_25 = arith.constant dense<0.000000e+00> : vector<8x128xf32>
    %33 = tpu.matmul %27, %32, %cst_25 {dimension_numbers = #tpu.dot_dimension_numbers<[1], [0], [0], [1], [0, 0, 1, 1], [], []>} : vector<8x8xbf16>, vector<8x128xbf16>, vector<8x128xf32> -> vector<8x128xf32>
    %34 = arith.addf %18, %33 : vector<8x128xf32>
    %c2 = arith.constant 2 : index
    %c0_26 = arith.constant 0 : index
    %c0_27 = arith.constant 0 : index
    %35 = vector.load %arg0[%c2, %c0_26, %c0_27] : memref<16x4x128xbf16, #tpu.memory_space<vmem>>, vector<1x4x128xbf16>
    %36 = vector.shape_cast %35 : vector<1x4x128xbf16> to vector<4x128xbf16>
    %cst_28 = arith.constant dense<0.000000e+00> : vector<8x128xf32>
    %37 = tpu.matmul %0, %36, %cst_28 {dimension_numbers = #tpu.dot_dimension_numbers<[1], [0], [0], [1], [0, 0, 1, 1], [], []>} : vector<8x4xbf16>, vector<4x128xbf16>, vector<8x128xf32> -> vector<8x128xf32>
    %38 = vector.broadcast %1 : vector<8x1xf32> to vector<8x128xf32>
    %39 = arith.addf %37, %38 : vector<8x128xf32>
    %cst_29 = arith.constant 0.000000e+00 : f32
    %40 = vector.broadcast %cst_29 : f32 to vector<8x128xf32>
    %41 = arith.maximumf %39, %40 : vector<8x128xf32>
    %c2_30 = arith.constant 2 : index
    %c0_31 = arith.constant 0 : index
    %c0_32 = arith.constant 0 : index
    %42 = vector.load %arg4[%c2_30, %c0_31, %c0_32] : memref<16x8x8xbf16, #tpu.memory_space<vmem>>, vector<1x8x8xbf16>
    %43 = vector.shape_cast %42 : vector<1x8x8xbf16> to vector<8x8xbf16>
    %c2_33 = arith.constant 2 : index
    %c0_34 = arith.constant 0 : index
    %c0_35 = arith.constant 0 : index
    %44 = vector.load %arg1[%c2_33, %c0_34, %c0_35] : memref<16x1x128xf32, #tpu.memory_space<vmem>>, vector<1x1x128xf32>
    %45 = vector.shape_cast %44 : vector<1x1x128xf32> to vector<1x128xf32>
    %46 = vector.broadcast %45 : vector<1x128xf32> to vector<8x128xf32>
    %47 = arith.mulf %41, %46 : vector<8x128xf32>
    %48 = arith.truncf %47 : vector<8x128xf32> to vector<8x128xbf16>
    %cst_36 = arith.constant dense<0.000000e+00> : vector<8x128xf32>
    %49 = tpu.matmul %43, %48, %cst_36 {dimension_numbers = #tpu.dot_dimension_numbers<[1], [0], [0], [1], [0, 0, 1, 1], [], []>} : vector<8x8xbf16>, vector<8x128xbf16>, vector<8x128xf32> -> vector<8x128xf32>
    %50 = arith.addf %34, %49 : vector<8x128xf32>
    %c3 = arith.constant 3 : index
    %c0_37 = arith.constant 0 : index
    %c0_38 = arith.constant 0 : index
    %51 = vector.load %arg0[%c3, %c0_37, %c0_38] : memref<16x4x128xbf16, #tpu.memory_space<vmem>>, vector<1x4x128xbf16>
    %52 = vector.shape_cast %51 : vector<1x4x128xbf16> to vector<4x128xbf16>
    %cst_39 = arith.constant dense<0.000000e+00> : vector<8x128xf32>
    %53 = tpu.matmul %0, %52, %cst_39 {dimension_numbers = #tpu.dot_dimension_numbers<[1], [0], [0], [1], [0, 0, 1, 1], [], []>} : vector<8x4xbf16>, vector<4x128xbf16>, vector<8x128xf32> -> vector<8x128xf32>
    %54 = vector.broadcast %1 : vector<8x1xf32> to vector<8x128xf32>
    %55 = arith.addf %53, %54 : vector<8x128xf32>
    %cst_40 = arith.constant 0.000000e+00 : f32
    %56 = vector.broadcast %cst_40 : f32 to vector<8x128xf32>
    %57 = arith.maximumf %55, %56 : vector<8x128xf32>
    %c3_41 = arith.constant 3 : index
    %c0_42 = arith.constant 0 : index
    %c0_43 = arith.constant 0 : index
    %58 = vector.load %arg4[%c3_41, %c0_42, %c0_43] : memref<16x8x8xbf16, #tpu.memory_space<vmem>>, vector<1x8x8xbf16>
    %59 = vector.shape_cast %58 : vector<1x8x8xbf16> to vector<8x8xbf16>
    %c3_44 = arith.constant 3 : index
    %c0_45 = arith.constant 0 : index
    %c0_46 = arith.constant 0 : index
    %60 = vector.load %arg1[%c3_44, %c0_45, %c0_46] : memref<16x1x128xf32, #tpu.memory_space<vmem>>, vector<1x1x128xf32>
    %61 = vector.shape_cast %60 : vector<1x1x128xf32> to vector<1x128xf32>
    %62 = vector.broadcast %61 : vector<1x128xf32> to vector<8x128xf32>
    %63 = arith.mulf %57, %62 : vector<8x128xf32>
    %64 = arith.truncf %63 : vector<8x128xf32> to vector<8x128xbf16>
    %cst_47 = arith.constant dense<0.000000e+00> : vector<8x128xf32>
    %65 = tpu.matmul %59, %64, %cst_47 {dimension_numbers = #tpu.dot_dimension_numbers<[1], [0], [0], [1], [0, 0, 1, 1], [], []>} : vector<8x8xbf16>, vector<8x128xbf16>, vector<8x128xf32> -> vector<8x128xf32>
    %66 = arith.addf %50, %65 : vector<8x128xf32>
    %c4 = arith.constant 4 : index
    %c0_48 = arith.constant 0 : index
    %c0_49 = arith.constant 0 : index
    %67 = vector.load %arg0[%c4, %c0_48, %c0_49] : memref<16x4x128xbf16, #tpu.memory_space<vmem>>, vector<1x4x128xbf16>
    %68 = vector.shape_cast %67 : vector<1x4x128xbf16> to vector<4x128xbf16>
    %cst_50 = arith.constant dense<0.000000e+00> : vector<8x128xf32>
    %69 = tpu.matmul %0, %68, %cst_50 {dimension_numbers = #tpu.dot_dimension_numbers<[1], [0], [0], [1], [0, 0, 1, 1], [], []>} : vector<8x4xbf16>, vector<4x128xbf16>, vector<8x128xf32> -> vector<8x128xf32>
    %70 = vector.broadcast %1 : vector<8x1xf32> to vector<8x128xf32>
    %71 = arith.addf %69, %70 : vector<8x128xf32>
    %cst_51 = arith.constant 0.000000e+00 : f32
    %72 = vector.broadcast %cst_51 : f32 to vector<8x128xf32>
    %73 = arith.maximumf %71, %72 : vector<8x128xf32>
    %c4_52 = arith.constant 4 : index
    %c0_53 = arith.constant 0 : index
    %c0_54 = arith.constant 0 : index
    %74 = vector.load %arg4[%c4_52, %c0_53, %c0_54] : memref<16x8x8xbf16, #tpu.memory_space<vmem>>, vector<1x8x8xbf16>
    %75 = vector.shape_cast %74 : vector<1x8x8xbf16> to vector<8x8xbf16>
    %c4_55 = arith.constant 4 : index
    %c0_56 = arith.constant 0 : index
    %c0_57 = arith.constant 0 : index
    %76 = vector.load %arg1[%c4_55, %c0_56, %c0_57] : memref<16x1x128xf32, #tpu.memory_space<vmem>>, vector<1x1x128xf32>
    %77 = vector.shape_cast %76 : vector<1x1x128xf32> to vector<1x128xf32>
    %78 = vector.broadcast %77 : vector<1x128xf32> to vector<8x128xf32>
    %79 = arith.mulf %73, %78 : vector<8x128xf32>
    %80 = arith.truncf %79 : vector<8x128xf32> to vector<8x128xbf16>
    %cst_58 = arith.constant dense<0.000000e+00> : vector<8x128xf32>
    %81 = tpu.matmul %75, %80, %cst_58 {dimension_numbers = #tpu.dot_dimension_numbers<[1], [0], [0], [1], [0, 0, 1, 1], [], []>} : vector<8x8xbf16>, vector<8x128xbf16>, vector<8x128xf32> -> vector<8x128xf32>
    %82 = arith.addf %66, %81 : vector<8x128xf32>
    %c5 = arith.constant 5 : index
    %c0_59 = arith.constant 0 : index
    %c0_60 = arith.constant 0 : index
    %83 = vector.load %arg0[%c5, %c0_59, %c0_60] : memref<16x4x128xbf16, #tpu.memory_space<vmem>>, vector<1x4x128xbf16>
    %84 = vector.shape_cast %83 : vector<1x4x128xbf16> to vector<4x128xbf16>
    %cst_61 = arith.constant dense<0.000000e+00> : vector<8x128xf32>
    %85 = tpu.matmul %0, %84, %cst_61 {dimension_numbers = #tpu.dot_dimension_numbers<[1], [0], [0], [1], [0, 0, 1, 1], [], []>} : vector<8x4xbf16>, vector<4x128xbf16>, vector<8x128xf32> -> vector<8x128xf32>
    %86 = vector.broadcast %1 : vector<8x1xf32> to vector<8x128xf32>
    %87 = arith.addf %85, %86 : vector<8x128xf32>
    %cst_62 = arith.constant 0.000000e+00 : f32
    %88 = vector.broadcast %cst_62 : f32 to vector<8x128xf32>
    %89 = arith.maximumf %87, %88 : vector<8x128xf32>
    %c0_63 = arith.constant 0 : index
    %c0_64 = arith.constant 0 : index
    %c0_65 = arith.constant 0 : index
    %90 = vector.load %arg9[%c0_63, %c0_64, %c0_65] : memref<4x8x128xf32, #tpu.memory_space<vmem>>, vector<1x8x128xf32>
    %91 = vector.shape_cast %90 : vector<1x8x128xf32> to vector<8x128xf32>
    %92 = vector.shape_cast %89 : vector<8x128xf32> to vector<1x8x128xf32>
    tpu.vector_store %arg9[%c0_63, %c0_64, %c0_65], %92 {strides = array<i32>} : memref<4x8x128xf32, #tpu.memory_space<vmem>>, vector<1x8x128xf32>,
    %c5_66 = arith.constant 5 : index
    %c0_67 = arith.constant 0 : index
    %c0_68 = arith.constant 0 : index
    %93 = vector.load %arg4[%c5_66, %c0_67, %c0_68] : memref<16x8x8xbf16, #tpu.memory_space<vmem>>, vector<1x8x8xbf16>
    %94 = vector.shape_cast %93 : vector<1x8x8xbf16> to vector<8x8xbf16>
    %c5_69 = arith.constant 5 : index
    %c0_70 = arith.constant 0 : index
    %c0_71 = arith.constant 0 : index
    %95 = vector.load %arg1[%c5_69, %c0_70, %c0_71] : memref<16x1x128xf32, #tpu.memory_space<vmem>>, vector<1x1x128xf32>
    %96 = vector.shape_cast %95 : vector<1x1x128xf32> to vector<1x128xf32>
    %97 = vector.broadcast %96 : vector<1x128xf32> to vector<8x128xf32>
    %98 = arith.mulf %89, %97 : vector<8x128xf32>
    %99 = arith.truncf %98 : vector<8x128xf32> to vector<8x128xbf16>
    %cst_72 = arith.constant dense<0.000000e+00> : vector<8x128xf32>
    %100 = tpu.matmul %94, %99, %cst_72 {dimension_numbers = #tpu.dot_dimension_numbers<[1], [0], [0], [1], [0, 0, 1, 1], [], []>} : vector<8x8xbf16>, vector<8x128xbf16>, vector<8x128xf32> -> vector<8x128xf32>
    %101 = arith.addf %82, %100 : vector<8x128xf32>
    %c6 = arith.constant 6 : index
    %c0_73 = arith.constant 0 : index
    %c0_74 = arith.constant 0 : index
    %102 = vector.load %arg0[%c6, %c0_73, %c0_74] : memref<16x4x128xbf16, #tpu.memory_space<vmem>>, vector<1x4x128xbf16>
    %103 = vector.shape_cast %102 : vector<1x4x128xbf16> to vector<4x128xbf16>
    %cst_75 = arith.constant dense<0.000000e+00> : vector<8x128xf32>
    %104 = tpu.matmul %0, %103, %cst_75 {dimension_numbers = #tpu.dot_dimension_numbers<[1], [0], [0], [1], [0, 0, 1, 1], [], []>} : vector<8x4xbf16>, vector<4x128xbf16>, vector<8x128xf32> -> vector<8x128xf32>
    %105 = vector.broadcast %1 : vector<8x1xf32> to vector<8x128xf32>
    %106 = arith.addf %104, %105 : vector<8x128xf32>
    %cst_76 = arith.constant 0.000000e+00 : f32
    %107 = vector.broadcast %cst_76 : f32 to vector<8x128xf32>
    %108 = arith.maximumf %106, %107 : vector<8x128xf32>
    %c1_77 = arith.constant 1 : index
    %c0_78 = arith.constant 0 : index
    %c0_79 = arith.constant 0 : index
    %109 = vector.load %arg9[%c1_77, %c0_78, %c0_79] : memref<4x8x128xf32, #tpu.memory_space<vmem>>, vector<1x8x128xf32>
    %110 = vector.shape_cast %109 : vector<1x8x128xf32> to vector<8x128xf32>
    %111 = vector.shape_cast %108 : vector<8x128xf32> to vector<1x8x128xf32>
    tpu.vector_store %arg9[%c1_77, %c0_78, %c0_79], %111 {strides = array<i32>} : memref<4x8x128xf32, #tpu.memory_space<vmem>>, vector<1x8x128xf32>,
    %c6_80 = arith.constant 6 : index
    %c0_81 = arith.constant 0 : index
    %c0_82 = arith.constant 0 : index
    %112 = vector.load %arg4[%c6_80, %c0_81, %c0_82] : memref<16x8x8xbf16, #tpu.memory_space<vmem>>, vector<1x8x8xbf16>
    %113 = vector.shape_cast %112 : vector<1x8x8xbf16> to vector<8x8xbf16>
    %c6_83 = arith.constant 6 : index
    %c0_84 = arith.constant 0 : index
    %c0_85 = arith.constant 0 : index
    %114 = vector.load %arg1[%c6_83, %c0_84, %c0_85] : memref<16x1x128xf32, #tpu.memory_space<vmem>>, vector<1x1x128xf32>
    %115 = vector.shape_cast %114 : vector<1x1x128xf32> to vector<1x128xf32>
    %116 = vector.broadcast %115 : vector<1x128xf32> to vector<8x128xf32>
    %117 = arith.mulf %108, %116 : vector<8x128xf32>
    %118 = arith.truncf %117 : vector<8x128xf32> to vector<8x128xbf16>
    %cst_86 = arith.constant dense<0.000000e+00> : vector<8x128xf32>
    %119 = tpu.matmul %113, %118, %cst_86 {dimension_numbers = #tpu.dot_dimension_numbers<[1], [0], [0], [1], [0, 0, 1, 1], [], []>} : vector<8x8xbf16>, vector<8x128xbf16>, vector<8x128xf32> -> vector<8x128xf32>
    %120 = arith.addf %101, %119 : vector<8x128xf32>
    %c7 = arith.constant 7 : index
    %c0_87 = arith.constant 0 : index
    %c0_88 = arith.constant 0 : index
    %121 = vector.load %arg0[%c7, %c0_87, %c0_88] : memref<16x4x128xbf16, #tpu.memory_space<vmem>>, vector<1x4x128xbf16>
    %122 = vector.shape_cast %121 : vector<1x4x128xbf16> to vector<4x128xbf16>
    %cst_89 = arith.constant dense<0.000000e+00> : vector<8x128xf32>
    %123 = tpu.matmul %0, %122, %cst_89 {dimension_numbers = #tpu.dot_dimension_numbers<[1], [0], [0], [1], [0, 0, 1, 1], [], []>} : vector<8x4xbf16>, vector<4x128xbf16>, vector<8x128xf32> -> vector<8x128xf32>
    %124 = vector.broadcast %1 : vector<8x1xf32> to vector<8x128xf32>
    %125 = arith.addf %123, %124 : vector<8x128xf32>
    %cst_90 = arith.constant 0.000000e+00 : f32
    %126 = vector.broadcast %cst_90 : f32 to vector<8x128xf32>
    %127 = arith.maximumf %125, %126 : vector<8x128xf32>
    %c7_91 = arith.constant 7 : index
    %c0_92 = arith.constant 0 : index
    %c0_93 = arith.constant 0 : index
    %128 = vector.load %arg4[%c7_91, %c0_92, %c0_93] : memref<16x8x8xbf16, #tpu.memory_space<vmem>>, vector<1x8x8xbf16>
    %129 = vector.shape_cast %128 : vector<1x8x8xbf16> to vector<8x8xbf16>
    %c7_94 = arith.constant 7 : index
    %c0_95 = arith.constant 0 : index
    %c0_96 = arith.constant 0 : index
    %130 = vector.load %arg1[%c7_94, %c0_95, %c0_96] : memref<16x1x128xf32, #tpu.memory_space<vmem>>, vector<1x1x128xf32>
    %131 = vector.shape_cast %130 : vector<1x1x128xf32> to vector<1x128xf32>
    %132 = vector.broadcast %131 : vector<1x128xf32> to vector<8x128xf32>
    %133 = arith.mulf %127, %132 : vector<8x128xf32>
    %134 = arith.truncf %133 : vector<8x128xf32> to vector<8x128xbf16>
    %cst_97 = arith.constant dense<0.000000e+00> : vector<8x128xf32>
    %135 = tpu.matmul %129, %134, %cst_97 {dimension_numbers = #tpu.dot_dimension_numbers<[1], [0], [0], [1], [0, 0, 1, 1], [], []>} : vector<8x8xbf16>, vector<8x128xbf16>, vector<8x128xf32> -> vector<8x128xf32>
    %136 = arith.addf %120, %135 : vector<8x128xf32>
    %c8 = arith.constant 8 : index
    %c0_98 = arith.constant 0 : index
    %c0_99 = arith.constant 0 : index
    %137 = vector.load %arg0[%c8, %c0_98, %c0_99] : memref<16x4x128xbf16, #tpu.memory_space<vmem>>, vector<1x4x128xbf16>
    %138 = vector.shape_cast %137 : vector<1x4x128xbf16> to vector<4x128xbf16>
    %cst_100 = arith.constant dense<0.000000e+00> : vector<8x128xf32>
    %139 = tpu.matmul %0, %138, %cst_100 {dimension_numbers = #tpu.dot_dimension_numbers<[1], [0], [0], [1], [0, 0, 1, 1], [], []>} : vector<8x4xbf16>, vector<4x128xbf16>, vector<8x128xf32> -> vector<8x128xf32>
    %140 = vector.broadcast %1 : vector<8x1xf32> to vector<8x128xf32>
    %141 = arith.addf %139, %140 : vector<8x128xf32>
    %cst_101 = arith.constant 0.000000e+00 : f32
    %142 = vector.broadcast %cst_101 : f32 to vector<8x128xf32>
    %143 = arith.maximumf %141, %142 : vector<8x128xf32>
    %c8_102 = arith.constant 8 : index
    %c0_103 = arith.constant 0 : index
    %c0_104 = arith.constant 0 : index
    %144 = vector.load %arg4[%c8_102, %c0_103, %c0_104] : memref<16x8x8xbf16, #tpu.memory_space<vmem>>, vector<1x8x8xbf16>
    %145 = vector.shape_cast %144 : vector<1x8x8xbf16> to vector<8x8xbf16>
    %c8_105 = arith.constant 8 : index
    %c0_106 = arith.constant 0 : index
    %c0_107 = arith.constant 0 : index
    %146 = vector.load %arg1[%c8_105, %c0_106, %c0_107] : memref<16x1x128xf32, #tpu.memory_space<vmem>>, vector<1x1x128xf32>
    %147 = vector.shape_cast %146 : vector<1x1x128xf32> to vector<1x128xf32>
    %148 = vector.broadcast %147 : vector<1x128xf32> to vector<8x128xf32>
    %149 = arith.mulf %143, %148 : vector<8x128xf32>
    %150 = arith.truncf %149 : vector<8x128xf32> to vector<8x128xbf16>
    %cst_108 = arith.constant dense<0.000000e+00> : vector<8x128xf32>
    %151 = tpu.matmul %145, %150, %cst_108 {dimension_numbers = #tpu.dot_dimension_numbers<[1], [0], [0], [1], [0, 0, 1, 1], [], []>} : vector<8x8xbf16>, vector<8x128xbf16>, vector<8x128xf32> -> vector<8x128xf32>
    %152 = arith.addf %136, %151 : vector<8x128xf32>
    %c9 = arith.constant 9 : index
    %c0_109 = arith.constant 0 : index
    %c0_110 = arith.constant 0 : index
    %153 = vector.load %arg0[%c9, %c0_109, %c0_110] : memref<16x4x128xbf16, #tpu.memory_space<vmem>>, vector<1x4x128xbf16>
    %154 = vector.shape_cast %153 : vector<1x4x128xbf16> to vector<4x128xbf16>
    %cst_111 = arith.constant dense<0.000000e+00> : vector<8x128xf32>
    %155 = tpu.matmul %0, %154, %cst_111 {dimension_numbers = #tpu.dot_dimension_numbers<[1], [0], [0], [1], [0, 0, 1, 1], [], []>} : vector<8x4xbf16>, vector<4x128xbf16>, vector<8x128xf32> -> vector<8x128xf32>
    %156 = vector.broadcast %1 : vector<8x1xf32> to vector<8x128xf32>
    %157 = arith.addf %155, %156 : vector<8x128xf32>
    %cst_112 = arith.constant 0.000000e+00 : f32
    %158 = vector.broadcast %cst_112 : f32 to vector<8x128xf32>
    %159 = arith.maximumf %157, %158 : vector<8x128xf32>
    %c2_113 = arith.constant 2 : index
    %c0_114 = arith.constant 0 : index
    %c0_115 = arith.constant 0 : index
    %160 = vector.load %arg9[%c2_113, %c0_114, %c0_115] : memref<4x8x128xf32, #tpu.memory_space<vmem>>, vector<1x8x128xf32>
    %161 = vector.shape_cast %160 : vector<1x8x128xf32> to vector<8x128xf32>
    %162 = vector.shape_cast %159 : vector<8x128xf32> to vector<1x8x128xf32>
    tpu.vector_store %arg9[%c2_113, %c0_114, %c0_115], %162 {strides = array<i32>} : memref<4x8x128xf32, #tpu.memory_space<vmem>>, vector<1x8x128xf32>,
    %c9_116 = arith.constant 9 : index
    %c0_117 = arith.constant 0 : index
    %c0_118 = arith.constant 0 : index
    %163 = vector.load %arg4[%c9_116, %c0_117, %c0_118] : memref<16x8x8xbf16, #tpu.memory_space<vmem>>, vector<1x8x8xbf16>
    %164 = vector.shape_cast %163 : vector<1x8x8xbf16> to vector<8x8xbf16>
    %c9_119 = arith.constant 9 : index
    %c0_120 = arith.constant 0 : index
    %c0_121 = arith.constant 0 : index
    %165 = vector.load %arg1[%c9_119, %c0_120, %c0_121] : memref<16x1x128xf32, #tpu.memory_space<vmem>>, vector<1x1x128xf32>
    %166 = vector.shape_cast %165 : vector<1x1x128xf32> to vector<1x128xf32>
    %167 = vector.broadcast %166 : vector<1x128xf32> to vector<8x128xf32>
    %168 = arith.mulf %159, %167 : vector<8x128xf32>
    %169 = arith.truncf %168 : vector<8x128xf32> to vector<8x128xbf16>
    %cst_122 = arith.constant dense<0.000000e+00> : vector<8x128xf32>
    %170 = tpu.matmul %164, %169, %cst_122 {dimension_numbers = #tpu.dot_dimension_numbers<[1], [0], [0], [1], [0, 0, 1, 1], [], []>} : vector<8x8xbf16>, vector<8x128xbf16>, vector<8x128xf32> -> vector<8x128xf32>
    %171 = arith.addf %152, %170 : vector<8x128xf32>
    %c10 = arith.constant 10 : index
    %c0_123 = arith.constant 0 : index
    %c0_124 = arith.constant 0 : index
    %172 = vector.load %arg0[%c10, %c0_123, %c0_124] : memref<16x4x128xbf16, #tpu.memory_space<vmem>>, vector<1x4x128xbf16>
    %173 = vector.shape_cast %172 : vector<1x4x128xbf16> to vector<4x128xbf16>
    %cst_125 = arith.constant dense<0.000000e+00> : vector<8x128xf32>
    %174 = tpu.matmul %0, %173, %cst_125 {dimension_numbers = #tpu.dot_dimension_numbers<[1], [0], [0], [1], [0, 0, 1, 1], [], []>} : vector<8x4xbf16>, vector<4x128xbf16>, vector<8x128xf32> -> vector<8x128xf32>
    %175 = vector.broadcast %1 : vector<8x1xf32> to vector<8x128xf32>
    %176 = arith.addf %174, %175 : vector<8x128xf32>
    %cst_126 = arith.constant 0.000000e+00 : f32
    %177 = vector.broadcast %cst_126 : f32 to vector<8x128xf32>
    %178 = arith.maximumf %176, %177 : vector<8x128xf32>
    %c3_127 = arith.constant 3 : index
    %c0_128 = arith.constant 0 : index
    %c0_129 = arith.constant 0 : index
    %179 = vector.load %arg9[%c3_127, %c0_128, %c0_129] : memref<4x8x128xf32, #tpu.memory_space<vmem>>, vector<1x8x128xf32>
    %180 = vector.shape_cast %179 : vector<1x8x128xf32> to vector<8x128xf32>
    %181 = vector.shape_cast %178 : vector<8x128xf32> to vector<1x8x128xf32>
    tpu.vector_store %arg9[%c3_127, %c0_128, %c0_129], %181 {strides = array<i32>} : memref<4x8x128xf32, #tpu.memory_space<vmem>>, vector<1x8x128xf32>,
    %c10_130 = arith.constant 10 : index
    %c0_131 = arith.constant 0 : index
    %c0_132 = arith.constant 0 : index
    %182 = vector.load %arg4[%c10_130, %c0_131, %c0_132] : memref<16x8x8xbf16, #tpu.memory_space<vmem>>, vector<1x8x8xbf16>
    %183 = vector.shape_cast %182 : vector<1x8x8xbf16> to vector<8x8xbf16>
    %c10_133 = arith.constant 10 : index
    %c0_134 = arith.constant 0 : index
    %c0_135 = arith.constant 0 : index
    %184 = vector.load %arg1[%c10_133, %c0_134, %c0_135] : memref<16x1x128xf32, #tpu.memory_space<vmem>>, vector<1x1x128xf32>
    %185 = vector.shape_cast %184 : vector<1x1x128xf32> to vector<1x128xf32>
    %186 = vector.broadcast %185 : vector<1x128xf32> to vector<8x128xf32>
    %187 = arith.mulf %178, %186 : vector<8x128xf32>
    %188 = arith.truncf %187 : vector<8x128xf32> to vector<8x128xbf16>
    %cst_136 = arith.constant dense<0.000000e+00> : vector<8x128xf32>
    %189 = tpu.matmul %183, %188, %cst_136 {dimension_numbers = #tpu.dot_dimension_numbers<[1], [0], [0], [1], [0, 0, 1, 1], [], []>} : vector<8x8xbf16>, vector<8x128xbf16>, vector<8x128xf32> -> vector<8x128xf32>
    %190 = arith.addf %171, %189 : vector<8x128xf32>
    %c11 = arith.constant 11 : index
    %c0_137 = arith.constant 0 : index
    %c0_138 = arith.constant 0 : index
    %191 = vector.load %arg0[%c11, %c0_137, %c0_138] : memref<16x4x128xbf16, #tpu.memory_space<vmem>>, vector<1x4x128xbf16>
    %192 = vector.shape_cast %191 : vector<1x4x128xbf16> to vector<4x128xbf16>
    %cst_139 = arith.constant dense<0.000000e+00> : vector<8x128xf32>
    %193 = tpu.matmul %0, %192, %cst_139 {dimension_numbers = #tpu.dot_dimension_numbers<[1], [0], [0], [1], [0, 0, 1, 1], [], []>} : vector<8x4xbf16>, vector<4x128xbf16>, vector<8x128xf32> -> vector<8x128xf32>
    %194 = vector.broadcast %1 : vector<8x1xf32> to vector<8x128xf32>
    %195 = arith.addf %193, %194 : vector<8x128xf32>
    %cst_140 = arith.constant 0.000000e+00 : f32
    %196 = vector.broadcast %cst_140 : f32 to vector<8x128xf32>
    %197 = arith.maximumf %195, %196 : vector<8x128xf32>
    %c11_141 = arith.constant 11 : index
    %c0_142 = arith.constant 0 : index
    %c0_143 = arith.constant 0 : index
    %198 = vector.load %arg4[%c11_141, %c0_142, %c0_143] : memref<16x8x8xbf16, #tpu.memory_space<vmem>>, vector<1x8x8xbf16>
    %199 = vector.shape_cast %198 : vector<1x8x8xbf16> to vector<8x8xbf16>
    %c11_144 = arith.constant 11 : index
    %c0_145 = arith.constant 0 : index
    %c0_146 = arith.constant 0 : index
    %200 = vector.load %arg1[%c11_144, %c0_145, %c0_146] : memref<16x1x128xf32, #tpu.memory_space<vmem>>, vector<1x1x128xf32>
    %201 = vector.shape_cast %200 : vector<1x1x128xf32> to vector<1x128xf32>
    %202 = vector.broadcast %201 : vector<1x128xf32> to vector<8x128xf32>
    %203 = arith.mulf %197, %202 : vector<8x128xf32>
    %204 = arith.truncf %203 : vector<8x128xf32> to vector<8x128xbf16>
    %cst_147 = arith.constant dense<0.000000e+00> : vector<8x128xf32>
    %205 = tpu.matmul %199, %204, %cst_147 {dimension_numbers = #tpu.dot_dimension_numbers<[1], [0], [0], [1], [0, 0, 1, 1], [], []>} : vector<8x8xbf16>, vector<8x128xbf16>, vector<8x128xf32> -> vector<8x128xf32>
    %206 = arith.addf %190, %205 : vector<8x128xf32>
    %c12 = arith.constant 12 : index
    %c0_148 = arith.constant 0 : index
    %c0_149 = arith.constant 0 : index
    %207 = vector.load %arg0[%c12, %c0_148, %c0_149] : memref<16x4x128xbf16, #tpu.memory_space<vmem>>, vector<1x4x128xbf16>
    %208 = vector.shape_cast %207 : vector<1x4x128xbf16> to vector<4x128xbf16>
    %cst_150 = arith.constant dense<0.000000e+00> : vector<8x128xf32>
    %209 = tpu.matmul %0, %208, %cst_150 {dimension_numbers = #tpu.dot_dimension_numbers<[1], [0], [0], [1], [0, 0, 1, 1], [], []>} : vector<8x4xbf16>, vector<4x128xbf16>, vector<8x128xf32> -> vector<8x128xf32>
    %210 = vector.broadcast %1 : vector<8x1xf32> to vector<8x128xf32>
    %211 = arith.addf %209, %210 : vector<8x128xf32>
    %cst_151 = arith.constant 0.000000e+00 : f32
    %212 = vector.broadcast %cst_151 : f32 to vector<8x128xf32>
    %213 = arith.maximumf %211, %212 : vector<8x128xf32>
    %c12_152 = arith.constant 12 : index
    %c0_153 = arith.constant 0 : index
    %c0_154 = arith.constant 0 : index
    %214 = vector.load %arg4[%c12_152, %c0_153, %c0_154] : memref<16x8x8xbf16, #tpu.memory_space<vmem>>, vector<1x8x8xbf16>
    %215 = vector.shape_cast %214 : vector<1x8x8xbf16> to vector<8x8xbf16>
    %c12_155 = arith.constant 12 : index
    %c0_156 = arith.constant 0 : index
    %c0_157 = arith.constant 0 : index
    %216 = vector.load %arg1[%c12_155, %c0_156, %c0_157] : memref<16x1x128xf32, #tpu.memory_space<vmem>>, vector<1x1x128xf32>
    %217 = vector.shape_cast %216 : vector<1x1x128xf32> to vector<1x128xf32>
    %218 = vector.broadcast %217 : vector<1x128xf32> to vector<8x128xf32>
    %219 = arith.mulf %213, %218 : vector<8x128xf32>
    %220 = arith.truncf %219 : vector<8x128xf32> to vector<8x128xbf16>
    %cst_158 = arith.constant dense<0.000000e+00> : vector<8x128xf32>
    %221 = tpu.matmul %215, %220, %cst_158 {dimension_numbers = #tpu.dot_dimension_numbers<[1], [0], [0], [1], [0, 0, 1, 1], [], []>} : vector<8x8xbf16>, vector<8x128xbf16>, vector<8x128xf32> -> vector<8x128xf32>
    %222 = arith.addf %206, %221 : vector<8x128xf32>
    %c13 = arith.constant 13 : index
    %c0_159 = arith.constant 0 : index
    %c0_160 = arith.constant 0 : index
    %223 = vector.load %arg0[%c13, %c0_159, %c0_160] : memref<16x4x128xbf16, #tpu.memory_space<vmem>>, vector<1x4x128xbf16>
    %224 = vector.shape_cast %223 : vector<1x4x128xbf16> to vector<4x128xbf16>
    %cst_161 = arith.constant dense<0.000000e+00> : vector<8x128xf32>
    %225 = tpu.matmul %0, %224, %cst_161 {dimension_numbers = #tpu.dot_dimension_numbers<[1], [0], [0], [1], [0, 0, 1, 1], [], []>} : vector<8x4xbf16>, vector<4x128xbf16>, vector<8x128xf32> -> vector<8x128xf32>
    %226 = vector.broadcast %1 : vector<8x1xf32> to vector<8x128xf32>
    %227 = arith.addf %225, %226 : vector<8x128xf32>
    %cst_162 = arith.constant 0.000000e+00 : f32
    %228 = vector.broadcast %cst_162 : f32 to vector<8x128xf32>
    %229 = arith.maximumf %227, %228 : vector<8x128xf32>
    %c13_163 = arith.constant 13 : index
    %c0_164 = arith.constant 0 : index
    %c0_165 = arith.constant 0 : index
    %230 = vector.load %arg4[%c13_163, %c0_164, %c0_165] : memref<16x8x8xbf16, #tpu.memory_space<vmem>>, vector<1x8x8xbf16>
    %231 = vector.shape_cast %230 : vector<1x8x8xbf16> to vector<8x8xbf16>
    %c13_166 = arith.constant 13 : index
    %c0_167 = arith.constant 0 : index
    %c0_168 = arith.constant 0 : index
    %232 = vector.load %arg1[%c13_166, %c0_167, %c0_168] : memref<16x1x128xf32, #tpu.memory_space<vmem>>, vector<1x1x128xf32>
    %233 = vector.shape_cast %232 : vector<1x1x128xf32> to vector<1x128xf32>
    %234 = vector.broadcast %233 : vector<1x128xf32> to vector<8x128xf32>
    %235 = arith.mulf %229, %234 : vector<8x128xf32>
    %236 = arith.truncf %235 : vector<8x128xf32> to vector<8x128xbf16>
    %cst_169 = arith.constant dense<0.000000e+00> : vector<8x128xf32>
    %237 = tpu.matmul %231, %236, %cst_169 {dimension_numbers = #tpu.dot_dimension_numbers<[1], [0], [0], [1], [0, 0, 1, 1], [], []>} : vector<8x8xbf16>, vector<8x128xbf16>, vector<8x128xf32> -> vector<8x128xf32>
    %238 = arith.addf %222, %237 : vector<8x128xf32>
    %c14 = arith.constant 14 : index
    %c0_170 = arith.constant 0 : index
    %c0_171 = arith.constant 0 : index
    %239 = vector.load %arg0[%c14, %c0_170, %c0_171] : memref<16x4x128xbf16, #tpu.memory_space<vmem>>, vector<1x4x128xbf16>
    %240 = vector.shape_cast %239 : vector<1x4x128xbf16> to vector<4x128xbf16>
    %cst_172 = arith.constant dense<0.000000e+00> : vector<8x128xf32>
    %241 = tpu.matmul %0, %240, %cst_172 {dimension_numbers = #tpu.dot_dimension_numbers<[1], [0], [0], [1], [0, 0, 1, 1], [], []>} : vector<8x4xbf16>, vector<4x128xbf16>, vector<8x128xf32> -> vector<8x128xf32>
    %242 = vector.broadcast %1 : vector<8x1xf32> to vector<8x128xf32>
    %243 = arith.addf %241, %242 : vector<8x128xf32>
    %cst_173 = arith.constant 0.000000e+00 : f32
    %244 = vector.broadcast %cst_173 : f32 to vector<8x128xf32>
    %245 = arith.maximumf %243, %244 : vector<8x128xf32>
    %c14_174 = arith.constant 14 : index
    %c0_175 = arith.constant 0 : index
    %c0_176 = arith.constant 0 : index
    %246 = vector.load %arg4[%c14_174, %c0_175, %c0_176] : memref<16x8x8xbf16, #tpu.memory_space<vmem>>, vector<1x8x8xbf16>
    %247 = vector.shape_cast %246 : vector<1x8x8xbf16> to vector<8x8xbf16>
    %c14_177 = arith.constant 14 : index
    %c0_178 = arith.constant 0 : index
    %c0_179 = arith.constant 0 : index
    %248 = vector.load %arg1[%c14_177, %c0_178, %c0_179] : memref<16x1x128xf32, #tpu.memory_space<vmem>>, vector<1x1x128xf32>
    %249 = vector.shape_cast %248 : vector<1x1x128xf32> to vector<1x128xf32>
    %250 = vector.broadcast %249 : vector<1x128xf32> to vector<8x128xf32>
    %251 = arith.mulf %245, %250 : vector<8x128xf32>
    %252 = arith.truncf %251 : vector<8x128xf32> to vector<8x128xbf16>
    %cst_180 = arith.constant dense<0.000000e+00> : vector<8x128xf32>
    %253 = tpu.matmul %247, %252, %cst_180 {dimension_numbers = #tpu.dot_dimension_numbers<[1], [0], [0], [1], [0, 0, 1, 1], [], []>} : vector<8x8xbf16>, vector<8x128xbf16>, vector<8x128xf32> -> vector<8x128xf32>
    %254 = arith.addf %238, %253 : vector<8x128xf32>
    %c15 = arith.constant 15 : index
    %c0_181 = arith.constant 0 : index
    %c0_182 = arith.constant 0 : index
    %255 = vector.load %arg0[%c15, %c0_181, %c0_182] : memref<16x4x128xbf16, #tpu.memory_space<vmem>>, vector<1x4x128xbf16>
    %256 = vector.shape_cast %255 : vector<1x4x128xbf16> to vector<4x128xbf16>
    %cst_183 = arith.constant dense<0.000000e+00> : vector<8x128xf32>
    %257 = tpu.matmul %0, %256, %cst_183 {dimension_numbers = #tpu.dot_dimension_numbers<[1], [0], [0], [1], [0, 0, 1, 1], [], []>} : vector<8x4xbf16>, vector<4x128xbf16>, vector<8x128xf32> -> vector<8x128xf32>
    %258 = vector.broadcast %1 : vector<8x1xf32> to vector<8x128xf32>
    %259 = arith.addf %257, %258 : vector<8x128xf32>
    %cst_184 = arith.constant 0.000000e+00 : f32
    %260 = vector.broadcast %cst_184 : f32 to vector<8x128xf32>
    %261 = arith.maximumf %259, %260 : vector<8x128xf32>
    %c15_185 = arith.constant 15 : index
    %c0_186 = arith.constant 0 : index
    %c0_187 = arith.constant 0 : index
    %262 = vector.load %arg4[%c15_185, %c0_186, %c0_187] : memref<16x8x8xbf16, #tpu.memory_space<vmem>>, vector<1x8x8xbf16>
    %263 = vector.shape_cast %262 : vector<1x8x8xbf16> to vector<8x8xbf16>
    %c15_188 = arith.constant 15 : index
    %c0_189 = arith.constant 0 : index
    %c0_190 = arith.constant 0 : index
    %264 = vector.load %arg1[%c15_188, %c0_189, %c0_190] : memref<16x1x128xf32, #tpu.memory_space<vmem>>, vector<1x1x128xf32>
    %265 = vector.shape_cast %264 : vector<1x1x128xf32> to vector<1x128xf32>
    %266 = vector.broadcast %265 : vector<1x128xf32> to vector<8x128xf32>
    %267 = arith.mulf %261, %266 : vector<8x128xf32>
    %268 = arith.truncf %267 : vector<8x128xf32> to vector<8x128xbf16>
    %cst_191 = arith.constant dense<0.000000e+00> : vector<8x128xf32>
    %269 = tpu.matmul %263, %268, %cst_191 {dimension_numbers = #tpu.dot_dimension_numbers<[1], [0], [0], [1], [0, 0, 1, 1], [], []>} : vector<8x8xbf16>, vector<8x128xbf16>, vector<8x128xf32> -> vector<8x128xf32>
    %270 = arith.addf %254, %269 : vector<8x128xf32>
    %c0_192 = arith.constant 0 : index
    %c0_193 = arith.constant 0 : index
    %271 = vector.load %arg5[%c0_192, %c0_193] : memref<8x1xf32, #tpu.memory_space<vmem>>, vector<8x1xf32>
    %272 = vector.broadcast %271 : vector<8x1xf32> to vector<8x128xf32>
    %273 = arith.addf %270, %272 : vector<8x128xf32>
    %c0_194 = arith.constant 0 : index
    %c0_195 = arith.constant 0 : index
    %274 = vector.load %arg6[%c0_194, %c0_195] : memref<8x1xf32, #tpu.memory_space<vmem>>, vector<8x1xf32>
    %c0_196 = arith.constant 0 : index
    %c0_197 = arith.constant 0 : index
    %275 = vector.load %arg7[%c0_196, %c0_197] : memref<8x1xf32, #tpu.memory_space<vmem>>, vector<8x1xf32>
    %cst_198 = arith.constant dense<0.000000e+00> : vector<8xf32>
    %276 = vector.multi_reduction <add>, %273, %cst_198 [1] : vector<8x128xf32> to vector<8xf32>
    %277 = vector.shape_cast %276 : vector<8xf32> to vector<8x1xf32>
    %cst_199 = arith.constant 1.280000e+02 : f32
    %278 = vector.broadcast %cst_199 : f32 to vector<8x1xf32>
    %279 = arith.divf %277, %278 : vector<8x1xf32>
    %280 = vector.broadcast %279 : vector<8x1xf32> to vector<8x128xf32>
    %281 = arith.subf %273, %280 : vector<8x128xf32>
    %282 = arith.mulf %281, %281 : vector<8x128xf32>
    %cst_200 = arith.constant dense<0.000000e+00> : vector<8xf32>
    %283 = vector.multi_reduction <add>, %282, %cst_200 [1] : vector<8x128xf32> to vector<8xf32>
    %284 = vector.shape_cast %283 : vector<8xf32> to vector<8x1xf32>
    %cst_201 = arith.constant 1.280000e+02 : f32
    %285 = vector.broadcast %cst_201 : f32 to vector<8x1xf32>
    %286 = arith.divf %284, %285 : vector<8x1xf32>
    %cst_202 = arith.constant 9.99999974E-6 : f32
    %287 = vector.broadcast %cst_202 : f32 to vector<8x1xf32>
    %288 = arith.addf %286, %287 : vector<8x1xf32>
    %289 = math.rsqrt %288 : vector<8x1xf32>
    %290 = vector.broadcast %289 : vector<8x1xf32> to vector<8x128xf32>
    %291 = arith.mulf %281, %290 : vector<8x128xf32>
    %292 = vector.broadcast %274 : vector<8x1xf32> to vector<8x128xf32>
    %293 = arith.mulf %291, %292 : vector<8x128xf32>
    %294 = vector.broadcast %275 : vector<8x1xf32> to vector<8x128xf32>
    %295 = arith.addf %293, %294 : vector<8x128xf32>
    %cst_203 = arith.constant 0.000000e+00 : f32
    %296 = vector.broadcast %cst_203 : f32 to vector<8x128xf32>
    %297 = arith.maximumf %295, %296 : vector<8x128xf32>
    %c0_204 = arith.constant 0 : index
    %c0_205 = arith.constant 0 : index
    %298 = vector.load %arg8[%c0_204, %c0_205] : memref<8x128xf32, #tpu.memory_space<vmem>>, vector<8x128xf32>
    tpu.vector_store %arg8[%c0_204, %c0_205], %297 {strides = array<i32>} : memref<8x128xf32, #tpu.memory_space<vmem>>, vector<8x128xf32>,
    return
  }
}

module attributes {stable_mosaic.version = 11 : i64} {
  func.func @_up_bn_relu_sub_kernel(%arg0: memref<9x8x128xbf16, #tpu.memory_space<vmem>>, %arg1: memref<9x32x8xbf16, #tpu.memory_space<vmem>>, %arg2: memref<32x1xf32, #tpu.memory_space<vmem>>, %arg3: memref<8x1xf32, #tpu.memory_space<vmem>>, %arg4: memref<8x1xf32, #tpu.memory_space<vmem>>, %arg5: memref<4x8x128xf32, #tpu.memory_space<vmem>>, %arg6: memref<4x8x128xbf16, #tpu.memory_space<vmem>>) attributes {dimension_semantics = [], scalar_prefetch = 0 : i64, scratch_operands = 0 : i64, tpu.core_type = #tpu.core_type<tc>} {
    %cst = arith.constant 0.000000e+00 : f32
    %0 = vector.broadcast %cst : f32 to vector<32x128xf32>
    %c0 = arith.constant 0 : index
    %c0_0 = arith.constant 0 : index
    %c0_1 = arith.constant 0 : index
    %1 = vector.load %arg1[%c0, %c0_0, %c0_1] : memref<9x32x8xbf16, #tpu.memory_space<vmem>>, vector<1x32x8xbf16>
    %2 = vector.shape_cast %1 : vector<1x32x8xbf16> to vector<32x8xbf16>
    %c0_2 = arith.constant 0 : index
    %c0_3 = arith.constant 0 : index
    %c0_4 = arith.constant 0 : index
    %3 = vector.load %arg0[%c0_2, %c0_3, %c0_4] : memref<9x8x128xbf16, #tpu.memory_space<vmem>>, vector<1x8x128xbf16>
    %4 = vector.shape_cast %3 : vector<1x8x128xbf16> to vector<8x128xbf16>
    %cst_5 = arith.constant dense<0.000000e+00> : vector<32x128xf32>
    %5 = tpu.matmul %2, %4, %cst_5 {dimension_numbers = #tpu.dot_dimension_numbers<[1], [0], [0], [1], [0, 0, 1, 1], [], []>} : vector<32x8xbf16>, vector<8x128xbf16>, vector<32x128xf32> -> vector<32x128xf32>
    %6 = arith.addf %0, %5 : vector<32x128xf32>
    %c1 = arith.constant 1 : index
    %c0_6 = arith.constant 0 : index
    %c0_7 = arith.constant 0 : index
    %7 = vector.load %arg1[%c1, %c0_6, %c0_7] : memref<9x32x8xbf16, #tpu.memory_space<vmem>>, vector<1x32x8xbf16>
    %8 = vector.shape_cast %7 : vector<1x32x8xbf16> to vector<32x8xbf16>
    %c1_8 = arith.constant 1 : index
    %c0_9 = arith.constant 0 : index
    %c0_10 = arith.constant 0 : index
    %9 = vector.load %arg0[%c1_8, %c0_9, %c0_10] : memref<9x8x128xbf16, #tpu.memory_space<vmem>>, vector<1x8x128xbf16>
    %10 = vector.shape_cast %9 : vector<1x8x128xbf16> to vector<8x128xbf16>
    %cst_11 = arith.constant dense<0.000000e+00> : vector<32x128xf32>
    %11 = tpu.matmul %8, %10, %cst_11 {dimension_numbers = #tpu.dot_dimension_numbers<[1], [0], [0], [1], [0, 0, 1, 1], [], []>} : vector<32x8xbf16>, vector<8x128xbf16>, vector<32x128xf32> -> vector<32x128xf32>
    %12 = arith.addf %6, %11 : vector<32x128xf32>
    %c2 = arith.constant 2 : index
    %c0_12 = arith.constant 0 : index
    %c0_13 = arith.constant 0 : index
    %13 = vector.load %arg1[%c2, %c0_12, %c0_13] : memref<9x32x8xbf16, #tpu.memory_space<vmem>>, vector<1x32x8xbf16>
    %14 = vector.shape_cast %13 : vector<1x32x8xbf16> to vector<32x8xbf16>
    %c2_14 = arith.constant 2 : index
    %c0_15 = arith.constant 0 : index
    %c0_16 = arith.constant 0 : index
    %15 = vector.load %arg0[%c2_14, %c0_15, %c0_16] : memref<9x8x128xbf16, #tpu.memory_space<vmem>>, vector<1x8x128xbf16>
    %16 = vector.shape_cast %15 : vector<1x8x128xbf16> to vector<8x128xbf16>
    %cst_17 = arith.constant dense<0.000000e+00> : vector<32x128xf32>
    %17 = tpu.matmul %14, %16, %cst_17 {dimension_numbers = #tpu.dot_dimension_numbers<[1], [0], [0], [1], [0, 0, 1, 1], [], []>} : vector<32x8xbf16>, vector<8x128xbf16>, vector<32x128xf32> -> vector<32x128xf32>
    %18 = arith.addf %12, %17 : vector<32x128xf32>
    %c3 = arith.constant 3 : index
    %c0_18 = arith.constant 0 : index
    %c0_19 = arith.constant 0 : index
    %19 = vector.load %arg1[%c3, %c0_18, %c0_19] : memref<9x32x8xbf16, #tpu.memory_space<vmem>>, vector<1x32x8xbf16>
    %20 = vector.shape_cast %19 : vector<1x32x8xbf16> to vector<32x8xbf16>
    %c3_20 = arith.constant 3 : index
    %c0_21 = arith.constant 0 : index
    %c0_22 = arith.constant 0 : index
    %21 = vector.load %arg0[%c3_20, %c0_21, %c0_22] : memref<9x8x128xbf16, #tpu.memory_space<vmem>>, vector<1x8x128xbf16>
    %22 = vector.shape_cast %21 : vector<1x8x128xbf16> to vector<8x128xbf16>
    %cst_23 = arith.constant dense<0.000000e+00> : vector<32x128xf32>
    %23 = tpu.matmul %20, %22, %cst_23 {dimension_numbers = #tpu.dot_dimension_numbers<[1], [0], [0], [1], [0, 0, 1, 1], [], []>} : vector<32x8xbf16>, vector<8x128xbf16>, vector<32x128xf32> -> vector<32x128xf32>
    %24 = arith.addf %18, %23 : vector<32x128xf32>
    %c4 = arith.constant 4 : index
    %c0_24 = arith.constant 0 : index
    %c0_25 = arith.constant 0 : index
    %25 = vector.load %arg1[%c4, %c0_24, %c0_25] : memref<9x32x8xbf16, #tpu.memory_space<vmem>>, vector<1x32x8xbf16>
    %26 = vector.shape_cast %25 : vector<1x32x8xbf16> to vector<32x8xbf16>
    %c4_26 = arith.constant 4 : index
    %c0_27 = arith.constant 0 : index
    %c0_28 = arith.constant 0 : index
    %27 = vector.load %arg0[%c4_26, %c0_27, %c0_28] : memref<9x8x128xbf16, #tpu.memory_space<vmem>>, vector<1x8x128xbf16>
    %28 = vector.shape_cast %27 : vector<1x8x128xbf16> to vector<8x128xbf16>
    %cst_29 = arith.constant dense<0.000000e+00> : vector<32x128xf32>
    %29 = tpu.matmul %26, %28, %cst_29 {dimension_numbers = #tpu.dot_dimension_numbers<[1], [0], [0], [1], [0, 0, 1, 1], [], []>} : vector<32x8xbf16>, vector<8x128xbf16>, vector<32x128xf32> -> vector<32x128xf32>
    %30 = arith.addf %24, %29 : vector<32x128xf32>
    %c5 = arith.constant 5 : index
    %c0_30 = arith.constant 0 : index
    %c0_31 = arith.constant 0 : index
    %31 = vector.load %arg1[%c5, %c0_30, %c0_31] : memref<9x32x8xbf16, #tpu.memory_space<vmem>>, vector<1x32x8xbf16>
    %32 = vector.shape_cast %31 : vector<1x32x8xbf16> to vector<32x8xbf16>
    %c5_32 = arith.constant 5 : index
    %c0_33 = arith.constant 0 : index
    %c0_34 = arith.constant 0 : index
    %33 = vector.load %arg0[%c5_32, %c0_33, %c0_34] : memref<9x8x128xbf16, #tpu.memory_space<vmem>>, vector<1x8x128xbf16>
    %34 = vector.shape_cast %33 : vector<1x8x128xbf16> to vector<8x128xbf16>
    %cst_35 = arith.constant dense<0.000000e+00> : vector<32x128xf32>
    %35 = tpu.matmul %32, %34, %cst_35 {dimension_numbers = #tpu.dot_dimension_numbers<[1], [0], [0], [1], [0, 0, 1, 1], [], []>} : vector<32x8xbf16>, vector<8x128xbf16>, vector<32x128xf32> -> vector<32x128xf32>
    %36 = arith.addf %30, %35 : vector<32x128xf32>
    %c6 = arith.constant 6 : index
    %c0_36 = arith.constant 0 : index
    %c0_37 = arith.constant 0 : index
    %37 = vector.load %arg1[%c6, %c0_36, %c0_37] : memref<9x32x8xbf16, #tpu.memory_space<vmem>>, vector<1x32x8xbf16>
    %38 = vector.shape_cast %37 : vector<1x32x8xbf16> to vector<32x8xbf16>
    %c6_38 = arith.constant 6 : index
    %c0_39 = arith.constant 0 : index
    %c0_40 = arith.constant 0 : index
    %39 = vector.load %arg0[%c6_38, %c0_39, %c0_40] : memref<9x8x128xbf16, #tpu.memory_space<vmem>>, vector<1x8x128xbf16>
    %40 = vector.shape_cast %39 : vector<1x8x128xbf16> to vector<8x128xbf16>
    %cst_41 = arith.constant dense<0.000000e+00> : vector<32x128xf32>
    %41 = tpu.matmul %38, %40, %cst_41 {dimension_numbers = #tpu.dot_dimension_numbers<[1], [0], [0], [1], [0, 0, 1, 1], [], []>} : vector<32x8xbf16>, vector<8x128xbf16>, vector<32x128xf32> -> vector<32x128xf32>
    %42 = arith.addf %36, %41 : vector<32x128xf32>
    %c7 = arith.constant 7 : index
    %c0_42 = arith.constant 0 : index
    %c0_43 = arith.constant 0 : index
    %43 = vector.load %arg1[%c7, %c0_42, %c0_43] : memref<9x32x8xbf16, #tpu.memory_space<vmem>>, vector<1x32x8xbf16>
    %44 = vector.shape_cast %43 : vector<1x32x8xbf16> to vector<32x8xbf16>
    %c7_44 = arith.constant 7 : index
    %c0_45 = arith.constant 0 : index
    %c0_46 = arith.constant 0 : index
    %45 = vector.load %arg0[%c7_44, %c0_45, %c0_46] : memref<9x8x128xbf16, #tpu.memory_space<vmem>>, vector<1x8x128xbf16>
    %46 = vector.shape_cast %45 : vector<1x8x128xbf16> to vector<8x128xbf16>
    %cst_47 = arith.constant dense<0.000000e+00> : vector<32x128xf32>
    %47 = tpu.matmul %44, %46, %cst_47 {dimension_numbers = #tpu.dot_dimension_numbers<[1], [0], [0], [1], [0, 0, 1, 1], [], []>} : vector<32x8xbf16>, vector<8x128xbf16>, vector<32x128xf32> -> vector<32x128xf32>
    %48 = arith.addf %42, %47 : vector<32x128xf32>
    %c8 = arith.constant 8 : index
    %c0_48 = arith.constant 0 : index
    %c0_49 = arith.constant 0 : index
    %49 = vector.load %arg1[%c8, %c0_48, %c0_49] : memref<9x32x8xbf16, #tpu.memory_space<vmem>>, vector<1x32x8xbf16>
    %50 = vector.shape_cast %49 : vector<1x32x8xbf16> to vector<32x8xbf16>
    %c8_50 = arith.constant 8 : index
    %c0_51 = arith.constant 0 : index
    %c0_52 = arith.constant 0 : index
    %51 = vector.load %arg0[%c8_50, %c0_51, %c0_52] : memref<9x8x128xbf16, #tpu.memory_space<vmem>>, vector<1x8x128xbf16>
    %52 = vector.shape_cast %51 : vector<1x8x128xbf16> to vector<8x128xbf16>
    %cst_53 = arith.constant dense<0.000000e+00> : vector<32x128xf32>
    %53 = tpu.matmul %50, %52, %cst_53 {dimension_numbers = #tpu.dot_dimension_numbers<[1], [0], [0], [1], [0, 0, 1, 1], [], []>} : vector<32x8xbf16>, vector<8x128xbf16>, vector<32x128xf32> -> vector<32x128xf32>
    %54 = arith.addf %48, %53 : vector<32x128xf32>
    %c0_54 = arith.constant 0 : index
    %c0_55 = arith.constant 0 : index
    %55 = vector.load %arg2[%c0_54, %c0_55] : memref<32x1xf32, #tpu.memory_space<vmem>>, vector<32x1xf32>
    %56 = vector.broadcast %55 : vector<32x1xf32> to vector<32x128xf32>
    %57 = arith.addf %54, %56 : vector<32x128xf32>
    %58 = vector.shape_cast %57 : vector<32x128xf32> to vector<4x8x128xf32>
    %cst_56 = arith.constant dense<0.000000e+00> : vector<8x128xf32>
    %59 = vector.multi_reduction <add>, %58, %cst_56 [0] : vector<4x8x128xf32> to vector<8x128xf32>
    %cst_57 = arith.constant dense<0.000000e+00> : vector<8xf32>
    %60 = vector.multi_reduction <add>, %59, %cst_57 [1] : vector<8x128xf32> to vector<8xf32>
    %61 = vector.shape_cast %60 : vector<8xf32> to vector<8x1xf32>
    %cst_58 = arith.constant 5.120000e+02 : f32
    %62 = vector.broadcast %cst_58 : f32 to vector<8x1xf32>
    %63 = arith.divf %61, %62 : vector<8x1xf32>
    %64 = vector.shape_cast %63 : vector<8x1xf32> to vector<1x8x1xf32>
    %65 = vector.broadcast %64 : vector<1x8x1xf32> to vector<4x8x128xf32>
    %66 = arith.subf %58, %65 : vector<4x8x128xf32>
    %67 = arith.mulf %66, %66 : vector<4x8x128xf32>
    %cst_59 = arith.constant dense<0.000000e+00> : vector<8x128xf32>
    %68 = vector.multi_reduction <add>, %67, %cst_59 [0] : vector<4x8x128xf32> to vector<8x128xf32>
    %cst_60 = arith.constant dense<0.000000e+00> : vector<8xf32>
    %69 = vector.multi_reduction <add>, %68, %cst_60 [1] : vector<8x128xf32> to vector<8xf32>
    %70 = vector.shape_cast %69 : vector<8xf32> to vector<8x1xf32>
    %cst_61 = arith.constant 5.120000e+02 : f32
    %71 = vector.broadcast %cst_61 : f32 to vector<8x1xf32>
    %72 = arith.divf %70, %71 : vector<8x1xf32>
    %cst_62 = arith.constant 9.99999974E-6 : f32
    %73 = vector.broadcast %cst_62 : f32 to vector<8x1xf32>
    %74 = arith.addf %72, %73 : vector<8x1xf32>
    %75 = math.rsqrt %74 : vector<8x1xf32>
    %76 = vector.shape_cast %75 : vector<8x1xf32> to vector<1x8x1xf32>
    %77 = vector.broadcast %76 : vector<1x8x1xf32> to vector<4x8x128xf32>
    %78 = arith.mulf %66, %77 : vector<4x8x128xf32>
    %c0_63 = arith.constant 0 : index
    %c0_64 = arith.constant 0 : index
    %79 = vector.load %arg3[%c0_63, %c0_64] : memref<8x1xf32, #tpu.memory_space<vmem>>, vector<8x1xf32>
    %80 = vector.shape_cast %79 : vector<8x1xf32> to vector<1x8x1xf32>
    %81 = vector.broadcast %80 : vector<1x8x1xf32> to vector<4x8x128xf32>
    %82 = arith.mulf %78, %81 : vector<4x8x128xf32>
    %c0_65 = arith.constant 0 : index
    %c0_66 = arith.constant 0 : index
    %83 = vector.load %arg4[%c0_65, %c0_66] : memref<8x1xf32, #tpu.memory_space<vmem>>, vector<8x1xf32>
    %84 = vector.shape_cast %83 : vector<8x1xf32> to vector<1x8x1xf32>
    %85 = vector.broadcast %84 : vector<1x8x1xf32> to vector<4x8x128xf32>
    %86 = arith.addf %82, %85 : vector<4x8x128xf32>
    %cst_67 = arith.constant 0.000000e+00 : f32
    %87 = vector.broadcast %cst_67 : f32 to vector<4x8x128xf32>
    %88 = arith.maximumf %86, %87 : vector<4x8x128xf32>
    %c0_68 = arith.constant 0 : index
    %c0_69 = arith.constant 0 : index
    %c0_70 = arith.constant 0 : index
    %89 = vector.load %arg5[%c0_68, %c0_69, %c0_70] : memref<4x8x128xf32, #tpu.memory_space<vmem>>, vector<4x8x128xf32>
    %90 = arith.subf %88, %89 : vector<4x8x128xf32>
    %91 = arith.truncf %90 : vector<4x8x128xf32> to vector<4x8x128xbf16>
    %c0_71 = arith.constant 0 : index
    %c0_72 = arith.constant 0 : index
    %c0_73 = arith.constant 0 : index
    %92 = vector.load %arg6[%c0_71, %c0_72, %c0_73] : memref<4x8x128xbf16, #tpu.memory_space<vmem>>, vector<4x8x128xbf16>
    tpu.vector_store %arg6[%c0_71, %c0_72, %c0_73], %91 {strides = array<i32>} : memref<4x8x128xbf16, #tpu.memory_space<vmem>>, vector<4x8x128xbf16>,
    return
  }
}

module attributes {stable_mosaic.version = 11 : i64} {
  func.func @_down_bn_relu_add_kernel(%arg0: memref<16x8x128xbf16, #tpu.memory_space<vmem>>, %arg1: memref<16x8x8xbf16, #tpu.memory_space<vmem>>, %arg2: memref<8x1xf32, #tpu.memory_space<vmem>>, %arg3: memref<8x1xf32, #tpu.memory_space<vmem>>, %arg4: memref<8x1xf32, #tpu.memory_space<vmem>>, %arg5: memref<8x128xf32, #tpu.memory_space<vmem>>, %arg6: memref<8x128xf32, #tpu.memory_space<vmem>>) attributes {dimension_semantics = [], scalar_prefetch = 0 : i64, scratch_operands = 0 : i64, tpu.core_type = #tpu.core_type<tc>} {
    %cst = arith.constant 0.000000e+00 : f32
    %0 = vector.broadcast %cst : f32 to vector<8x128xf32>
    %c0 = arith.constant 0 : index
    %c0_0 = arith.constant 0 : index
    %c0_1 = arith.constant 0 : index
    %1 = vector.load %arg1[%c0, %c0_0, %c0_1] : memref<16x8x8xbf16, #tpu.memory_space<vmem>>, vector<1x8x8xbf16>
    %2 = vector.shape_cast %1 : vector<1x8x8xbf16> to vector<8x8xbf16>
    %c0_2 = arith.constant 0 : index
    %c0_3 = arith.constant 0 : index
    %c0_4 = arith.constant 0 : index
    %3 = vector.load %arg0[%c0_2, %c0_3, %c0_4] : memref<16x8x128xbf16, #tpu.memory_space<vmem>>, vector<1x8x128xbf16>
    %4 = vector.shape_cast %3 : vector<1x8x128xbf16> to vector<8x128xbf16>
    %cst_5 = arith.constant dense<0.000000e+00> : vector<8x128xf32>
    %5 = tpu.matmul %2, %4, %cst_5 {dimension_numbers = #tpu.dot_dimension_numbers<[1], [0], [0], [1], [0, 0, 1, 1], [], []>} : vector<8x8xbf16>, vector<8x128xbf16>, vector<8x128xf32> -> vector<8x128xf32>
    %6 = arith.addf %0, %5 : vector<8x128xf32>
    %c1 = arith.constant 1 : index
    %c0_6 = arith.constant 0 : index
    %c0_7 = arith.constant 0 : index
    %7 = vector.load %arg1[%c1, %c0_6, %c0_7] : memref<16x8x8xbf16, #tpu.memory_space<vmem>>, vector<1x8x8xbf16>
    %8 = vector.shape_cast %7 : vector<1x8x8xbf16> to vector<8x8xbf16>
    %c1_8 = arith.constant 1 : index
    %c0_9 = arith.constant 0 : index
    %c0_10 = arith.constant 0 : index
    %9 = vector.load %arg0[%c1_8, %c0_9, %c0_10] : memref<16x8x128xbf16, #tpu.memory_space<vmem>>, vector<1x8x128xbf16>
    %10 = vector.shape_cast %9 : vector<1x8x128xbf16> to vector<8x128xbf16>
    %cst_11 = arith.constant dense<0.000000e+00> : vector<8x128xf32>
    %11 = tpu.matmul %8, %10, %cst_11 {dimension_numbers = #tpu.dot_dimension_numbers<[1], [0], [0], [1], [0, 0, 1, 1], [], []>} : vector<8x8xbf16>, vector<8x128xbf16>, vector<8x128xf32> -> vector<8x128xf32>
    %12 = arith.addf %6, %11 : vector<8x128xf32>
    %c2 = arith.constant 2 : index
    %c0_12 = arith.constant 0 : index
    %c0_13 = arith.constant 0 : index
    %13 = vector.load %arg1[%c2, %c0_12, %c0_13] : memref<16x8x8xbf16, #tpu.memory_space<vmem>>, vector<1x8x8xbf16>
    %14 = vector.shape_cast %13 : vector<1x8x8xbf16> to vector<8x8xbf16>
    %c2_14 = arith.constant 2 : index
    %c0_15 = arith.constant 0 : index
    %c0_16 = arith.constant 0 : index
    %15 = vector.load %arg0[%c2_14, %c0_15, %c0_16] : memref<16x8x128xbf16, #tpu.memory_space<vmem>>, vector<1x8x128xbf16>
    %16 = vector.shape_cast %15 : vector<1x8x128xbf16> to vector<8x128xbf16>
    %cst_17 = arith.constant dense<0.000000e+00> : vector<8x128xf32>
    %17 = tpu.matmul %14, %16, %cst_17 {dimension_numbers = #tpu.dot_dimension_numbers<[1], [0], [0], [1], [0, 0, 1, 1], [], []>} : vector<8x8xbf16>, vector<8x128xbf16>, vector<8x128xf32> -> vector<8x128xf32>
    %18 = arith.addf %12, %17 : vector<8x128xf32>
    %c3 = arith.constant 3 : index
    %c0_18 = arith.constant 0 : index
    %c0_19 = arith.constant 0 : index
    %19 = vector.load %arg1[%c3, %c0_18, %c0_19] : memref<16x8x8xbf16, #tpu.memory_space<vmem>>, vector<1x8x8xbf16>
    %20 = vector.shape_cast %19 : vector<1x8x8xbf16> to vector<8x8xbf16>
    %c3_20 = arith.constant 3 : index
    %c0_21 = arith.constant 0 : index
    %c0_22 = arith.constant 0 : index
    %21 = vector.load %arg0[%c3_20, %c0_21, %c0_22] : memref<16x8x128xbf16, #tpu.memory_space<vmem>>, vector<1x8x128xbf16>
    %22 = vector.shape_cast %21 : vector<1x8x128xbf16> to vector<8x128xbf16>
    %cst_23 = arith.constant dense<0.000000e+00> : vector<8x128xf32>
    %23 = tpu.matmul %20, %22, %cst_23 {dimension_numbers = #tpu.dot_dimension_numbers<[1], [0], [0], [1], [0, 0, 1, 1], [], []>} : vector<8x8xbf16>, vector<8x128xbf16>, vector<8x128xf32> -> vector<8x128xf32>
    %24 = arith.addf %18, %23 : vector<8x128xf32>
    %c4 = arith.constant 4 : index
    %c0_24 = arith.constant 0 : index
    %c0_25 = arith.constant 0 : index
    %25 = vector.load %arg1[%c4, %c0_24, %c0_25] : memref<16x8x8xbf16, #tpu.memory_space<vmem>>, vector<1x8x8xbf16>
    %26 = vector.shape_cast %25 : vector<1x8x8xbf16> to vector<8x8xbf16>
    %c4_26 = arith.constant 4 : index
    %c0_27 = arith.constant 0 : index
    %c0_28 = arith.constant 0 : index
    %27 = vector.load %arg0[%c4_26, %c0_27, %c0_28] : memref<16x8x128xbf16, #tpu.memory_space<vmem>>, vector<1x8x128xbf16>
    %28 = vector.shape_cast %27 : vector<1x8x128xbf16> to vector<8x128xbf16>
    %cst_29 = arith.constant dense<0.000000e+00> : vector<8x128xf32>
    %29 = tpu.matmul %26, %28, %cst_29 {dimension_numbers = #tpu.dot_dimension_numbers<[1], [0], [0], [1], [0, 0, 1, 1], [], []>} : vector<8x8xbf16>, vector<8x128xbf16>, vector<8x128xf32> -> vector<8x128xf32>
    %30 = arith.addf %24, %29 : vector<8x128xf32>
    %c5 = arith.constant 5 : index
    %c0_30 = arith.constant 0 : index
    %c0_31 = arith.constant 0 : index
    %31 = vector.load %arg1[%c5, %c0_30, %c0_31] : memref<16x8x8xbf16, #tpu.memory_space<vmem>>, vector<1x8x8xbf16>
    %32 = vector.shape_cast %31 : vector<1x8x8xbf16> to vector<8x8xbf16>
    %c5_32 = arith.constant 5 : index
    %c0_33 = arith.constant 0 : index
    %c0_34 = arith.constant 0 : index
    %33 = vector.load %arg0[%c5_32, %c0_33, %c0_34] : memref<16x8x128xbf16, #tpu.memory_space<vmem>>, vector<1x8x128xbf16>
    %34 = vector.shape_cast %33 : vector<1x8x128xbf16> to vector<8x128xbf16>
    %cst_35 = arith.constant dense<0.000000e+00> : vector<8x128xf32>
    %35 = tpu.matmul %32, %34, %cst_35 {dimension_numbers = #tpu.dot_dimension_numbers<[1], [0], [0], [1], [0, 0, 1, 1], [], []>} : vector<8x8xbf16>, vector<8x128xbf16>, vector<8x128xf32> -> vector<8x128xf32>
    %36 = arith.addf %30, %35 : vector<8x128xf32>
    %c6 = arith.constant 6 : index
    %c0_36 = arith.constant 0 : index
    %c0_37 = arith.constant 0 : index
    %37 = vector.load %arg1[%c6, %c0_36, %c0_37] : memref<16x8x8xbf16, #tpu.memory_space<vmem>>, vector<1x8x8xbf16>
    %38 = vector.shape_cast %37 : vector<1x8x8xbf16> to vector<8x8xbf16>
    %c6_38 = arith.constant 6 : index
    %c0_39 = arith.constant 0 : index
    %c0_40 = arith.constant 0 : index
    %39 = vector.load %arg0[%c6_38, %c0_39, %c0_40] : memref<16x8x128xbf16, #tpu.memory_space<vmem>>, vector<1x8x128xbf16>
    %40 = vector.shape_cast %39 : vector<1x8x128xbf16> to vector<8x128xbf16>
    %cst_41 = arith.constant dense<0.000000e+00> : vector<8x128xf32>
    %41 = tpu.matmul %38, %40, %cst_41 {dimension_numbers = #tpu.dot_dimension_numbers<[1], [0], [0], [1], [0, 0, 1, 1], [], []>} : vector<8x8xbf16>, vector<8x128xbf16>, vector<8x128xf32> -> vector<8x128xf32>
    %42 = arith.addf %36, %41 : vector<8x128xf32>
    %c7 = arith.constant 7 : index
    %c0_42 = arith.constant 0 : index
    %c0_43 = arith.constant 0 : index
    %43 = vector.load %arg1[%c7, %c0_42, %c0_43] : memref<16x8x8xbf16, #tpu.memory_space<vmem>>, vector<1x8x8xbf16>
    %44 = vector.shape_cast %43 : vector<1x8x8xbf16> to vector<8x8xbf16>
    %c7_44 = arith.constant 7 : index
    %c0_45 = arith.constant 0 : index
    %c0_46 = arith.constant 0 : index
    %45 = vector.load %arg0[%c7_44, %c0_45, %c0_46] : memref<16x8x128xbf16, #tpu.memory_space<vmem>>, vector<1x8x128xbf16>
    %46 = vector.shape_cast %45 : vector<1x8x128xbf16> to vector<8x128xbf16>
    %cst_47 = arith.constant dense<0.000000e+00> : vector<8x128xf32>
    %47 = tpu.matmul %44, %46, %cst_47 {dimension_numbers = #tpu.dot_dimension_numbers<[1], [0], [0], [1], [0, 0, 1, 1], [], []>} : vector<8x8xbf16>, vector<8x128xbf16>, vector<8x128xf32> -> vector<8x128xf32>
    %48 = arith.addf %42, %47 : vector<8x128xf32>
    %c8 = arith.constant 8 : index
    %c0_48 = arith.constant 0 : index
    %c0_49 = arith.constant 0 : index
    %49 = vector.load %arg1[%c8, %c0_48, %c0_49] : memref<16x8x8xbf16, #tpu.memory_space<vmem>>, vector<1x8x8xbf16>
    %50 = vector.shape_cast %49 : vector<1x8x8xbf16> to vector<8x8xbf16>
    %c8_50 = arith.constant 8 : index
    %c0_51 = arith.constant 0 : index
    %c0_52 = arith.constant 0 : index
    %51 = vector.load %arg0[%c8_50, %c0_51, %c0_52] : memref<16x8x128xbf16, #tpu.memory_space<vmem>>, vector<1x8x128xbf16>
    %52 = vector.shape_cast %51 : vector<1x8x128xbf16> to vector<8x128xbf16>
    %cst_53 = arith.constant dense<0.000000e+00> : vector<8x128xf32>
    %53 = tpu.matmul %50, %52, %cst_53 {dimension_numbers = #tpu.dot_dimension_numbers<[1], [0], [0], [1], [0, 0, 1, 1], [], []>} : vector<8x8xbf16>, vector<8x128xbf16>, vector<8x128xf32> -> vector<8x128xf32>
    %54 = arith.addf %48, %53 : vector<8x128xf32>
    %c9 = arith.constant 9 : index
    %c0_54 = arith.constant 0 : index
    %c0_55 = arith.constant 0 : index
    %55 = vector.load %arg1[%c9, %c0_54, %c0_55] : memref<16x8x8xbf16, #tpu.memory_space<vmem>>, vector<1x8x8xbf16>
    %56 = vector.shape_cast %55 : vector<1x8x8xbf16> to vector<8x8xbf16>
    %c9_56 = arith.constant 9 : index
    %c0_57 = arith.constant 0 : index
    %c0_58 = arith.constant 0 : index
    %57 = vector.load %arg0[%c9_56, %c0_57, %c0_58] : memref<16x8x128xbf16, #tpu.memory_space<vmem>>, vector<1x8x128xbf16>
    %58 = vector.shape_cast %57 : vector<1x8x128xbf16> to vector<8x128xbf16>
    %cst_59 = arith.constant dense<0.000000e+00> : vector<8x128xf32>
    %59 = tpu.matmul %56, %58, %cst_59 {dimension_numbers = #tpu.dot_dimension_numbers<[1], [0], [0], [1], [0, 0, 1, 1], [], []>} : vector<8x8xbf16>, vector<8x128xbf16>, vector<8x128xf32> -> vector<8x128xf32>
    %60 = arith.addf %54, %59 : vector<8x128xf32>
    %c10 = arith.constant 10 : index
    %c0_60 = arith.constant 0 : index
    %c0_61 = arith.constant 0 : index
    %61 = vector.load %arg1[%c10, %c0_60, %c0_61] : memref<16x8x8xbf16, #tpu.memory_space<vmem>>, vector<1x8x8xbf16>
    %62 = vector.shape_cast %61 : vector<1x8x8xbf16> to vector<8x8xbf16>
    %c10_62 = arith.constant 10 : index
    %c0_63 = arith.constant 0 : index
    %c0_64 = arith.constant 0 : index
    %63 = vector.load %arg0[%c10_62, %c0_63, %c0_64] : memref<16x8x128xbf16, #tpu.memory_space<vmem>>, vector<1x8x128xbf16>
    %64 = vector.shape_cast %63 : vector<1x8x128xbf16> to vector<8x128xbf16>
    %cst_65 = arith.constant dense<0.000000e+00> : vector<8x128xf32>
    %65 = tpu.matmul %62, %64, %cst_65 {dimension_numbers = #tpu.dot_dimension_numbers<[1], [0], [0], [1], [0, 0, 1, 1], [], []>} : vector<8x8xbf16>, vector<8x128xbf16>, vector<8x128xf32> -> vector<8x128xf32>
    %66 = arith.addf %60, %65 : vector<8x128xf32>
    %c11 = arith.constant 11 : index
    %c0_66 = arith.constant 0 : index
    %c0_67 = arith.constant 0 : index
    %67 = vector.load %arg1[%c11, %c0_66, %c0_67] : memref<16x8x8xbf16, #tpu.memory_space<vmem>>, vector<1x8x8xbf16>
    %68 = vector.shape_cast %67 : vector<1x8x8xbf16> to vector<8x8xbf16>
    %c11_68 = arith.constant 11 : index
    %c0_69 = arith.constant 0 : index
    %c0_70 = arith.constant 0 : index
    %69 = vector.load %arg0[%c11_68, %c0_69, %c0_70] : memref<16x8x128xbf16, #tpu.memory_space<vmem>>, vector<1x8x128xbf16>
    %70 = vector.shape_cast %69 : vector<1x8x128xbf16> to vector<8x128xbf16>
    %cst_71 = arith.constant dense<0.000000e+00> : vector<8x128xf32>
    %71 = tpu.matmul %68, %70, %cst_71 {dimension_numbers = #tpu.dot_dimension_numbers<[1], [0], [0], [1], [0, 0, 1, 1], [], []>} : vector<8x8xbf16>, vector<8x128xbf16>, vector<8x128xf32> -> vector<8x128xf32>
    %72 = arith.addf %66, %71 : vector<8x128xf32>
    %c12 = arith.constant 12 : index
    %c0_72 = arith.constant 0 : index
    %c0_73 = arith.constant 0 : index
    %73 = vector.load %arg1[%c12, %c0_72, %c0_73] : memref<16x8x8xbf16, #tpu.memory_space<vmem>>, vector<1x8x8xbf16>
    %74 = vector.shape_cast %73 : vector<1x8x8xbf16> to vector<8x8xbf16>
    %c12_74 = arith.constant 12 : index
    %c0_75 = arith.constant 0 : index
    %c0_76 = arith.constant 0 : index
    %75 = vector.load %arg0[%c12_74, %c0_75, %c0_76] : memref<16x8x128xbf16, #tpu.memory_space<vmem>>, vector<1x8x128xbf16>
    %76 = vector.shape_cast %75 : vector<1x8x128xbf16> to vector<8x128xbf16>
    %cst_77 = arith.constant dense<0.000000e+00> : vector<8x128xf32>
    %77 = tpu.matmul %74, %76, %cst_77 {dimension_numbers = #tpu.dot_dimension_numbers<[1], [0], [0], [1], [0, 0, 1, 1], [], []>} : vector<8x8xbf16>, vector<8x128xbf16>, vector<8x128xf32> -> vector<8x128xf32>
    %78 = arith.addf %72, %77 : vector<8x128xf32>
    %c13 = arith.constant 13 : index
    %c0_78 = arith.constant 0 : index
    %c0_79 = arith.constant 0 : index
    %79 = vector.load %arg1[%c13, %c0_78, %c0_79] : memref<16x8x8xbf16, #tpu.memory_space<vmem>>, vector<1x8x8xbf16>
    %80 = vector.shape_cast %79 : vector<1x8x8xbf16> to vector<8x8xbf16>
    %c13_80 = arith.constant 13 : index
    %c0_81 = arith.constant 0 : index
    %c0_82 = arith.constant 0 : index
    %81 = vector.load %arg0[%c13_80, %c0_81, %c0_82] : memref<16x8x128xbf16, #tpu.memory_space<vmem>>, vector<1x8x128xbf16>
    %82 = vector.shape_cast %81 : vector<1x8x128xbf16> to vector<8x128xbf16>
    %cst_83 = arith.constant dense<0.000000e+00> : vector<8x128xf32>
    %83 = tpu.matmul %80, %82, %cst_83 {dimension_numbers = #tpu.dot_dimension_numbers<[1], [0], [0], [1], [0, 0, 1, 1], [], []>} : vector<8x8xbf16>, vector<8x128xbf16>, vector<8x128xf32> -> vector<8x128xf32>
    %84 = arith.addf %78, %83 : vector<8x128xf32>
    %c14 = arith.constant 14 : index
    %c0_84 = arith.constant 0 : index
    %c0_85 = arith.constant 0 : index
    %85 = vector.load %arg1[%c14, %c0_84, %c0_85] : memref<16x8x8xbf16, #tpu.memory_space<vmem>>, vector<1x8x8xbf16>
    %86 = vector.shape_cast %85 : vector<1x8x8xbf16> to vector<8x8xbf16>
    %c14_86 = arith.constant 14 : index
    %c0_87 = arith.constant 0 : index
    %c0_88 = arith.constant 0 : index
    %87 = vector.load %arg0[%c14_86, %c0_87, %c0_88] : memref<16x8x128xbf16, #tpu.memory_space<vmem>>, vector<1x8x128xbf16>
    %88 = vector.shape_cast %87 : vector<1x8x128xbf16> to vector<8x128xbf16>
    %cst_89 = arith.constant dense<0.000000e+00> : vector<8x128xf32>
    %89 = tpu.matmul %86, %88, %cst_89 {dimension_numbers = #tpu.dot_dimension_numbers<[1], [0], [0], [1], [0, 0, 1, 1], [], []>} : vector<8x8xbf16>, vector<8x128xbf16>, vector<8x128xf32> -> vector<8x128xf32>
    %90 = arith.addf %84, %89 : vector<8x128xf32>
    %c15 = arith.constant 15 : index
    %c0_90 = arith.constant 0 : index
    %c0_91 = arith.constant 0 : index
    %91 = vector.load %arg1[%c15, %c0_90, %c0_91] : memref<16x8x8xbf16, #tpu.memory_space<vmem>>, vector<1x8x8xbf16>
    %92 = vector.shape_cast %91 : vector<1x8x8xbf16> to vector<8x8xbf16>
    %c15_92 = arith.constant 15 : index
    %c0_93 = arith.constant 0 : index
    %c0_94 = arith.constant 0 : index
    %93 = vector.load %arg0[%c15_92, %c0_93, %c0_94] : memref<16x8x128xbf16, #tpu.memory_space<vmem>>, vector<1x8x128xbf16>
    %94 = vector.shape_cast %93 : vector<1x8x128xbf16> to vector<8x128xbf16>
    %cst_95 = arith.constant dense<0.000000e+00> : vector<8x128xf32>
    %95 = tpu.matmul %92, %94, %cst_95 {dimension_numbers = #tpu.dot_dimension_numbers<[1], [0], [0], [1], [0, 0, 1, 1], [], []>} : vector<8x8xbf16>, vector<8x128xbf16>, vector<8x128xf32> -> vector<8x128xf32>
    %96 = arith.addf %90, %95 : vector<8x128xf32>
    %c0_96 = arith.constant 0 : index
    %c0_97 = arith.constant 0 : index
    %97 = vector.load %arg2[%c0_96, %c0_97] : memref<8x1xf32, #tpu.memory_space<vmem>>, vector<8x1xf32>
    %98 = vector.broadcast %97 : vector<8x1xf32> to vector<8x128xf32>
    %99 = arith.addf %96, %98 : vector<8x128xf32>
    %c0_98 = arith.constant 0 : index
    %c0_99 = arith.constant 0 : index
    %100 = vector.load %arg3[%c0_98, %c0_99] : memref<8x1xf32, #tpu.memory_space<vmem>>, vector<8x1xf32>
    %c0_100 = arith.constant 0 : index
    %c0_101 = arith.constant 0 : index
    %101 = vector.load %arg4[%c0_100, %c0_101] : memref<8x1xf32, #tpu.memory_space<vmem>>, vector<8x1xf32>
    %cst_102 = arith.constant dense<0.000000e+00> : vector<8xf32>
    %102 = vector.multi_reduction <add>, %99, %cst_102 [1] : vector<8x128xf32> to vector<8xf32>
    %103 = vector.shape_cast %102 : vector<8xf32> to vector<8x1xf32>
    %cst_103 = arith.constant 1.280000e+02 : f32
    %104 = vector.broadcast %cst_103 : f32 to vector<8x1xf32>
    %105 = arith.divf %103, %104 : vector<8x1xf32>
    %106 = vector.broadcast %105 : vector<8x1xf32> to vector<8x128xf32>
    %107 = arith.subf %99, %106 : vector<8x128xf32>
    %108 = arith.mulf %107, %107 : vector<8x128xf32>
    %cst_104 = arith.constant dense<0.000000e+00> : vector<8xf32>
    %109 = vector.multi_reduction <add>, %108, %cst_104 [1] : vector<8x128xf32> to vector<8xf32>
    %110 = vector.shape_cast %109 : vector<8xf32> to vector<8x1xf32>
    %cst_105 = arith.constant 1.280000e+02 : f32
    %111 = vector.broadcast %cst_105 : f32 to vector<8x1xf32>
    %112 = arith.divf %110, %111 : vector<8x1xf32>
    %cst_106 = arith.constant 9.99999974E-6 : f32
    %113 = vector.broadcast %cst_106 : f32 to vector<8x1xf32>
    %114 = arith.addf %112, %113 : vector<8x1xf32>
    %115 = math.rsqrt %114 : vector<8x1xf32>
    %116 = vector.broadcast %115 : vector<8x1xf32> to vector<8x128xf32>
    %117 = arith.mulf %107, %116 : vector<8x128xf32>
    %118 = vector.broadcast %100 : vector<8x1xf32> to vector<8x128xf32>
    %119 = arith.mulf %117, %118 : vector<8x128xf32>
    %120 = vector.broadcast %101 : vector<8x1xf32> to vector<8x128xf32>
    %121 = arith.addf %119, %120 : vector<8x128xf32>
    %cst_107 = arith.constant 0.000000e+00 : f32
    %122 = vector.broadcast %cst_107 : f32 to vector<8x128xf32>
    %123 = arith.maximumf %121, %122 : vector<8x128xf32>
    %c0_108 = arith.constant 0 : index
    %c0_109 = arith.constant 0 : index
    %124 = vector.load %arg5[%c0_108, %c0_109] : memref<8x128xf32, #tpu.memory_space<vmem>>, vector<8x128xf32>
    %125 = arith.addf %123, %124 : vector<8x128xf32>
    %c0_110 = arith.constant 0 : index
    %c0_111 = arith.constant 0 : index
    %126 = vector.load %arg6[%c0_110, %c0_111] : memref<8x128xf32, #tpu.memory_space<vmem>>, vector<8x128xf32>
    tpu.vector_store %arg6[%c0_110, %c0_111], %125 {strides = array<i32>} : memref<8x128xf32, #tpu.memory_space<vmem>>, vector<8x128xf32>,
    return
  }
}

</mosaic_0001>

<llo_original>
// kernel: db_downsample_forward.3
$region0: #{db_downsample_forward.3}
  #allocation0 [shape = 'u32[]', space=smem, size = 0x4, offset = 0x4, fixed_abs, tag = 'smem constant byte address 0x4 - core index']
  #allocation1 [shape = 'u32[144,128]{1,0:T(1,128)}', space=vmem, size = 0x12000, scoped, tag = 'internal scratch']
  %s0 = inlined_call_operand.vmem [shape: bf16[16,4,128], index: 0, kind: input, shape index: {}]
  %s1 = inlined_call_operand.vmem [shape: f32[16,1,128], index: 1, kind: input, shape index: {}]
  %s2 = inlined_call_operand.vmem [shape: bf16[8,4], index: 2, kind: input, shape index: {}]
  %s3 = inlined_call_operand.vmem [shape: f32[8,1], index: 3, kind: input, shape index: {}]
  %s4 = inlined_call_operand.vmem [shape: bf16[16,8,8], index: 4, kind: input, shape index: {}]
  %s5 = inlined_call_operand.vmem [shape: f32[8,1], index: 5, kind: input, shape index: {}]
  %s6 = inlined_call_operand.vmem [shape: f32[8,1], index: 6, kind: input, shape index: {}]
  %s7 = inlined_call_operand.vmem [shape: f32[8,1], index: 7, kind: input, shape index: {}]
  %s8 = inlined_call_operand.vmem [shape: f32[8,128], index: 8, kind: output, shape index: {0}]
  %s9 = inlined_call_operand.vmem [shape: f32[4,8,128], index: 9, kind: output, shape index: {1}]
  %10 = xla_tuple %s8, %s9
  %s11 = sld [smem:[#allocation0]]
  $region50: #{db_downsample_forward.3} parent=0
    _
  %s13 = ssub.s32 1, %s11
  %s14 = scalar_select 0, %s13, %s11
  // Predicated region
  $region2: #{db_downsample_forward.3} parent=0 // pred_check
    _
  $region3: #{db_downsample_forward.3} parent=0 // pred_check_branch
    %16 = sbr.rel (0) target = $region5
  $region4: #{db_downsample_forward.3} parent=0 // pred_region
    _
  $region5: #{db_downsample_forward.3} parent=0 // pred_fallthru
    _
  // Predicated region
  $region6: #{db_downsample_forward.3} parent=0 // pred_check
    _
  $region7: #{db_downsample_forward.3} parent=0 // pred_check_branch
    %18 = sbr.rel (0) target = $region9
  $region8: #{db_downsample_forward.3} parent=0 // pred_region
    _
  $region9: #{db_downsample_forward.3} parent=0 // pred_fallthru
    _
  // Predicated region
  $region10: #{db_downsample_forward.3} parent=0 // pred_check
    _
  $region11: #{db_downsample_forward.3} parent=0 // pred_check_branch
    %20 = sbr.rel (0) target = $region13
  $region12: #{db_downsample_forward.3} parent=0 // pred_region
    _
  $region13: #{db_downsample_forward.3} parent=0 // pred_fallthru
    _
  // Predicated region
  $region14: #{db_downsample_forward.3} parent=0 // pred_check
    _
  $region15: #{db_downsample_forward.3} parent=0 // pred_check_branch
    %22 = sbr.rel (0) target = $region17
  $region16: #{db_downsample_forward.3} parent=0 // pred_region
    _
  $region17: #{db_downsample_forward.3} parent=0 // pred_fallthru
    _
  // Predicated region
  $region18: #{db_downsample_forward.3} parent=0 // pred_check
    _
  $region19: #{db_downsample_forward.3} parent=0 // pred_check_branch
    %24 = sbr.rel (0) target = $region21
  $region20: #{db_downsample_forward.3} parent=0 // pred_region
    _
  $region21: #{db_downsample_forward.3} parent=0 // pred_fallthru
    _
  // Predicated region
  $region22: #{db_downsample_forward.3} parent=0 // pred_check
    _
  $region23: #{db_downsample_forward.3} parent=0 // pred_check_branch
    %26 = sbr.rel (0) target = $region25
  $region24: #{db_downsample_forward.3} parent=0 // pred_region
    _
  $region25: #{db_downsample_forward.3} parent=0 // pred_fallthru
    _
  // Predicated region
  $region26: #{db_downsample_forward.3} parent=0 // pred_check
    _
  $region27: #{db_downsample_forward.3} parent=0 // pred_check_branch
    %28 = sbr.rel (0) target = $region29
  $region28: #{db_downsample_forward.3} parent=0 // pred_region
    _
  $region29: #{db_downsample_forward.3} parent=0 // pred_fallthru
    _
  // Predicated region
  $region30: #{db_downsample_forward.3} parent=0 // pred_check
    _
  $region31: #{db_downsample_forward.3} parent=0 // pred_check_branch
    %30 = sbr.rel (0) target = $region33
  $region32: #{db_downsample_forward.3} parent=0 // pred_region
    _
  $region33: #{db_downsample_forward.3} parent=0 // pred_fallthru
    _
  %v32 = vld [vmem:[%s2] sm:$0xf]
  %v33 = vld [vmem:[%s3] sm:$0xff]
  %v34 = vld [vmem:[%s0] sm:$0x3]
  %36 = vset.pattern.permute.xlu0 0
  %37 = vperm.xlu0 %36, %v33
  %v38 = vpop.permute.xlu0 %37
  %vm40 = vcmask 31744
  %v42 = vsel %vm40, %v32, 0
  %vm44 = vcmask 1041408
  %v46 = vsel %vm44, %v34, 0
  %48 = vmatprep.subr.bf16.mxu0 0
  %49 = vmatpush1.bf16.msra.mxu0 0
  %50 = vmatprep.subr.bf16.mxu0 0
  %51 = vmatpush1.bf16.msra.mxu0 0
  %52 = vmatprep.subr.bf16.mxu0 0
  %53 = vmatpush1.bf16.msra.mxu0 0
  %54 = vmatprep.subr.bf16.mxu0 0
  %55 = vmatpush1.bf16.msra.mxu0 0
  %56 = vmatprep.subr.bf16.mxu0 0
  %57 = vmatpush1.bf16.msra.mxu0 0
  %58 = vmatprep.subr.bf16.mxu0 0
  %59 = vmatpush1.bf16.msra.mxu0 0
  %60 = vmatprep.subr.bf16.mxu0 0
  %61 = vmatpush1.bf16.msra.mxu0 0
  %62 = vmatprep.subr.bf16.mxu0 0
  %63 = vmatpush1.bf16.msra.mxu0 %v46
  %64 = vmatprep.subr.bf16.mxu0 0
  %65 = vmatpush2.bf16.msra.mxu0 0
  %66 = vmatprep.subr.bf16.mxu0 0
  %67 = vmatpush2.bf16.msra.mxu0 0
  %68 = vmatprep.subr.bf16.mxu0 0
  %69 = vmatpush2.bf16.msra.mxu0 0
  %70 = vmatprep.subr.bf16.mxu0 0
  %71 = vmatpush2.bf16.msra.mxu0 0
  %72 = vmatprep.subr.bf16.mxu0 0
  %73 = vmatpush2.bf16.msra.mxu0 0
  %74 = vmatprep.subr.bf16.mxu0 0
  %75 = vmatpush2.bf16.msra.mxu0 0
  %76 = vmatprep.subr.bf16.mxu0 0
  %77 = vmatpush2.bf16.msra.mxu0 0
  %78 = vmatprep.subr.bf16.mxu0 0
  %79 = vmatpush2.bf16.msra.mxu0 0
  %80 = vmatprep.mubr.bf16.mxu0 0
  %81 = vmatmul.mubr.bf16.gmra.mxu0 %v42
  %v82 = vpop.f32.mrf.mxu0
  %v83 = vadd.f32 %v38, %v82
  %v84 = vpop.f32.mrf.mxu0
  %v85 = vpop.f32.mrf.mxu0
  %v86 = vpop.f32.mrf.mxu0
  %87 = vdwg.mxu0
  %v88 = vmax.f32 %v83, 0.0
  %v89 = vld [vmem:[%s4] sm:$0xf]
  %v90 = vld [vmem:[%s1] sm:$0x1]
  %v92 = vlaneseq
  %v93 = vshrl.u32 %v92, 7
  %v94 = vsub.s32 0, %v93
  %v95 = vrot.slane %v90, %v94
  %v97 = vmul.f32 %v88, %v95
  %v98 = vpack.c.bf16 %v97, %v97
  %s99 = scalar_lea.vmem %s0, 2
  %v100 = vld [vmem:[%s99] sm:$0x3]
  %v102 = vsel %vm44, %v100, 0
  %104 = vmatprep.subr.bf16.mxu0 0
  %105 = vmatpush1.bf16.msra.mxu0 0
  %106 = vmatprep.subr.bf16.mxu0 0
  %107 = vmatpush1.bf16.msra.mxu0 0
  %108 = vmatprep.subr.bf16.mxu0 0
  %109 = vmatpush1.bf16.msra.mxu0 0
  %110 = vmatprep.subr.bf16.mxu0 0
  %111 = vmatpush1.bf16.msra.mxu0 0
  %112 = vmatprep.subr.bf16.mxu0 0
  %113 = vmatpush1.bf16.msra.mxu0 0
  %114 = vmatprep.subr.bf16.mxu0 0
  %115 = vmatpush1.bf16.msra.mxu0 0
  %116 = vmatprep.subr.bf16.mxu0 0
  %117 = vmatpush1.bf16.msra.mxu0 0
  %118 = vmatprep.subr.bf16.mxu0 0
  %119 = vmatpush1.bf16.msra.mxu0 %v102
  %120 = vmatprep.subr.bf16.mxu0 0
  %121 = vmatpush2.bf16.msra.mxu0 0
  %122 = vmatprep.subr.bf16.mxu0 0
  %123 = vmatpush2.bf16.msra.mxu0 0
  %124 = vmatprep.subr.bf16.mxu0 0
  %125 = vmatpush2.bf16.msra.mxu0 0
  %126 = vmatprep.subr.bf16.mxu0 0
  %127 = vmatpush2.bf16.msra.mxu0 0
  %128 = vmatprep.subr.bf16.mxu0 0
  %129 = vmatpush2.bf16.msra.mxu0 0
  %130 = vmatprep.subr.bf16.mxu0 0
  %131 = vmatpush2.bf16.msra.mxu0 0
  %132 = vmatprep.subr.bf16.mxu0 0
  %133 = vmatpush2.bf16.msra.mxu0 0
  %134 = vmatprep.subr.bf16.mxu0 0
  %135 = vmatpush2.bf16.msra.mxu0 0
  %136 = vmatprep.mubr.bf16.mxu0 0
  %137 = vmatmul.mubr.bf16.gmra.mxu0 %v42
  %v138 = vpop.f32.mrf.mxu0
  %v139 = vadd.f32 %v38, %v138
  %v140 = vpop.f32.mrf.mxu0
  %v141 = vpop.f32.mrf.mxu0
  %v142 = vpop.f32.mrf.mxu0
  %143 = vdwg.mxu0
  %v144 = vmax.f32 %v139, 0.0
  %s145 = scalar_lea.vmem %s4, 4
  %v146 = vld [vmem:[%s145] sm:$0xf]
  %s147 = scalar_lea.vmem %s1, 1
  %v148 = vld [vmem:[%s147] sm:$0x1]
  %v150 = vlaneseq
  %v151 = vshrl.u32 %v150, 7
  %v152 = vsub.s32 0, %v151
  %v153 = vrot.slane %v148, %v152
  %v155 = vmul.f32 %v144, %v153
  %v156 = vpack.c.bf16 %v155, %v155
  %vm157 = vcmask 64512
  %v159 = vsel %vm157, %v146, 0
  %vm161 = vcmask 1043456
  %v163 = vsel %vm161, %v156, 0
  %165 = vmatprep.subr.bf16.mxu0 0
  %166 = vmatpush1.bf16.msra.mxu0 0
  %167 = vmatprep.subr.bf16.mxu0 0
  %168 = vmatpush1.bf16.msra.mxu0 0
  %169 = vmatprep.subr.bf16.mxu0 0
  %170 = vmatpush1.bf16.msra.mxu0 0
  %171 = vmatprep.subr.bf16.mxu0 0
  %172 = vmatpush1.bf16.msra.mxu0 0
  %173 = vmatprep.subr.bf16.mxu0 0
  %174 = vmatpush1.bf16.msra.mxu0 0
  %175 = vmatprep.subr.bf16.mxu0 0
  %176 = vmatpush1.bf16.msra.mxu0 0
  %177 = vmatprep.subr.bf16.mxu0 0
  %178 = vmatpush1.bf16.msra.mxu0 0
  %179 = vmatprep.subr.bf16.mxu0 0
  %180 = vmatpush1.bf16.msra.mxu0 %v163
  %181 = vmatprep.subr.bf16.mxu0 0
  %182 = vmatpush2.bf16.msra.mxu0 0
  %183 = vmatprep.subr.bf16.mxu0 0
  %184 = vmatpush2.bf16.msra.mxu0 0
  %185 = vmatprep.subr.bf16.mxu0 0
  %186 = vmatpush2.bf16.msra.mxu0 0
  %187 = vmatprep.subr.bf16.mxu0 0
  %188 = vmatpush2.bf16.msra.mxu0 0
  %189 = vmatprep.subr.bf16.mxu0 0
  %190 = vmatpush2.bf16.msra.mxu0 0
  %191 = vmatprep.subr.bf16.mxu0 0
  %192 = vmatpush2.bf16.msra.mxu0 0
  %193 = vmatprep.subr.bf16.mxu0 0
  %194 = vmatpush2.bf16.msra.mxu0 0
  %195 = vmatprep.subr.bf16.mxu0 0
  %196 = vmatpush2.bf16.msra.mxu0 0
  %197 = vmatprep.mubr.bf16.mxu0 0
  %198 = vmatmul.mubr.bf16.gmra.mxu0 %v159
  %v199 = vpop.f32.mrf.mxu0
  %v200 = vadd.f32 0.0, %v199
  %v201 = vpop.f32.mrf.mxu0
  %v202 = vpop.f32.mrf.mxu0
  %v203 = vpop.f32.mrf.mxu0
  %204 = vdwg.mxu0
  %v206 = vsel %vm157, %v89, 0
  %v209 = vsel %vm161, %v98, 0
  %211 = vmatprep.subr.bf16.mxu0 0
  %212 = vmatpush1.bf16.msra.mxu0 0
  %213 = vmatprep.subr.bf16.mxu0 0
  %214 = vmatpush1.bf16.msra.mxu0 0
  %215 = vmatprep.subr.bf16.mxu0 0
  %216 = vmatpush1.bf16.msra.mxu0 0
  %217 = vmatprep.subr.bf16.mxu0 0
  %218 = vmatpush1.bf16.msra.mxu0 0
  %219 = vmatprep.subr.bf16.mxu0 0
  %220 = vmatpush1.bf16.msra.mxu0 0
  %221 = vmatprep.subr.bf16.mxu0 0
  %222 = vmatpush1.bf16.msra.mxu0 0
  %223 = vmatprep.subr.bf16.mxu0 0
  %224 = vmatpush1.bf16.msra.mxu0 0
  %225 = vmatprep.subr.bf16.mxu0 0
  %226 = vmatpush1.bf16.msra.mxu0 %v209
  %227 = vmatprep.subr.bf16.mxu0 0
  %228 = vmatpush2.bf16.msra.mxu0 0
  %229 = vmatprep.subr.bf16.mxu0 0
  %230 = vmatpush2.bf16.msra.mxu0 0
  %231 = vmatprep.subr.bf16.mxu0 0
  %232 = vmatpush2.bf16.msra.mxu0 0
  %233 = vmatprep.subr.bf16.mxu0 0
  %234 = vmatpush2.bf16.msra.mxu0 0
  %235 = vmatprep.subr.bf16.mxu0 0
  %236 = vmatpush2.bf16.msra.mxu0 0
  %237 = vmatprep.subr.bf16.mxu0 0
  %238 = vmatpush2.bf16.msra.mxu0 0
  %239 = vmatprep.subr.bf16.mxu0 0
  %240 = vmatpush2.bf16.msra.mxu0 0
  %241 = vmatprep.subr.bf16.mxu0 0
  %242 = vmatpush2.bf16.msra.mxu0 0
  %243 = vmatprep.mubr.bf16.mxu0 0
  %244 = vmatmul.mubr.bf16.gmra.mxu0 %v206
  %v245 = vpop.f32.mrf.mxu0
  %v246 = vadd.f32 %v200, %v245
  %v247 = vpop.f32.mrf.mxu0
  %v248 = vpop.f32.mrf.mxu0
  %v249 = vpop.f32.mrf.mxu0
  %250 = vdwg.mxu0
  %s251 = scalar_lea.vmem %s0, 4
  %v252 = vld [vmem:[%s251] sm:$0x3]
  %v254 = vsel %vm44, %v252, 0
  %256 = vmatprep.subr.bf16.mxu0 0
  %257 = vmatpush1.bf16.msra.mxu0 0
  %258 = vmatprep.subr.bf16.mxu0 0
  %259 = vmatpush1.bf16.msra.mxu0 0
  %260 = vmatprep.subr.bf16.mxu0 0
  %261 = vmatpush1.bf16.msra.mxu0 0
  %262 = vmatprep.subr.bf16.mxu0 0
  %263 = vmatpush1.bf16.msra.mxu0 0
  %264 = vmatprep.subr.bf16.mxu0 0
  %265 = vmatpush1.bf16.msra.mxu0 0
  %266 = vmatprep.subr.bf16.mxu0 0
  %267 = vmatpush1.bf16.msra.mxu0 0
  %268 = vmatprep.subr.bf16.mxu0 0
  %269 = vmatpush1.bf16.msra.mxu0 0
  %270 = vmatprep.subr.bf16.mxu0 0
  %271 = vmatpush1.bf16.msra.mxu0 %v254
  %272 = vmatprep.subr.bf16.mxu0 0
  %273 = vmatpush2.bf16.msra.mxu0 0
  %274 = vmatprep.subr.bf16.mxu0 0
  %275 = vmatpush2.bf16.msra.mxu0 0
  %276 = vmatprep.subr.bf16.mxu0 0
  %277 = vmatpush2.bf16.msra.mxu0 0
  %278 = vmatprep.subr.bf16.mxu0 0
  %279 = vmatpush2.bf16.msra.mxu0 0
  %280 = vmatprep.subr.bf16.mxu0 0
  %281 = vmatpush2.bf16.msra.mxu0 0
  %282 = vmatprep.subr.bf16.mxu0 0
  %283 = vmatpush2.bf16.msra.mxu0 0
  %284 = vmatprep.subr.bf16.mxu0 0
  %285 = vmatpush2.bf16.msra.mxu0 0
  %286 = vmatprep.subr.bf16.mxu0 0
  %287 = vmatpush2.bf16.msra.mxu0 0
  %288 = vmatprep.mubr.bf16.mxu0 0
  %289 = vmatmul.mubr.bf16.gmra.mxu0 %v42
  %v290 = vpop.f32.mrf.mxu0
  %v291 = vadd.f32 %v38, %v290
  %v292 = vpop.f32.mrf.mxu0
  %v293 = vpop.f32.mrf.mxu0
  %v294 = vpop.f32.mrf.mxu0
  %295 = vdwg.mxu0
  %v296 = vmax.f32 %v291, 0.0
  %s297 = scalar_lea.vmem %s4, 8
  %v298 = vld [vmem:[%s297] sm:$0xf]
  %s299 = scalar_lea.vmem %s1, 2
  %v300 = vld [vmem:[%s299] sm:$0x1]
  %v302 = vlaneseq
  %v303 = vshrl.u32 %v302, 7
  %v304 = vsub.s32 0, %v303
  %v305 = vrot.slane %v300, %v304
  %v307 = vmul.f32 %v296, %v305
  %v308 = vpack.c.bf16 %v307, %v307
  %v310 = vsel %vm157, %v298, 0
  %v313 = vsel %vm161, %v308, 0
  %315 = vmatprep.subr.bf16.mxu0 0
  %316 = vmatpush1.bf16.msra.mxu0 0
  %317 = vmatprep.subr.bf16.mxu0 0
  %318 = vmatpush1.bf16.msra.mxu0 0
  %319 = vmatprep.subr.bf16.mxu0 0
  %320 = vmatpush1.bf16.msra.mxu0 0
  %321 = vmatprep.subr.bf16.mxu0 0
  %322 = vmatpush1.bf16.msra.mxu0 0
  %323 = vmatprep.subr.bf16.mxu0 0
  %324 = vmatpush1.bf16.msra.mxu0 0
  %325 = vmatprep.subr.bf16.mxu0 0
  %326 = vmatpush1.bf16.msra.mxu0 0
  %327 = vmatprep.subr.bf16.mxu0 0
  %328 = vmatpush1.bf16.msra.mxu0 0
  %329 = vmatprep.subr.bf16.mxu0 0
  %330 = vmatpush1.bf16.msra.mxu0 %v313
  %331 = vmatprep.subr.bf16.mxu0 0
  %332 = vmatpush2.bf16.msra.mxu0 0
  %333 = vmatprep.subr.bf16.mxu0 0
  %334 = vmatpush2.bf16.msra.mxu0 0
  %335 = vmatprep.subr.bf16.mxu0 0
  %336 = vmatpush2.bf16.msra.mxu0 0
  %337 = vmatprep.subr.bf16.mxu0 0
  %338 = vmatpush2.bf16.msra.mxu0 0
  %339 = vmatprep.subr.bf16.mxu0 0
  %340 = vmatpush2.bf16.msra.mxu0 0
  %341 = vmatprep.subr.bf16.mxu0 0
  %342 = vmatpush2.bf16.msra.mxu0 0
  %343 = vmatprep.subr.bf16.mxu0 0
  %344 = vmatpush2.bf16.msra.mxu0 0
  %345 = vmatprep.subr.bf16.mxu0 0
  %346 = vmatpush2.bf16.msra.mxu0 0
  %347 = vmatprep.mubr.bf16.mxu0 0
  %348 = vmatmul.mubr.bf16.gmra.mxu0 %v310
  %v349 = vpop.f32.mrf.mxu0
  %v350 = vadd.f32 0.0, %v349
  %v351 = vpop.f32.mrf.mxu0
  %v352 = vpop.f32.mrf.mxu0
  %v353 = vpop.f32.mrf.mxu0
  %354 = vdwg.mxu0
  %v355 = vadd.f32 %v246, %v350
  %s356 = scalar_lea.vmem %s0, 6
  %v357 = vld [vmem:[%s356] sm:$0x3]
  %v359 = vsel %vm44, %v357, 0
  %361 = vmatprep.subr.bf16.mxu0 0
  %362 = vmatpush1.bf16.msra.mxu0 0
  %363 = vmatprep.subr.bf16.mxu0 0
  %364 = vmatpush1.bf16.msra.mxu0 0
  %365 = vmatprep.subr.bf16.mxu0 0
  %366 = vmatpush1.bf16.msra.mxu0 0
  %367 = vmatprep.subr.bf16.mxu0 0
  %368 = vmatpush1.bf16.msra.mxu0 0
  %369 = vmatprep.subr.bf16.mxu0 0
  %370 = vmatpush1.bf16.msra.mxu0 0
  %371 = vmatprep.subr.bf16.mxu0 0
  %372 = vmatpush1.bf16.msra.mxu0 0
  %373 = vmatprep.subr.bf16.mxu0 0
  %374 = vmatpush1.bf16.msra.mxu0 0
  %375 = vmatprep.subr.bf16.mxu0 0
  %376 = vmatpush1.bf16.msra.mxu0 %v359
  %377 = vmatprep.subr.bf16.mxu0 0
  %378 = vmatpush2.bf16.msra.mxu0 0
  %379 = vmatprep.subr.bf16.mxu0 0
  %380 = vmatpush2.bf16.msra.mxu0 0
  %381 = vmatprep.subr.bf16.mxu0 0
  %382 = vmatpush2.bf16.msra.mxu0 0
  %383 = vmatprep.subr.bf16.mxu0 0
  %384 = vmatpush2.bf16.msra.mxu0 0
  %385 = vmatprep.subr.bf16.mxu0 0
  %386 = vmatpush2.bf16.msra.mxu0 0
  %387 = vmatprep.subr.bf16.mxu0 0
  %388 = vmatpush2.bf16.msra.mxu0 0
  %389 = vmatprep.subr.bf16.mxu0 0
  %390 = vmatpush2.bf16.msra.mxu0 0
  %391 = vmatprep.subr.bf16.mxu0 0
  %392 = vmatpush2.bf16.msra.mxu0 0
  %393 = vmatprep.mubr.bf16.mxu0 0
  %394 = vmatmul.mubr.bf16.gmra.mxu0 %v42
  %v395 = vpop.f32.mrf.mxu0
  %v396 = vadd.f32 %v38, %v395
  %v397 = vpop.f32.mrf.mxu0
  %v398 = vpop.f32.mrf.mxu0
  %v399 = vpop.f32.mrf.mxu0
  %400 = vdwg.mxu0
  %v401 = vmax.f32 %v396, 0.0
  %s402 = scalar_lea.vmem %s4, 12
  %v403 = vld [vmem:[%s402] sm:$0xf]
  %s404 = scalar_lea.vmem %s1, 3
  %v405 = vld [vmem:[%s404] sm:$0x1]
  %v407 = vlaneseq
  %v408 = vshrl.u32 %v407, 7
  %v409 = vsub.s32 0, %v408
  %v410 = vrot.slane %v405, %v409
  %v412 = vmul.f32 %v401, %v410
  %v413 = vpack.c.bf16 %v412, %v412
  %v415 = vsel %vm157, %v403, 0
  %v418 = vsel %vm161, %v413, 0
  %420 = vmatprep.subr.bf16.mxu0 0
  %421 = vmatpush1.bf16.msra.mxu0 0
  %422 = vmatprep.subr.bf16.mxu0 0
  %423 = vmatpush1.bf16.msra.mxu0 0
  %424 = vmatprep.subr.bf16.mxu0 0
  %425 = vmatpush1.bf16.msra.mxu0 0
  %426 = vmatprep.subr.bf16.mxu0 0
  %427 = vmatpush1.bf16.msra.mxu0 0
  %428 = vmatprep.subr.bf16.mxu0 0
  %429 = vmatpush1.bf16.msra.mxu0 0
  %430 = vmatprep.subr.bf16.mxu0 0
  %431 = vmatpush1.bf16.msra.mxu0 0
  %432 = vmatprep.subr.bf16.mxu0 0
  %433 = vmatpush1.bf16.msra.mxu0 0
  %434 = vmatprep.subr.bf16.mxu0 0
  %435 = vmatpush1.bf16.msra.mxu0 %v418
  %436 = vmatprep.subr.bf16.mxu0 0
  %437 = vmatpush2.bf16.msra.mxu0 0
  %438 = vmatprep.subr.bf16.mxu0 0
  %439 = vmatpush2.bf16.msra.mxu0 0
  %440 = vmatprep.subr.bf16.mxu0 0
  %441 = vmatpush2.bf16.msra.mxu0 0
  %442 = vmatprep.subr.bf16.mxu0 0
  %443 = vmatpush2.bf16.msra.mxu0 0
  %444 = vmatprep.subr.bf16.mxu0 0
  %445 = vmatpush2.bf16.msra.mxu0 0
  %446 = vmatprep.subr.bf16.mxu0 0
  %447 = vmatpush2.bf16.msra.mxu0 0
  %448 = vmatprep.subr.bf16.mxu0 0
  %449 = vmatpush2.bf16.msra.mxu0 0
  %450 = vmatprep.subr.bf16.mxu0 0
  %451 = vmatpush2.bf16.msra.mxu0 0
  %452 = vmatprep.mubr.bf16.mxu0 0
  %453 = vmatmul.mubr.bf16.gmra.mxu0 %v415
  %v454 = vpop.f32.mrf.mxu0
  %v455 = vadd.f32 0.0, %v454
  %v456 = vpop.f32.mrf.mxu0
  %v457 = vpop.f32.mrf.mxu0
  %v458 = vpop.f32.mrf.mxu0
  %459 = vdwg.mxu0
  %v460 = vadd.f32 %v355, %v455
  %s461 = scalar_lea.vmem %s0, 8
  %v462 = vld [vmem:[%s461] sm:$0x3]
  %v464 = vsel %vm44, %v462, 0
  %466 = vmatprep.subr.bf16.mxu0 0
  %467 = vmatpush1.bf16.msra.mxu0 0
  %468 = vmatprep.subr.bf16.mxu0 0
  %469 = vmatpush1.bf16.msra.mxu0 0
  %470 = vmatprep.subr.bf16.mxu0 0
  %471 = vmatpush1.bf16.msra.mxu0 0
  %472 = vmatprep.subr.bf16.mxu0 0
  %473 = vmatpush1.bf16.msra.mxu0 0
  %474 = vmatprep.subr.bf16.mxu0 0
  %475 = vmatpush1.bf16.msra.mxu0 0
  %476 = vmatprep.subr.bf16.mxu0 0
  %477 = vmatpush1.bf16.msra.mxu0 0
  %478 = vmatprep.subr.bf16.mxu0 0
  %479 = vmatpush1.bf16.msra.mxu0 0
  %480 = vmatprep.subr.bf16.mxu0 0
  %481 = vmatpush1.bf16.msra.mxu0 %v464
  %482 = vmatprep.subr.bf16.mxu0 0
  %483 = vmatpush2.bf16.msra.mxu0 0
  %484 = vmatprep.subr.bf16.mxu0 0
  %485 = vmatpush2.bf16.msra.mxu0 0
  %486 = vmatprep.subr.bf16.mxu0 0
  %487 = vmatpush2.bf16.msra.mxu0 0
  %488 = vmatprep.subr.bf16.mxu0 0
  %489 = vmatpush2.bf16.msra.mxu0 0
  %490 = vmatprep.subr.bf16.mxu0 0
  %491 = vmatpush2.bf16.msra.mxu0 0
  %492 = vmatprep.subr.bf16.mxu0 0
  %493 = vmatpush2.bf16.msra.mxu0 0
  %494 = vmatprep.subr.bf16.mxu0 0
  %495 = vmatpush2.bf16.msra.mxu0 0
  %496 = vmatprep.subr.bf16.mxu0 0
  %497 = vmatpush2.bf16.msra.mxu0 0
  %498 = vmatprep.mubr.bf16.mxu0 0
  %499 = vmatmul.mubr.bf16.gmra.mxu0 %v42
  %v500 = vpop.f32.mrf.mxu0
  %v501 = vadd.f32 %v38, %v500
  %v502 = vpop.f32.mrf.mxu0
  %v503 = vpop.f32.mrf.mxu0
  %v504 = vpop.f32.mrf.mxu0
  %505 = vdwg.mxu0
  %v506 = vmax.f32 %v501, 0.0
  %s507 = scalar_lea.vmem %s4, 16
  %v508 = vld [vmem:[%s507] sm:$0xf]
  %s509 = scalar_lea.vmem %s1, 4
  %v510 = vld [vmem:[%s509] sm:$0x1]
  %v512 = vlaneseq
  %v513 = vshrl.u32 %v512, 7
  %v514 = vsub.s32 0, %v513
  %v515 = vrot.slane %v510, %v514
  %v517 = vmul.f32 %v506, %v515
  %v518 = vpack.c.bf16 %v517, %v517
  %v520 = vsel %vm157, %v508, 0
  %v523 = vsel %vm161, %v518, 0
  %525 = vmatprep.subr.bf16.mxu0 0
  %526 = vmatpush1.bf16.msra.mxu0 0
  %527 = vmatprep.subr.bf16.mxu0 0
  %528 = vmatpush1.bf16.msra.mxu0 0
  %529 = vmatprep.subr.bf16.mxu0 0
  %530 = vmatpush1.bf16.msra.mxu0 0
  %531 = vmatprep.subr.bf16.mxu0 0
  %532 = vmatpush1.bf16.msra.mxu0 0
  %533 = vmatprep.subr.bf16.mxu0 0
  %534 = vmatpush1.bf16.msra.mxu0 0
  %535 = vmatprep.subr.bf16.mxu0 0
  %536 = vmatpush1.bf16.msra.mxu0 0
  %537 = vmatprep.subr.bf16.mxu0 0
  %538 = vmatpush1.bf16.msra.mxu0 0
  %539 = vmatprep.subr.bf16.mxu0 0
  %540 = vmatpush1.bf16.msra.mxu0 %v523
  %541 = vmatprep.subr.bf16.mxu0 0
  %542 = vmatpush2.bf16.msra.mxu0 0
  %543 = vmatprep.subr.bf16.mxu0 0
  %544 = vmatpush2.bf16.msra.mxu0 0
  %545 = vmatprep.subr.bf16.mxu0 0
  %546 = vmatpush2.bf16.msra.mxu0 0
  %547 = vmatprep.subr.bf16.mxu0 0
  %548 = vmatpush2.bf16.msra.mxu0 0
  %549 = vmatprep.subr.bf16.mxu0 0
  %550 = vmatpush2.bf16.msra.mxu0 0
  %551 = vmatprep.subr.bf16.mxu0 0
  %552 = vmatpush2.bf16.msra.mxu0 0
  %553 = vmatprep.subr.bf16.mxu0 0
  %554 = vmatpush2.bf16.msra.mxu0 0
  %555 = vmatprep.subr.bf16.mxu0 0
  %556 = vmatpush2.bf16.msra.mxu0 0
  %557 = vmatprep.mubr.bf16.mxu0 0
  %558 = vmatmul.mubr.bf16.gmra.mxu0 %v520
  %v559 = vpop.f32.mrf.mxu0
  %v560 = vadd.f32 0.0, %v559
  %v561 = vpop.f32.mrf.mxu0
  %v562 = vpop.f32.mrf.mxu0
  %v563 = vpop.f32.mrf.mxu0
  %564 = vdwg.mxu0
  %v565 = vadd.f32 %v460, %v560
  %s566 = scalar_lea.vmem %s0, 10
  %v567 = vld [vmem:[%s566] sm:$0x3]
  %v569 = vsel %vm44, %v567, 0
  %571 = vmatprep.subr.bf16.mxu0 0
  %572 = vmatpush1.bf16.msra.mxu0 0
  %573 = vmatprep.subr.bf16.mxu0 0
  %574 = vmatpush1.bf16.msra.mxu0 0
  %575 = vmatprep.subr.bf16.mxu0 0
  %576 = vmatpush1.bf16.msra.mxu0 0
  %577 = vmatprep.subr.bf16.mxu0 0
  %578 = vmatpush1.bf16.msra.mxu0 0
  %579 = vmatprep.subr.bf16.mxu0 0
  %580 = vmatpush1.bf16.msra.mxu0 0
  %581 = vmatprep.subr.bf16.mxu0 0
  %582 = vmatpush1.bf16.msra.mxu0 0
  %583 = vmatprep.subr.bf16.mxu0 0
  %584 = vmatpush1.bf16.msra.mxu0 0
  %585 = vmatprep.subr.bf16.mxu0 0
  %586 = vmatpush1.bf16.msra.mxu0 %v569
  %587 = vmatprep.subr.bf16.mxu0 0
  %588 = vmatpush2.bf16.msra.mxu0 0
  %589 = vmatprep.subr.bf16.mxu0 0
  %590 = vmatpush2.bf16.msra.mxu0 0
  %591 = vmatprep.subr.bf16.mxu0 0
  %592 = vmatpush2.bf16.msra.mxu0 0
  %593 = vmatprep.subr.bf16.mxu0 0
  %594 = vmatpush2.bf16.msra.mxu0 0
  %595 = vmatprep.subr.bf16.mxu0 0
  %596 = vmatpush2.bf16.msra.mxu0 0
  %597 = vmatprep.subr.bf16.mxu0 0
  %598 = vmatpush2.bf16.msra.mxu0 0
  %599 = vmatprep.subr.bf16.mxu0 0
  %600 = vmatpush2.bf16.msra.mxu0 0
  %601 = vmatprep.subr.bf16.mxu0 0
  %602 = vmatpush2.bf16.msra.mxu0 0
  %603 = vmatprep.mubr.bf16.mxu0 0
  %604 = vmatmul.mubr.bf16.gmra.mxu0 %v42
  %v605 = vpop.f32.mrf.mxu0
  %v606 = vadd.f32 %v38, %v605
  %v607 = vpop.f32.mrf.mxu0
  %v608 = vpop.f32.mrf.mxu0
  %v609 = vpop.f32.mrf.mxu0
  %610 = vdwg.mxu0
  %v611 = vmax.f32 %v606, 0.0
  %612 = vst [vmem:[%s9] sm:$0xff] %v611
  %s613 = scalar_lea.vmem %s4, 20
  %v614 = vld [vmem:[%s613] sm:$0xf]
  %s615 = scalar_lea.vmem %s1, 5
  %v616 = vld [vmem:[%s615] sm:$0x1]
  %v618 = vlaneseq
  %v619 = vshrl.u32 %v618, 7
  %v620 = vsub.s32 0, %v619
  %v621 = vrot.slane %v616, %v620
  %v623 = vmul.f32 %v611, %v621
  %v624 = vpack.c.bf16 %v623, %v623
  %v626 = vsel %vm157, %v614, 0
  %v629 = vsel %vm161, %v624, 0
  %631 = vmatprep.subr.bf16.mxu0 0
  %632 = vmatpush1.bf16.msra.mxu0 0
  %633 = vmatprep.subr.bf16.mxu0 0
  %634 = vmatpush1.bf16.msra.mxu0 0
  %635 = vmatprep.subr.bf16.mxu0 0
  %636 = vmatpush1.bf16.msra.mxu0 0
  %637 = vmatprep.subr.bf16.mxu0 0
  %638 = vmatpush1.bf16.msra.mxu0 0
  %639 = vmatprep.subr.bf16.mxu0 0
  %640 = vmatpush1.bf16.msra.mxu0 0
  %641 = vmatprep.subr.bf16.mxu0 0
  %642 = vmatpush1.bf16.msra.mxu0 0
  %643 = vmatprep.subr.bf16.mxu0 0
  %644 = vmatpush1.bf16.msra.mxu0 0
  %645 = vmatprep.subr.bf16.mxu0 0
  %646 = vmatpush1.bf16.msra.mxu0 %v629
  %647 = vmatprep.subr.bf16.mxu0 0
  %648 = vmatpush2.bf16.msra.mxu0 0
  %649 = vmatprep.subr.bf16.mxu0 0
  %650 = vmatpush2.bf16.msra.mxu0 0
  %651 = vmatprep.subr.bf16.mxu0 0
  %652 = vmatpush2.bf16.msra.mxu0 0
  %653 = vmatprep.subr.bf16.mxu0 0
  %654 = vmatpush2.bf16.msra.mxu0 0
  %655 = vmatprep.subr.bf16.mxu0 0
  %656 = vmatpush2.bf16.msra.mxu0 0
  %657 = vmatprep.subr.bf16.mxu0 0
  %658 = vmatpush2.bf16.msra.mxu0 0
  %659 = vmatprep.subr.bf16.mxu0 0
  %660 = vmatpush2.bf16.msra.mxu0 0
  %661 = vmatprep.subr.bf16.mxu0 0
  %662 = vmatpush2.bf16.msra.mxu0 0
  %663 = vmatprep.mubr.bf16.mxu0 0
  %664 = vmatmul.mubr.bf16.gmra.mxu0 %v626
  %v665 = vpop.f32.mrf.mxu0
  %v666 = vadd.f32 0.0, %v665
  %v667 = vpop.f32.mrf.mxu0
  %v668 = vpop.f32.mrf.mxu0
  %v669 = vpop.f32.mrf.mxu0
  %670 = vdwg.mxu0
  %v671 = vadd.f32 %v565, %v666
  %s672 = scalar_lea.vmem %s0, 12
  %v673 = vld [vmem:[%s672] sm:$0x3]
  %v675 = vsel %vm44, %v673, 0
  %677 = vmatprep.subr.bf16.mxu0 0
  %678 = vmatpush1.bf16.msra.mxu0 0
  %679 = vmatprep.subr.bf16.mxu0 0
  %680 = vmatpush1.bf16.msra.mxu0 0
  %681 = vmatprep.subr.bf16.mxu0 0
  %682 = vmatpush1.bf16.msra.mxu0 0
  %683 = vmatprep.subr.bf16.mxu0 0
  %684 = vmatpush1.bf16.msra.mxu0 0
  %685 = vmatprep.subr.bf16.mxu0 0
  %686 = vmatpush1.bf16.msra.mxu0 0
  %687 = vmatprep.subr.bf16.mxu0 0
  %688 = vmatpush1.bf16.msra.mxu0 0
  %689 = vmatprep.subr.bf16.mxu0 0
  %690 = vmatpush1.bf16.msra.mxu0 0
  %691 = vmatprep.subr.bf16.mxu0 0
  %692 = vmatpush1.bf16.msra.mxu0 %v675
  %693 = vmatprep.subr.bf16.mxu0 0
  %694 = vmatpush2.bf16.msra.mxu0 0
  %695 = vmatprep.subr.bf16.mxu0 0
  %696 = vmatpush2.bf16.msra.mxu0 0
  %697 = vmatprep.subr.bf16.mxu0 0
  %698 = vmatpush2.bf16.msra.mxu0 0
  %699 = vmatprep.subr.bf16.mxu0 0
  %700 = vmatpush2.bf16.msra.mxu0 0
  %701 = vmatprep.subr.bf16.mxu0 0
  %702 = vmatpush2.bf16.msra.mxu0 0
  %703 = vmatprep.subr.bf16.mxu0 0
  %704 = vmatpush2.bf16.msra.mxu0 0
  %705 = vmatprep.subr.bf16.mxu0 0
  %706 = vmatpush2.bf16.msra.mxu0 0
  %707 = vmatprep.subr.bf16.mxu0 0
  %708 = vmatpush2.bf16.msra.mxu0 0
  %709 = vmatprep.mubr.bf16.mxu0 0
  %710 = vmatmul.mubr.bf16.gmra.mxu0 %v42
  %v711 = vpop.f32.mrf.mxu0
  %v712 = vadd.f32 %v38, %v711
  %v713 = vpop.f32.mrf.mxu0
  %v714 = vpop.f32.mrf.mxu0
  %v715 = vpop.f32.mrf.mxu0
  %716 = vdwg.mxu0
  %v717 = vmax.f32 %v712, 0.0
  %s718 = scalar_lea.vmem %s9, 8
  %719 = vst [vmem:[%s718] sm:$0xff] %v717
  %s720 = scalar_lea.vmem %s4, 24
  %v721 = vld [vmem:[%s720] sm:$0xf]
  %s722 = scalar_lea.vmem %s1, 6
  %v723 = vld [vmem:[%s722] sm:$0x1]
  %v725 = vlaneseq
  %v726 = vshrl.u32 %v725, 7
  %v727 = vsub.s32 0, %v726
  %v728 = vrot.slane %v723, %v727
  %v730 = vmul.f32 %v717, %v728
  %v731 = vpack.c.bf16 %v730, %v730
  %v733 = vsel %vm157, %v721, 0
  %v736 = vsel %vm161, %v731, 0
  %738 = vmatprep.subr.bf16.mxu0 0
  %739 = vmatpush1.bf16.msra.mxu0 0
  %740 = vmatprep.subr.bf16.mxu0 0
  %741 = vmatpush1.bf16.msra.mxu0 0
  %742 = vmatprep.subr.bf16.mxu0 0
  %743 = vmatpush1.bf16.msra.mxu0 0
  %744 = vmatprep.subr.bf16.mxu0 0
  %745 = vmatpush1.bf16.msra.mxu0 0
  %746 = vmatprep.subr.bf16.mxu0 0
  %747 = vmatpush1.bf16.msra.mxu0 0
  %748 = vmatprep.subr.bf16.mxu0 0
  %749 = vmatpush1.bf16.msra.mxu0 0
  %750 = vmatprep.subr.bf16.mxu0 0
  %751 = vmatpush1.bf16.msra.mxu0 0
  %752 = vmatprep.subr.bf16.mxu0 0
  %753 = vmatpush1.bf16.msra.mxu0 %v736
  %754 = vmatprep.subr.bf16.mxu0 0
  %755 = vmatpush2.bf16.msra.mxu0 0
  %756 = vmatprep.subr.bf16.mxu0 0
  %757 = vmatpush2.bf16.msra.mxu0 0
  %758 = vmatprep.subr.bf16.mxu0 0
  %759 = vmatpush2.bf16.msra.mxu0 0
  %760 = vmatprep.subr.bf16.mxu0 0
  %761 = vmatpush2.bf16.msra.mxu0 0
  %762 = vmatprep.subr.bf16.mxu0 0
  %763 = vmatpush2.bf16.msra.mxu0 0
  %764 = vmatprep.subr.bf16.mxu0 0
  %765 = vmatpush2.bf16.msra.mxu0 0
  %766 = vmatprep.subr.bf16.mxu0 0
  %767 = vmatpush2.bf16.msra.mxu0 0
  %768 = vmatprep.subr.bf16.mxu0 0
  %769 = vmatpush2.bf16.msra.mxu0 0
  %770 = vmatprep.mubr.bf16.mxu0 0
  %771 = vmatmul.mubr.bf16.gmra.mxu0 %v733
  %v772 = vpop.f32.mrf.mxu0
  %v773 = vadd.f32 0.0, %v772
  %v774 = vpop.f32.mrf.mxu0
  %v775 = vpop.f32.mrf.mxu0
  %v776 = vpop.f32.mrf.mxu0
  %777 = vdwg.mxu0
  %v778 = vadd.f32 %v671, %v773
  %s779 = scalar_lea.vmem %s0, 14
  %v780 = vld [vmem:[%s779] sm:$0x3]
  %v782 = vsel %vm44, %v780, 0
  %784 = vmatprep.subr.bf16.mxu0 0
  %785 = vmatpush1.bf16.msra.mxu0 0
  %786 = vmatprep.subr.bf16.mxu0 0
  %787 = vmatpush1.bf16.msra.mxu0 0
  %788 = vmatprep.subr.bf16.mxu0 0
  %789 = vmatpush1.bf16.msra.mxu0 0
  %790 = vmatprep.subr.bf16.mxu0 0
  %791 = vmatpush1.bf16.msra.mxu0 0
  %792 = vmatprep.subr.bf16.mxu0 0
  %793 = vmatpush1.bf16.msra.mxu0 0
  %794 = vmatprep.subr.bf16.mxu0 0
  %795 = vmatpush1.bf16.msra.mxu0 0
  %796 = vmatprep.subr.bf16.mxu0 0
  %797 = vmatpush1.bf16.msra.mxu0 0
  %798 = vmatprep.subr.bf16.mxu0 0
  %799 = vmatpush1.bf16.msra.mxu0 %v782
  %800 = vmatprep.subr.bf16.mxu0 0
  %801 = vmatpush2.bf16.msra.mxu0 0
  %802 = vmatprep.subr.bf16.mxu0 0
  %803 = vmatpush2.bf16.msra.mxu0 0
  %804 = vmatprep.subr.bf16.mxu0 0
  %805 = vmatpush2.bf16.msra.mxu0 0
  %806 = vmatprep.subr.bf16.mxu0 0
  %807 = vmatpush2.bf16.msra.mxu0 0
  %808 = vmatprep.subr.bf16.mxu0 0
  %809 = vmatpush2.bf16.msra.mxu0 0
  %810 = vmatprep.subr.bf16.mxu0 0
  %811 = vmatpush2.bf16.msra.mxu0 0
  %812 = vmatprep.subr.bf16.mxu0 0
  %813 = vmatpush2.bf16.msra.mxu0 0
  %814 = vmatprep.subr.bf16.mxu0 0
  %815 = vmatpush2.bf16.msra.mxu0 0
  %816 = vmatprep.mubr.bf16.mxu0 0
  %817 = vmatmul.mubr.bf16.gmra.mxu0 %v42
  %v818 = vpop.f32.mrf.mxu0
  %v819 = vadd.f32 %v38, %v818
  %v820 = vpop.f32.mrf.mxu0
  %v821 = vpop.f32.mrf.mxu0
  %v822 = vpop.f32.mrf.mxu0
  %823 = vdwg.mxu0
  %v824 = vmax.f32 %v819, 0.0
  %s825 = scalar_lea.vmem %s4, 28
  %v826 = vld [vmem:[%s825] sm:$0xf]
  %s827 = scalar_lea.vmem %s1, 7
  %v828 = vld [vmem:[%s827] sm:$0x1]
  %v830 = vlaneseq
  %v831 = vshrl.u32 %v830, 7
  %v832 = vsub.s32 0, %v831
  %v833 = vrot.slane %v828, %v832
  %v835 = vmul.f32 %v824, %v833
  %v836 = vpack.c.bf16 %v835, %v835
  %v838 = vsel %vm157, %v826, 0
  %v841 = vsel %vm161, %v836, 0
  %843 = vmatprep.subr.bf16.mxu0 0
  %844 = vmatpush1.bf16.msra.mxu0 0
  %845 = vmatprep.subr.bf16.mxu0 0
  %846 = vmatpush1.bf16.msra.mxu0 0
  %847 = vmatprep.subr.bf16.mxu0 0
  %848 = vmatpush1.bf16.msra.mxu0 0
  %849 = vmatprep.subr.bf16.mxu0 0
  %850 = vmatpush1.bf16.msra.mxu0 0
  %851 = vmatprep.subr.bf16.mxu0 0
  %852 = vmatpush1.bf16.msra.mxu0 0
  %853 = vmatprep.subr.bf16.mxu0 0
  %854 = vmatpush1.bf16.msra.mxu0 0
  %855 = vmatprep.subr.bf16.mxu0 0
  %856 = vmatpush1.bf16.msra.mxu0 0
  %857 = vmatprep.subr.bf16.mxu0 0
  %858 = vmatpush1.bf16.msra.mxu0 %v841
  %859 = vmatprep.subr.bf16.mxu0 0
  %860 = vmatpush2.bf16.msra.mxu0 0
  %861 = vmatprep.subr.bf16.mxu0 0
  %862 = vmatpush2.bf16.msra.mxu0 0
  %863 = vmatprep.subr.bf16.mxu0 0
  %864 = vmatpush2.bf16.msra.mxu0 0
  %865 = vmatprep.subr.bf16.mxu0 0
  %866 = vmatpush2.bf16.msra.mxu0 0
  %867 = vmatprep.subr.bf16.mxu0 0
  %868 = vmatpush2.bf16.msra.mxu0 0
  %869 = vmatprep.subr.bf16.mxu0 0
  %870 = vmatpush2.bf16.msra.mxu0 0
  %871 = vmatprep.subr.bf16.mxu0 0
  %872 = vmatpush2.bf16.msra.mxu0 0
  %873 = vmatprep.subr.bf16.mxu0 0
  %874 = vmatpush2.bf16.msra.mxu0 0
  %875 = vmatprep.mubr.bf16.mxu0 0
  %876 = vmatmul.mubr.bf16.gmra.mxu0 %v838
  %v877 = vpop.f32.mrf.mxu0
  %v878 = vadd.f32 0.0, %v877
  %v879 = vpop.f32.mrf.mxu0
  %v880 = vpop.f32.mrf.mxu0
  %v881 = vpop.f32.mrf.mxu0
  %882 = vdwg.mxu0
  %v883 = vadd.f32 %v778, %v878
  %s884 = scalar_lea.vmem %s0, 16
  %v885 = vld [vmem:[%s884] sm:$0x3]
  %v887 = vsel %vm44, %v885, 0
  %889 = vmatprep.subr.bf16.mxu0 0
  %890 = vmatpush1.bf16.msra.mxu0 0
  %891 = vmatprep.subr.bf16.mxu0 0
  %892 = vmatpush1.bf16.msra.mxu0 0
  %893 = vmatprep.subr.bf16.mxu0 0
  %894 = vmatpush1.bf16.msra.mxu0 0
  %895 = vmatprep.subr.bf16.mxu0 0
  %896 = vmatpush1.bf16.msra.mxu0 0
  %897 = vmatprep.subr.bf16.mxu0 0
  %898 = vmatpush1.bf16.msra.mxu0 0
  %899 = vmatprep.subr.bf16.mxu0 0
  %900 = vmatpush1.bf16.msra.mxu0 0
  %901 = vmatprep.subr.bf16.mxu0 0
  %902 = vmatpush1.bf16.msra.mxu0 0
  %903 = vmatprep.subr.bf16.mxu0 0
  %904 = vmatpush1.bf16.msra.mxu0 %v887
  %905 = vmatprep.subr.bf16.mxu0 0
  %906 = vmatpush2.bf16.msra.mxu0 0
  %907 = vmatprep.subr.bf16.mxu0 0
  %908 = vmatpush2.bf16.msra.mxu0 0
  %909 = vmatprep.subr.bf16.mxu0 0
  %910 = vmatpush2.bf16.msra.mxu0 0
  %911 = vmatprep.subr.bf16.mxu0 0
  %912 = vmatpush2.bf16.msra.mxu0 0
  %913 = vmatprep.subr.bf16.mxu0 0
  %914 = vmatpush2.bf16.msra.mxu0 0
  %915 = vmatprep.subr.bf16.mxu0 0
  %916 = vmatpush2.bf16.msra.mxu0 0
  %917 = vmatprep.subr.bf16.mxu0 0
  %918 = vmatpush2.bf16.msra.mxu0 0
  %919 = vmatprep.subr.bf16.mxu0 0
  %920 = vmatpush2.bf16.msra.mxu0 0
  %921 = vmatprep.mubr.bf16.mxu0 0
  %922 = vmatmul.mubr.bf16.gmra.mxu0 %v42
  %v923 = vpop.f32.mrf.mxu0
  %v924 = vadd.f32 %v38, %v923
  %v925 = vpop.f32.mrf.mxu0
  %v926 = vpop.f32.mrf.mxu0
  %v927 = vpop.f32.mrf.mxu0
  %928 = vdwg.mxu0
  %v929 = vmax.f32 %v924, 0.0
  %s930 = scalar_lea.vmem %s4, 32
  %v931 = vld [vmem:[%s930] sm:$0xf]
  %s932 = scalar_lea.vmem %s1, 8
  %v933 = vld [vmem:[%s932] sm:$0x1]
  %v935 = vlaneseq
  %v936 = vshrl.u32 %v935, 7
  %v937 = vsub.s32 0, %v936
  %v938 = vrot.slane %v933, %v937
  %v940 = vmul.f32 %v929, %v938
  %v941 = vpack.c.bf16 %v940, %v940
  %v943 = vsel %vm157, %v931, 0
  %v946 = vsel %vm161, %v941, 0
  %948 = vmatprep.subr.bf16.mxu0 0
  %949 = vmatpush1.bf16.msra.mxu0 0
  %950 = vmatprep.subr.bf16.mxu0 0
  %951 = vmatpush1.bf16.msra.mxu0 0
  %952 = vmatprep.subr.bf16.mxu0 0
  %953 = vmatpush1.bf16.msra.mxu0 0
  %954 = vmatprep.subr.bf16.mxu0 0
  %955 = vmatpush1.bf16.msra.mxu0 0
  %956 = vmatprep.subr.bf16.mxu0 0
  %957 = vmatpush1.bf16.msra.mxu0 0
  %958 = vmatprep.subr.bf16.mxu0 0
  %959 = vmatpush1.bf16.msra.mxu0 0
  %960 = vmatprep.subr.bf16.mxu0 0
  %961 = vmatpush1.bf16.msra.mxu0 0
  %962 = vmatprep.subr.bf16.mxu0 0
  %963 = vmatpush1.bf16.msra.mxu0 %v946
  %964 = vmatprep.subr.bf16.mxu0 0
  %965 = vmatpush2.bf16.msra.mxu0 0
  %966 = vmatprep.subr.bf16.mxu0 0
  %967 = vmatpush2.bf16.msra.mxu0 0
  %968 = vmatprep.subr.bf16.mxu0 0
  %969 = vmatpush2.bf16.msra.mxu0 0
  %970 = vmatprep.subr.bf16.mxu0 0
  %971 = vmatpush2.bf16.msra.mxu0 0
  %972 = vmatprep.subr.bf16.mxu0 0
  %973 = vmatpush2.bf16.msra.mxu0 0
  %974 = vmatprep.subr.bf16.mxu0 0
  %975 = vmatpush2.bf16.msra.mxu0 0
  %976 = vmatprep.subr.bf16.mxu0 0
  %977 = vmatpush2.bf16.msra.mxu0 0
  %978 = vmatprep.subr.bf16.mxu0 0
  %979 = vmatpush2.bf16.msra.mxu0 0
  %980 = vmatprep.mubr.bf16.mxu0 0
  %981 = vmatmul.mubr.bf16.gmra.mxu0 %v943
  %v982 = vpop.f32.mrf.mxu0
  %v983 = vadd.f32 0.0, %v982
  %v984 = vpop.f32.mrf.mxu0
  %v985 = vpop.f32.mrf.mxu0
  %v986 = vpop.f32.mrf.mxu0
  %987 = vdwg.mxu0
  %v988 = vadd.f32 %v883, %v983
  %s989 = scalar_lea.vmem %s0, 18
  %v990 = vld [vmem:[%s989] sm:$0x3]
  %v992 = vsel %vm44, %v990, 0
  %994 = vmatprep.subr.bf16.mxu0 0
  %995 = vmatpush1.bf16.msra.mxu0 0
  %996 = vmatprep.subr.bf16.mxu0 0
  %997 = vmatpush1.bf16.msra.mxu0 0
  %998 = vmatprep.subr.bf16.mxu0 0
  %999 = vmatpush1.bf16.msra.mxu0 0
  %1000 = vmatprep.subr.bf16.mxu0 0
  %1001 = vmatpush1.bf16.msra.mxu0 0
  %1002 = vmatprep.subr.bf16.mxu0 0
  %1003 = vmatpush1.bf16.msra.mxu0 0
  %1004 = vmatprep.subr.bf16.mxu0 0
  %1005 = vmatpush1.bf16.msra.mxu0 0
  %1006 = vmatprep.subr.bf16.mxu0 0
  %1007 = vmatpush1.bf16.msra.mxu0 0
  %1008 = vmatprep.subr.bf16.mxu0 0
  %1009 = vmatpush1.bf16.msra.mxu0 %v992
  %1010 = vmatprep.subr.bf16.mxu0 0
  %1011 = vmatpush2.bf16.msra.mxu0 0
  %1012 = vmatprep.subr.bf16.mxu0 0
  %1013 = vmatpush2.bf16.msra.mxu0 0
  %1014 = vmatprep.subr.bf16.mxu0 0
  %1015 = vmatpush2.bf16.msra.mxu0 0
  %1016 = vmatprep.subr.bf16.mxu0 0
  %1017 = vmatpush2.bf16.msra.mxu0 0
  %1018 = vmatprep.subr.bf16.mxu0 0
  %1019 = vmatpush2.bf16.msra.mxu0 0
  %1020 = vmatprep.subr.bf16.mxu0 0
  %1021 = vmatpush2.bf16.msra.mxu0 0
  %1022 = vmatprep.subr.bf16.mxu0 0
  %1023 = vmatpush2.bf16.msra.mxu0 0
  %1024 = vmatprep.subr.bf16.mxu0 0
  %1025 = vmatpush2.bf16.msra.mxu0 0
  %1026 = vmatprep.mubr.bf16.mxu0 0
  %1027 = vmatmul.mubr.bf16.gmra.mxu0 %v42
  %v1028 = vpop.f32.mrf.mxu0
  %v1029 = vadd.f32 %v38, %v1028
  %v1030 = vpop.f32.mrf.mxu0
  %v1031 = vpop.f32.mrf.mxu0
  %v1032 = vpop.f32.mrf.mxu0
  %1033 = vdwg.mxu0
  %v1034 = vmax.f32 %v1029, 0.0
  %s1035 = scalar_lea.vmem %s9, 16
  %1036 = vst [vmem:[%s1035] sm:$0xff] %v1034
  %s1037 = scalar_lea.vmem %s4, 36
  %v1038 = vld [vmem:[%s1037] sm:$0xf]
  %s1039 = scalar_lea.vmem %s1, 9
  %v1040 = vld [vmem:[%s1039] sm:$0x1]
  %v1042 = vlaneseq
  %v1043 = vshrl.u32 %v1042, 7
  %v1044 = vsub.s32 0, %v1043
  %v1045 = vrot.slane %v1040, %v1044
  %v1047 = vmul.f32 %v1034, %v1045
  %v1048 = vpack.c.bf16 %v1047, %v1047
  %v1050 = vsel %vm157, %v1038, 0
  %v1053 = vsel %vm161, %v1048, 0
  %1055 = vmatprep.subr.bf16.mxu0 0
  %1056 = vmatpush1.bf16.msra.mxu0 0
  %1057 = vmatprep.subr.bf16.mxu0 0
  %1058 = vmatpush1.bf16.msra.mxu0 0
  %1059 = vmatprep.subr.bf16.mxu0 0
  %1060 = vmatpush1.bf16.msra.mxu0 0
  %1061 = vmatprep.subr.bf16.mxu0 0
  %1062 = vmatpush1.bf16.msra.mxu0 0
  %1063 = vmatprep.subr.bf16.mxu0 0
  %1064 = vmatpush1.bf16.msra.mxu0 0
  %1065 = vmatprep.subr.bf16.mxu0 0
  %1066 = vmatpush1.bf16.msra.mxu0 0
  %1067 = vmatprep.subr.bf16.mxu0 0
  %1068 = vmatpush1.bf16.msra.mxu0 0
  %1069 = vmatprep.subr.bf16.mxu0 0
  %1070 = vmatpush1.bf16.msra.mxu0 %v1053
  %1071 = vmatprep.subr.bf16.mxu0 0
  %1072 = vmatpush2.bf16.msra.mxu0 0
  %1073 = vmatprep.subr.bf16.mxu0 0
  %1074 = vmatpush2.bf16.msra.mxu0 0
  %1075 = vmatprep.subr.bf16.mxu0 0
  %1076 = vmatpush2.bf16.msra.mxu0 0
  %1077 = vmatprep.subr.bf16.mxu0 0
  %1078 = vmatpush2.bf16.msra.mxu0 0
  %1079 = vmatprep.subr.bf16.mxu0 0
  %1080 = vmatpush2.bf16.msra.mxu0 0
  %1081 = vmatprep.subr.bf16.mxu0 0
  %1082 = vmatpush2.bf16.msra.mxu0 0
  %1083 = vmatprep.subr.bf16.mxu0 0
  %1084 = vmatpush2.bf16.msra.mxu0 0
  %1085 = vmatprep.subr.bf16.mxu0 0
  %1086 = vmatpush2.bf16.msra.mxu0 0
  %1087 = vmatprep.mubr.bf16.mxu0 0
  %1088 = vmatmul.mubr.bf16.gmra.mxu0 %v1050
  %v1089 = vpop.f32.mrf.mxu0
  %v1090 = vadd.f32 0.0, %v1089
  %v1091 = vpop.f32.mrf.mxu0
  %v1092 = vpop.f32.mrf.mxu0
  %v1093 = vpop.f32.mrf.mxu0
  %1094 = vdwg.mxu0
  %v1095 = vadd.f32 %v988, %v1090
  %s1096 = scalar_lea.vmem %s0, 20
  %v1097 = vld [vmem:[%s1096] sm:$0x3]
  %v1099 = vsel %vm44, %v1097, 0
  %1101 = vmatprep.subr.bf16.mxu0 0
  %1102 = vmatpush1.bf16.msra.mxu0 0
  %1103 = vmatprep.subr.bf16.mxu0 0
  %1104 = vmatpush1.bf16.msra.mxu0 0
  %1105 = vmatprep.subr.bf16.mxu0 0
  %1106 = vmatpush1.bf16.msra.mxu0 0
  %1107 = vmatprep.subr.bf16.mxu0 0
  %1108 = vmatpush1.bf16.msra.mxu0 0
  %1109 = vmatprep.subr.bf16.mxu0 0
  %1110 = vmatpush1.bf16.msra.mxu0 0
  %1111 = vmatprep.subr.bf16.mxu0 0
  %1112 = vmatpush1.bf16.msra.mxu0 0
  %1113 = vmatprep.subr.bf16.mxu0 0
  %1114 = vmatpush1.bf16.msra.mxu0 0
  %1115 = vmatprep.subr.bf16.mxu0 0
  %1116 = vmatpush1.bf16.msra.mxu0 %v1099
  %1117 = vmatprep.subr.bf16.mxu0 0
  %1118 = vmatpush2.bf16.msra.mxu0 0
  %1119 = vmatprep.subr.bf16.mxu0 0
  %1120 = vmatpush2.bf16.msra.mxu0 0
  %1121 = vmatprep.subr.bf16.mxu0 0
  %1122 = vmatpush2.bf16.msra.mxu0 0
  %1123 = vmatprep.subr.bf16.mxu0 0
  %1124 = vmatpush2.bf16.msra.mxu0 0
  %1125 = vmatprep.subr.bf16.mxu0 0
  %1126 = vmatpush2.bf16.msra.mxu0 0
  %1127 = vmatprep.subr.bf16.mxu0 0
  %1128 = vmatpush2.bf16.msra.mxu0 0
  %1129 = vmatprep.subr.bf16.mxu0 0
  %1130 = vmatpush2.bf16.msra.mxu0 0
  %1131 = vmatprep.subr.bf16.mxu0 0
  %1132 = vmatpush2.bf16.msra.mxu0 0
  %1133 = vmatprep.mubr.bf16.mxu0 0
  %1134 = vmatmul.mubr.bf16.gmra.mxu0 %v42
  %v1135 = vpop.f32.mrf.mxu0
  %v1136 = vadd.f32 %v38, %v1135
  %v1137 = vpop.f32.mrf.mxu0
  %v1138 = vpop.f32.mrf.mxu0
  %v1139 = vpop.f32.mrf.mxu0
  %1140 = vdwg.mxu0
  %v1141 = vmax.f32 %v1136, 0.0
  %s1142 = scalar_lea.vmem %s9, 24
  %1143 = vst [vmem:[%s1142] sm:$0xff] %v1141
  %s1144 = scalar_lea.vmem %s4, 40
  %v1145 = vld [vmem:[%s1144] sm:$0xf]
  %s1146 = scalar_lea.vmem %s1, 10
  %v1147 = vld [vmem:[%s1146] sm:$0x1]
  %v1149 = vlaneseq
  %v1150 = vshrl.u32 %v1149, 7
  %v1151 = vsub.s32 0, %v1150
  %v1152 = vrot.slane %v1147, %v1151
  %v1154 = vmul.f32 %v1141, %v1152
  %v1155 = vpack.c.bf16 %v1154, %v1154
  %v1157 = vsel %vm157, %v1145, 0
  %v1160 = vsel %vm161, %v1155, 0
  %1162 = vmatprep.subr.bf16.mxu0 0
  %1163 = vmatpush1.bf16.msra.mxu0 0
  %1164 = vmatprep.subr.bf16.mxu0 0
  %1165 = vmatpush1.bf16.msra.mxu0 0
  %1166 = vmatprep.subr.bf16.mxu0 0
  %1167 = vmatpush1.bf16.msra.mxu0 0
  %1168 = vmatprep.subr.bf16.mxu0 0
  %1169 = vmatpush1.bf16.msra.mxu0 0
  %1170 = vmatprep.subr.bf16.mxu0 0
  %1171 = vmatpush1.bf16.msra.mxu0 0
  %1172 = vmatprep.subr.bf16.mxu0 0
  %1173 = vmatpush1.bf16.msra.mxu0 0
  %1174 = vmatprep.subr.bf16.mxu0 0
  %1175 = vmatpush1.bf16.msra.mxu0 0
  %1176 = vmatprep.subr.bf16.mxu0 0
  %1177 = vmatpush1.bf16.msra.mxu0 %v1160
  %1178 = vmatprep.subr.bf16.mxu0 0
  %1179 = vmatpush2.bf16.msra.mxu0 0
  %1180 = vmatprep.subr.bf16.mxu0 0
  %1181 = vmatpush2.bf16.msra.mxu0 0
  %1182 = vmatprep.subr.bf16.mxu0 0
  %1183 = vmatpush2.bf16.msra.mxu0 0
  %1184 = vmatprep.subr.bf16.mxu0 0
  %1185 = vmatpush2.bf16.msra.mxu0 0
  %1186 = vmatprep.subr.bf16.mxu0 0
  %1187 = vmatpush2.bf16.msra.mxu0 0
  %1188 = vmatprep.subr.bf16.mxu0 0
  %1189 = vmatpush2.bf16.msra.mxu0 0
  %1190 = vmatprep.subr.bf16.mxu0 0
  %1191 = vmatpush2.bf16.msra.mxu0 0
  %1192 = vmatprep.subr.bf16.mxu0 0
  %1193 = vmatpush2.bf16.msra.mxu0 0
  %1194 = vmatprep.mubr.bf16.mxu0 0
  %1195 = vmatmul.mubr.bf16.gmra.mxu0 %v1157
  %v1196 = vpop.f32.mrf.mxu0
  %v1197 = vadd.f32 0.0, %v1196
  %v1198 = vpop.f32.mrf.mxu0
  %v1199 = vpop.f32.mrf.mxu0
  %v1200 = vpop.f32.mrf.mxu0
  %1201 = vdwg.mxu0
  %v1202 = vadd.f32 %v1095, %v1197
  %s1203 = scalar_lea.vmem %s0, 22
  %v1204 = vld [vmem:[%s1203] sm:$0x3]
  %v1206 = vsel %vm44, %v1204, 0
  %1208 = vmatprep.subr.bf16.mxu0 0
  %1209 = vmatpush1.bf16.msra.mxu0 0
  %1210 = vmatprep.subr.bf16.mxu0 0
  %1211 = vmatpush1.bf16.msra.mxu0 0
  %1212 = vmatprep.subr.bf16.mxu0 0
  %1213 = vmatpush1.bf16.msra.mxu0 0
  %1214 = vmatprep.subr.bf16.mxu0 0
  %1215 = vmatpush1.bf16.msra.mxu0 0
  %1216 = vmatprep.subr.bf16.mxu0 0
  %1217 = vmatpush1.bf16.msra.mxu0 0
  %1218 = vmatprep.subr.bf16.mxu0 0
  %1219 = vmatpush1.bf16.msra.mxu0 0
  %1220 = vmatprep.subr.bf16.mxu0 0
  %1221 = vmatpush1.bf16.msra.mxu0 0
  %1222 = vmatprep.subr.bf16.mxu0 0
  %1223 = vmatpush1.bf16.msra.mxu0 %v1206
  %1224 = vmatprep.subr.bf16.mxu0 0
  %1225 = vmatpush2.bf16.msra.mxu0 0
  %1226 = vmatprep.subr.bf16.mxu0 0
  %1227 = vmatpush2.bf16.msra.mxu0 0
  %1228 = vmatprep.subr.bf16.mxu0 0
  %1229 = vmatpush2.bf16.msra.mxu0 0
  %1230 = vmatprep.subr.bf16.mxu0 0
  %1231 = vmatpush2.bf16.msra.mxu0 0
  %1232 = vmatprep.subr.bf16.mxu0 0
  %1233 = vmatpush2.bf16.msra.mxu0 0
  %1234 = vmatprep.subr.bf16.mxu0 0
  %1235 = vmatpush2.bf16.msra.mxu0 0
  %1236 = vmatprep.subr.bf16.mxu0 0
  %1237 = vmatpush2.bf16.msra.mxu0 0
  %1238 = vmatprep.subr.bf16.mxu0 0
  %1239 = vmatpush2.bf16.msra.mxu0 0
  %1240 = vmatprep.mubr.bf16.mxu0 0
  %1241 = vmatmul.mubr.bf16.gmra.mxu0 %v42
  %v1242 = vpop.f32.mrf.mxu0
  %v1243 = vadd.f32 %v38, %v1242
  %v1244 = vpop.f32.mrf.mxu0
  %v1245 = vpop.f32.mrf.mxu0
  %v1246 = vpop.f32.mrf.mxu0
  %1247 = vdwg.mxu0
  %v1248 = vmax.f32 %v1243, 0.0
  %s1249 = scalar_lea.vmem %s4, 44
  %v1250 = vld [vmem:[%s1249] sm:$0xf]
  %s1251 = scalar_lea.vmem %s1, 11
  %v1252 = vld [vmem:[%s1251] sm:$0x1]
  %v1254 = vlaneseq
  %v1255 = vshrl.u32 %v1254, 7
  %v1256 = vsub.s32 0, %v1255
  %v1257 = vrot.slane %v1252, %v1256
  %v1259 = vmul.f32 %v1248, %v1257
  %v1260 = vpack.c.bf16 %v1259, %v1259
  %v1262 = vsel %vm157, %v1250, 0
  %v1265 = vsel %vm161, %v1260, 0
  %1267 = vmatprep.subr.bf16.mxu0 0
  %1268 = vmatpush1.bf16.msra.mxu0 0
  %1269 = vmatprep.subr.bf16.mxu0 0
  %1270 = vmatpush1.bf16.msra.mxu0 0
  %1271 = vmatprep.subr.bf16.mxu0 0
  %1272 = vmatpush1.bf16.msra.mxu0 0
  %1273 = vmatprep.subr.bf16.mxu0 0
  %1274 = vmatpush1.bf16.msra.mxu0 0
  %1275 = vmatprep.subr.bf16.mxu0 0
  %1276 = vmatpush1.bf16.msra.mxu0 0
  %1277 = vmatprep.subr.bf16.mxu0 0
  %1278 = vmatpush1.bf16.msra.mxu0 0
  %1279 = vmatprep.subr.bf16.mxu0 0
  %1280 = vmatpush1.bf16.msra.mxu0 0
  %1281 = vmatprep.subr.bf16.mxu0 0
  %1282 = vmatpush1.bf16.msra.mxu0 %v1265
  %1283 = vmatprep.subr.bf16.mxu0 0
  %1284 = vmatpush2.bf16.msra.mxu0 0
  %1285 = vmatprep.subr.bf16.mxu0 0
  %1286 = vmatpush2.bf16.msra.mxu0 0
  %1287 = vmatprep.subr.bf16.mxu0 0
  %1288 = vmatpush2.bf16.msra.mxu0 0
  %1289 = vmatprep.subr.bf16.mxu0 0
  %1290 = vmatpush2.bf16.msra.mxu0 0
  %1291 = vmatprep.subr.bf16.mxu0 0
  %1292 = vmatpush2.bf16.msra.mxu0 0
  %1293 = vmatprep.subr.bf16.mxu0 0
  %1294 = vmatpush2.bf16.msra.mxu0 0
  %1295 = vmatprep.subr.bf16.mxu0 0
  %1296 = vmatpush2.bf16.msra.mxu0 0
  %1297 = vmatprep.subr.bf16.mxu0 0
  %1298 = vmatpush2.bf16.msra.mxu0 0
  %1299 = vmatprep.mubr.bf16.mxu0 0
  %1300 = vmatmul.mubr.bf16.gmra.mxu0 %v1262
  %v1301 = vpop.f32.mrf.mxu0
  %v1302 = vadd.f32 0.0, %v1301
  %v1303 = vpop.f32.mrf.mxu0
  %v1304 = vpop.f32.mrf.mxu0
  %v1305 = vpop.f32.mrf.mxu0
  %1306 = vdwg.mxu0
  %v1307 = vadd.f32 %v1202, %v1302
  %s1308 = scalar_lea.vmem %s0, 24
  %v1309 = vld [vmem:[%s1308] sm:$0x3]
  %v1311 = vsel %vm44, %v1309, 0
  %1313 = vmatprep.subr.bf16.mxu0 0
  %1314 = vmatpush1.bf16.msra.mxu0 0
  %1315 = vmatprep.subr.bf16.mxu0 0
  %1316 = vmatpush1.bf16.msra.mxu0 0
  %1317 = vmatprep.subr.bf16.mxu0 0
  %1318 = vmatpush1.bf16.msra.mxu0 0
  %1319 = vmatprep.subr.bf16.mxu0 0
  %1320 = vmatpush1.bf16.msra.mxu0 0
  %1321 = vmatprep.subr.bf16.mxu0 0
  %1322 = vmatpush1.bf16.msra.mxu0 0
  %1323 = vmatprep.subr.bf16.mxu0 0
  %1324 = vmatpush1.bf16.msra.mxu0 0
  %1325 = vmatprep.subr.bf16.mxu0 0
  %1326 = vmatpush1.bf16.msra.mxu0 0
  %1327 = vmatprep.subr.bf16.mxu0 0
  %1328 = vmatpush1.bf16.msra.mxu0 %v1311
  %1329 = vmatprep.subr.bf16.mxu0 0
  %1330 = vmatpush2.bf16.msra.mxu0 0
  %1331 = vmatprep.subr.bf16.mxu0 0
  %1332 = vmatpush2.bf16.msra.mxu0 0
  %1333 = vmatprep.subr.bf16.mxu0 0
  %1334 = vmatpush2.bf16.msra.mxu0 0
  %1335 = vmatprep.subr.bf16.mxu0 0
  %1336 = vmatpush2.bf16.msra.mxu0 0
  %1337 = vmatprep.subr.bf16.mxu0 0
  %1338 = vmatpush2.bf16.msra.mxu0 0
  %1339 = vmatprep.subr.bf16.mxu0 0
  %1340 = vmatpush2.bf16.msra.mxu0 0
  %1341 = vmatprep.subr.bf16.mxu0 0
  %1342 = vmatpush2.bf16.msra.mxu0 0
  %1343 = vmatprep.subr.bf16.mxu0 0
  %1344 = vmatpush2.bf16.msra.mxu0 0
  %1345 = vmatprep.mubr.bf16.mxu0 0
  %1346 = vmatmul.mubr.bf16.gmra.mxu0 %v42
  %v1347 = vpop.f32.mrf.mxu0
  %v1348 = vadd.f32 %v38, %v1347
  %v1349 = vpop.f32.mrf.mxu0
  %v1350 = vpop.f32.mrf.mxu0
  %v1351 = vpop.f32.mrf.mxu0
  %1352 = vdwg.mxu0
  %v1353 = vmax.f32 %v1348, 0.0
  %s1354 = scalar_lea.vmem %s4, 48
  %v1355 = vld [vmem:[%s1354] sm:$0xf]
  %s1356 = scalar_lea.vmem %s1, 12
  %v1357 = vld [vmem:[%s1356] sm:$0x1]
  %v1359 = vlaneseq
  %v1360 = vshrl.u32 %v1359, 7
  %v1361 = vsub.s32 0, %v1360
  %v1362 = vrot.slane %v1357, %v1361
  %v1364 = vmul.f32 %v1353, %v1362
  %v1365 = vpack.c.bf16 %v1364, %v1364
  %v1367 = vsel %vm157, %v1355, 0
  %v1370 = vsel %vm161, %v1365, 0
  %1372 = vmatprep.subr.bf16.mxu0 0
  %1373 = vmatpush1.bf16.msra.mxu0 0
  %1374 = vmatprep.subr.bf16.mxu0 0
  %1375 = vmatpush1.bf16.msra.mxu0 0
  %1376 = vmatprep.subr.bf16.mxu0 0
  %1377 = vmatpush1.bf16.msra.mxu0 0
  %1378 = vmatprep.subr.bf16.mxu0 0
  %1379 = vmatpush1.bf16.msra.mxu0 0
  %1380 = vmatprep.subr.bf16.mxu0 0
  %1381 = vmatpush1.bf16.msra.mxu0 0
  %1382 = vmatprep.subr.bf16.mxu0 0
  %1383 = vmatpush1.bf16.msra.mxu0 0
  %1384 = vmatprep.subr.bf16.mxu0 0
  %1385 = vmatpush1.bf16.msra.mxu0 0
  %1386 = vmatprep.subr.bf16.mxu0 0
  %1387 = vmatpush1.bf16.msra.mxu0 %v1370
  %1388 = vmatprep.subr.bf16.mxu0 0
  %1389 = vmatpush2.bf16.msra.mxu0 0
  %1390 = vmatprep.subr.bf16.mxu0 0
  %1391 = vmatpush2.bf16.msra.mxu0 0
  %1392 = vmatprep.subr.bf16.mxu0 0
  %1393 = vmatpush2.bf16.msra.mxu0 0
  %1394 = vmatprep.subr.bf16.mxu0 0
  %1395 = vmatpush2.bf16.msra.mxu0 0
  %1396 = vmatprep.subr.bf16.mxu0 0
  %1397 = vmatpush2.bf16.msra.mxu0 0
  %1398 = vmatprep.subr.bf16.mxu0 0
  %1399 = vmatpush2.bf16.msra.mxu0 0
  %1400 = vmatprep.subr.bf16.mxu0 0
  %1401 = vmatpush2.bf16.msra.mxu0 0
  %1402 = vmatprep.subr.bf16.mxu0 0
  %1403 = vmatpush2.bf16.msra.mxu0 0
  %1404 = vmatprep.mubr.bf16.mxu0 0
  %1405 = vmatmul.mubr.bf16.gmra.mxu0 %v1367
  %v1406 = vpop.f32.mrf.mxu0
  %v1407 = vadd.f32 0.0, %v1406
  %v1408 = vpop.f32.mrf.mxu0
  %v1409 = vpop.f32.mrf.mxu0
  %v1410 = vpop.f32.mrf.mxu0
  %1411 = vdwg.mxu0
  %v1412 = vadd.f32 %v1307, %v1407
  %s1413 = scalar_lea.vmem %s0, 26
  %v1414 = vld [vmem:[%s1413] sm:$0x3]
  %v1416 = vsel %vm44, %v1414, 0
  %1418 = vmatprep.subr.bf16.mxu0 0
  %1419 = vmatpush1.bf16.msra.mxu0 0
  %1420 = vmatprep.subr.bf16.mxu0 0
  %1421 = vmatpush1.bf16.msra.mxu0 0
  %1422 = vmatprep.subr.bf16.mxu0 0
  %1423 = vmatpush1.bf16.msra.mxu0 0
  %1424 = vmatprep.subr.bf16.mxu0 0
  %1425 = vmatpush1.bf16.msra.mxu0 0
  %1426 = vmatprep.subr.bf16.mxu0 0
  %1427 = vmatpush1.bf16.msra.mxu0 0
  %1428 = vmatprep.subr.bf16.mxu0 0
  %1429 = vmatpush1.bf16.msra.mxu0 0
  %1430 = vmatprep.subr.bf16.mxu0 0
  %1431 = vmatpush1.bf16.msra.mxu0 0
  %1432 = vmatprep.subr.bf16.mxu0 0
  %1433 = vmatpush1.bf16.msra.mxu0 %v1416
  %1434 = vmatprep.subr.bf16.mxu0 0
  %1435 = vmatpush2.bf16.msra.mxu0 0
  %1436 = vmatprep.subr.bf16.mxu0 0
  %1437 = vmatpush2.bf16.msra.mxu0 0
  %1438 = vmatprep.subr.bf16.mxu0 0
  %1439 = vmatpush2.bf16.msra.mxu0 0
  %1440 = vmatprep.subr.bf16.mxu0 0
  %1441 = vmatpush2.bf16.msra.mxu0 0
  %1442 = vmatprep.subr.bf16.mxu0 0
  %1443 = vmatpush2.bf16.msra.mxu0 0
  %1444 = vmatprep.subr.bf16.mxu0 0
  %1445 = vmatpush2.bf16.msra.mxu0 0
  %1446 = vmatprep.subr.bf16.mxu0 0
  %1447 = vmatpush2.bf16.msra.mxu0 0
  %1448 = vmatprep.subr.bf16.mxu0 0
  %1449 = vmatpush2.bf16.msra.mxu0 0
  %1450 = vmatprep.mubr.bf16.mxu0 0
  %1451 = vmatmul.mubr.bf16.gmra.mxu0 %v42
  %v1452 = vpop.f32.mrf.mxu0
  %v1453 = vadd.f32 %v38, %v1452
  %v1454 = vpop.f32.mrf.mxu0
  %v1455 = vpop.f32.mrf.mxu0
  %v1456 = vpop.f32.mrf.mxu0
  %1457 = vdwg.mxu0
  %v1458 = vmax.f32 %v1453, 0.0
  %s1459 = scalar_lea.vmem %s4, 52
  %v1460 = vld [vmem:[%s1459] sm:$0xf]
  %s1461 = scalar_lea.vmem %s1, 13
  %v1462 = vld [vmem:[%s1461] sm:$0x1]
  %v1464 = vlaneseq
  %v1465 = vshrl.u32 %v1464, 7
  %v1466 = vsub.s32 0, %v1465
  %v1467 = vrot.slane %v1462, %v1466
  %v1469 = vmul.f32 %v1458, %v1467
  %v1470 = vpack.c.bf16 %v1469, %v1469
  %v1472 = vsel %vm157, %v1460, 0
  %v1475 = vsel %vm161, %v1470, 0
  %1477 = vmatprep.subr.bf16.mxu0 0
  %1478 = vmatpush1.bf16.msra.mxu0 0
  %1479 = vmatprep.subr.bf16.mxu0 0
  %1480 = vmatpush1.bf16.msra.mxu0 0
  %1481 = vmatprep.subr.bf16.mxu0 0
  %1482 = vmatpush1.bf16.msra.mxu0 0
  %1483 = vmatprep.subr.bf16.mxu0 0
  %1484 = vmatpush1.bf16.msra.mxu0 0
  %1485 = vmatprep.subr.bf16.mxu0 0
  %1486 = vmatpush1.bf16.msra.mxu0 0
  %1487 = vmatprep.subr.bf16.mxu0 0
  %1488 = vmatpush1.bf16.msra.mxu0 0
  %1489 = vmatprep.subr.bf16.mxu0 0
  %1490 = vmatpush1.bf16.msra.mxu0 0
  %1491 = vmatprep.subr.bf16.mxu0 0
  %1492 = vmatpush1.bf16.msra.mxu0 %v1475
  %1493 = vmatprep.subr.bf16.mxu0 0
  %1494 = vmatpush2.bf16.msra.mxu0 0
  %1495 = vmatprep.subr.bf16.mxu0 0
  %1496 = vmatpush2.bf16.msra.mxu0 0
  %1497 = vmatprep.subr.bf16.mxu0 0
  %1498 = vmatpush2.bf16.msra.mxu0 0
  %1499 = vmatprep.subr.bf16.mxu0 0
  %1500 = vmatpush2.bf16.msra.mxu0 0
  %1501 = vmatprep.subr.bf16.mxu0 0
  %1502 = vmatpush2.bf16.msra.mxu0 0
  %1503 = vmatprep.subr.bf16.mxu0 0
  %1504 = vmatpush2.bf16.msra.mxu0 0
  %1505 = vmatprep.subr.bf16.mxu0 0
  %1506 = vmatpush2.bf16.msra.mxu0 0
  %1507 = vmatprep.subr.bf16.mxu0 0
  %1508 = vmatpush2.bf16.msra.mxu0 0
  %1509 = vmatprep.mubr.bf16.mxu0 0
  %1510 = vmatmul.mubr.bf16.gmra.mxu0 %v1472
  %v1511 = vpop.f32.mrf.mxu0
  %v1512 = vadd.f32 0.0, %v1511
  %v1513 = vpop.f32.mrf.mxu0
  %v1514 = vpop.f32.mrf.mxu0
  %v1515 = vpop.f32.mrf.mxu0
  %1516 = vdwg.mxu0
  %v1517 = vadd.f32 %v1412, %v1512
  %s1518 = scalar_lea.vmem %s0, 28
  %v1519 = vld [vmem:[%s1518] sm:$0x3]
  %v1521 = vsel %vm44, %v1519, 0
  %1523 = vmatprep.subr.bf16.mxu0 0
  %1524 = vmatpush1.bf16.msra.mxu0 0
  %1525 = vmatprep.subr.bf16.mxu0 0
  %1526 = vmatpush1.bf16.msra.mxu0 0
  %1527 = vmatprep.subr.bf16.mxu0 0
  %1528 = vmatpush1.bf16.msra.mxu0 0
  %1529 = vmatprep.subr.bf16.mxu0 0
  %1530 = vmatpush1.bf16.msra.mxu0 0
  %1531 = vmatprep.subr.bf16.mxu0 0
  %1532 = vmatpush1.bf16.msra.mxu0 0
  %1533 = vmatprep.subr.bf16.mxu0 0
  %1534 = vmatpush1.bf16.msra.mxu0 0
  %1535 = vmatprep.subr.bf16.mxu0 0
  %1536 = vmatpush1.bf16.msra.mxu0 0
  %1537 = vmatprep.subr.bf16.mxu0 0
  %1538 = vmatpush1.bf16.msra.mxu0 %v1521
  %1539 = vmatprep.subr.bf16.mxu0 0
  %1540 = vmatpush2.bf16.msra.mxu0 0
  %1541 = vmatprep.subr.bf16.mxu0 0
  %1542 = vmatpush2.bf16.msra.mxu0 0
  %1543 = vmatprep.subr.bf16.mxu0 0
  %1544 = vmatpush2.bf16.msra.mxu0 0
  %1545 = vmatprep.subr.bf16.mxu0 0
  %1546 = vmatpush2.bf16.msra.mxu0 0
  %1547 = vmatprep.subr.bf16.mxu0 0
  %1548 = vmatpush2.bf16.msra.mxu0 0
  %1549 = vmatprep.subr.bf16.mxu0 0
  %1550 = vmatpush2.bf16.msra.mxu0 0
  %1551 = vmatprep.subr.bf16.mxu0 0
  %1552 = vmatpush2.bf16.msra.mxu0 0
  %1553 = vmatprep.subr.bf16.mxu0 0
  %1554 = vmatpush2.bf16.msra.mxu0 0
  %1555 = vmatprep.mubr.bf16.mxu0 0
  %1556 = vmatmul.mubr.bf16.gmra.mxu0 %v42
  %v1557 = vpop.f32.mrf.mxu0
  %v1558 = vadd.f32 %v38, %v1557
  %v1559 = vpop.f32.mrf.mxu0
  %v1560 = vpop.f32.mrf.mxu0
  %v1561 = vpop.f32.mrf.mxu0
  %1562 = vdwg.mxu0
  %v1563 = vmax.f32 %v1558, 0.0
  %s1564 = scalar_lea.vmem %s4, 56
  %v1565 = vld [vmem:[%s1564] sm:$0xf]
  %s1566 = scalar_lea.vmem %s1, 14
  %v1567 = vld [vmem:[%s1566] sm:$0x1]
  %v1569 = vlaneseq
  %v1570 = vshrl.u32 %v1569, 7
  %v1571 = vsub.s32 0, %v1570
  %v1572 = vrot.slane %v1567, %v1571
  %v1574 = vmul.f32 %v1563, %v1572
  %v1575 = vpack.c.bf16 %v1574, %v1574
  %v1577 = vsel %vm157, %v1565, 0
  %v1580 = vsel %vm161, %v1575, 0
  %1582 = vmatprep.subr.bf16.mxu0 0
  %1583 = vmatpush1.bf16.msra.mxu0 0
  %1584 = vmatprep.subr.bf16.mxu0 0
  %1585 = vmatpush1.bf16.msra.mxu0 0
  %1586 = vmatprep.subr.bf16.mxu0 0
  %1587 = vmatpush1.bf16.msra.mxu0 0
  %1588 = vmatprep.subr.bf16.mxu0 0
  %1589 = vmatpush1.bf16.msra.mxu0 0
  %1590 = vmatprep.subr.bf16.mxu0 0
  %1591 = vmatpush1.bf16.msra.mxu0 0
  %1592 = vmatprep.subr.bf16.mxu0 0
  %1593 = vmatpush1.bf16.msra.mxu0 0
  %1594 = vmatprep.subr.bf16.mxu0 0
  %1595 = vmatpush1.bf16.msra.mxu0 0
  %1596 = vmatprep.subr.bf16.mxu0 0
  %1597 = vmatpush1.bf16.msra.mxu0 %v1580
  %1598 = vmatprep.subr.bf16.mxu0 0
  %1599 = vmatpush2.bf16.msra.mxu0 0
  %1600 = vmatprep.subr.bf16.mxu0 0
  %1601 = vmatpush2.bf16.msra.mxu0 0
  %1602 = vmatprep.subr.bf16.mxu0 0
  %1603 = vmatpush2.bf16.msra.mxu0 0
  %1604 = vmatprep.subr.bf16.mxu0 0
  %1605 = vmatpush2.bf16.msra.mxu0 0
  %1606 = vmatprep.subr.bf16.mxu0 0
  %1607 = vmatpush2.bf16.msra.mxu0 0
  %1608 = vmatprep.subr.bf16.mxu0 0
  %1609 = vmatpush2.bf16.msra.mxu0 0
  %1610 = vmatprep.subr.bf16.mxu0 0
  %1611 = vmatpush2.bf16.msra.mxu0 0
  %1612 = vmatprep.subr.bf16.mxu0 0
  %1613 = vmatpush2.bf16.msra.mxu0 0
  %1614 = vmatprep.mubr.bf16.mxu0 0
  %1615 = vmatmul.mubr.bf16.gmra.mxu0 %v1577
  %v1616 = vpop.f32.mrf.mxu0
  %v1617 = vadd.f32 0.0, %v1616
  %v1618 = vpop.f32.mrf.mxu0
  %v1619 = vpop.f32.mrf.mxu0
  %v1620 = vpop.f32.mrf.mxu0
  %1621 = vdwg.mxu0
  %v1622 = vadd.f32 %v1517, %v1617
  %s1623 = scalar_lea.vmem %s0, 30
  %v1624 = vld [vmem:[%s1623] sm:$0x3]
  %v1626 = vsel %vm44, %v1624, 0
  %1628 = vmatprep.subr.bf16.mxu0 0
  %1629 = vmatpush1.bf16.msra.mxu0 0
  %1630 = vmatprep.subr.bf16.mxu0 0
  %1631 = vmatpush1.bf16.msra.mxu0 0
  %1632 = vmatprep.subr.bf16.mxu0 0
  %1633 = vmatpush1.bf16.msra.mxu0 0
  %1634 = vmatprep.subr.bf16.mxu0 0
  %1635 = vmatpush1.bf16.msra.mxu0 0
  %1636 = vmatprep.subr.bf16.mxu0 0
  %1637 = vmatpush1.bf16.msra.mxu0 0
  %1638 = vmatprep.subr.bf16.mxu0 0
  %1639 = vmatpush1.bf16.msra.mxu0 0
  %1640 = vmatprep.subr.bf16.mxu0 0
  %1641 = vmatpush1.bf16.msra.mxu0 0
  %1642 = vmatprep.subr.bf16.mxu0 0
  %1643 = vmatpush1.bf16.msra.mxu0 %v1626
  %1644 = vmatprep.subr.bf16.mxu0 0
  %1645 = vmatpush2.bf16.msra.mxu0 0
  %1646 = vmatprep.subr.bf16.mxu0 0
  %1647 = vmatpush2.bf16.msra.mxu0 0
  %1648 = vmatprep.subr.bf16.mxu0 0
  %1649 = vmatpush2.bf16.msra.mxu0 0
  %1650 = vmatprep.subr.bf16.mxu0 0
  %1651 = vmatpush2.bf16.msra.mxu0 0
  %1652 = vmatprep.subr.bf16.mxu0 0
  %1653 = vmatpush2.bf16.msra.mxu0 0
  %1654 = vmatprep.subr.bf16.mxu0 0
  %1655 = vmatpush2.bf16.msra.mxu0 0
  %1656 = vmatprep.subr.bf16.mxu0 0
  %1657 = vmatpush2.bf16.msra.mxu0 0
  %1658 = vmatprep.subr.bf16.mxu0 0
  %1659 = vmatpush2.bf16.msra.mxu0 0
  %1660 = vmatprep.mubr.bf16.mxu0 0
  %1661 = vmatmul.mubr.bf16.gmra.mxu0 %v42
  %v1662 = vpop.f32.mrf.mxu0
  %v1663 = vadd.f32 %v38, %v1662
  %v1664 = vpop.f32.mrf.mxu0
  %v1665 = vpop.f32.mrf.mxu0
  %v1666 = vpop.f32.mrf.mxu0
  %1667 = vdwg.mxu0
  %v1668 = vmax.f32 %v1663, 0.0
  %s1669 = scalar_lea.vmem %s4, 60
  %v1670 = vld [vmem:[%s1669] sm:$0xf]
  %s1671 = scalar_lea.vmem %s1, 15
  %v1672 = vld [vmem:[%s1671] sm:$0x1]
  %v1674 = vlaneseq
  %v1675 = vshrl.u32 %v1674, 7
  %v1676 = vsub.s32 0, %v1675
  %v1677 = vrot.slane %v1672, %v1676
  %v1679 = vmul.f32 %v1668, %v1677
  %v1680 = vpack.c.bf16 %v1679, %v1679
  %v1682 = vsel %vm157, %v1670, 0
  %v1685 = vsel %vm161, %v1680, 0
  %1687 = vmatprep.subr.bf16.mxu0 0
  %1688 = vmatpush1.bf16.msra.mxu0 0
  %1689 = vmatprep.subr.bf16.mxu0 0
  %1690 = vmatpush1.bf16.msra.mxu0 0
  %1691 = vmatprep.subr.bf16.mxu0 0
  %1692 = vmatpush1.bf16.msra.mxu0 0
  %1693 = vmatprep.subr.bf16.mxu0 0
  %1694 = vmatpush1.bf16.msra.mxu0 0
  %1695 = vmatprep.subr.bf16.mxu0 0
  %1696 = vmatpush1.bf16.msra.mxu0 0
  %1697 = vmatprep.subr.bf16.mxu0 0
  %1698 = vmatpush1.bf16.msra.mxu0 0
  %1699 = vmatprep.subr.bf16.mxu0 0
  %1700 = vmatpush1.bf16.msra.mxu0 0
  %1701 = vmatprep.subr.bf16.mxu0 0
  %1702 = vmatpush1.bf16.msra.mxu0 %v1685
  %1703 = vmatprep.subr.bf16.mxu0 0
  %1704 = vmatpush2.bf16.msra.mxu0 0
  %1705 = vmatprep.subr.bf16.mxu0 0
  %1706 = vmatpush2.bf16.msra.mxu0 0
  %1707 = vmatprep.subr.bf16.mxu0 0
  %1708 = vmatpush2.bf16.msra.mxu0 0
  %1709 = vmatprep.subr.bf16.mxu0 0
  %1710 = vmatpush2.bf16.msra.mxu0 0
  %1711 = vmatprep.subr.bf16.mxu0 0
  %1712 = vmatpush2.bf16.msra.mxu0 0
  %1713 = vmatprep.subr.bf16.mxu0 0
  %1714 = vmatpush2.bf16.msra.mxu0 0
  %1715 = vmatprep.subr.bf16.mxu0 0
  %1716 = vmatpush2.bf16.msra.mxu0 0
  %1717 = vmatprep.subr.bf16.mxu0 0
  %1718 = vmatpush2.bf16.msra.mxu0 0
  %1719 = vmatprep.mubr.bf16.mxu0 0
  %1720 = vmatmul.mubr.bf16.gmra.mxu0 %v1682
  %v1721 = vpop.f32.mrf.mxu0
  %v1722 = vadd.f32 0.0, %v1721
  %v1723 = vpop.f32.mrf.mxu0
  %v1724 = vpop.f32.mrf.mxu0
  %v1725 = vpop.f32.mrf.mxu0
  %1726 = vdwg.mxu0
  %v1727 = vadd.f32 %v1622, %v1722
  %v1728 = vld [vmem:[%s5] sm:$0xff]
  %1730 = vset.pattern.permute.xlu0 0
  %1731 = vperm.xlu0 %1730, %v1728
  %v1732 = vpop.permute.xlu0 %1731
  %v1734 = vadd.f32 %v1727, %v1732
  %v1735 = vld [vmem:[%s6] sm:$0xff]
  %v1736 = vld [vmem:[%s7] sm:$0xff]
  %1737 = vadd.xlane.f32.xlu0 %v1734
  %v1738 = vpop.xlane.xlu0 %1737
  %v1739 = vrcp.pop 128.0
  %v1740 = vmul.f32 %v1738, %v1739
  %v1741 = vsub.f32 %v1734, %v1740
  %v1742 = vmul.f32 %v1741, %v1741
  %1743 = vadd.xlane.f32.xlu0 %v1742
  %v1744 = vpop.xlane.xlu0 %1743
  %v1745 = vmul.f32 %v1744, %v1739
  %v1746 = vadd.f32 %v1745, 1e-05
  %v1747 = vrsqrt.pop %v1746
  %v1748 = vmul.f32 %v1741, %v1747
  %1750 = vset.pattern.permute.xlu0 0
  %1751 = vperm.xlu0 %1750, %v1735
  %v1752 = vpop.permute.xlu0 %1751
  %v1754 = vmul.f32 %v1748, %v1752
  %1756 = vset.pattern.permute.xlu0 0
  %1757 = vperm.xlu0 %1756, %v1736
  %v1758 = vpop.permute.xlu0 %1757
  %v1760 = vadd.f32 %v1754, %v1758
  %v1761 = vmax.f32 %v1760, 0.0
  %1762 = vst [vmem:[%s8] sm:$0xff] %v1761
  // Predicated region
  $region34: #{db_downsample_forward.3} parent=0 // pred_check
    _
  $region35: #{db_downsample_forward.3} parent=0 // pred_check_branch
    %1764 = sbr.rel (0) target = $region37
  $region36: #{db_downsample_forward.3} parent=0 // pred_region
    _
  $region37: #{db_downsample_forward.3} parent=0 // pred_fallthru
    _
  // Predicated region
  $region38: #{db_downsample_forward.3} parent=0 // pred_check
    _
  $region39: #{db_downsample_forward.3} parent=0 // pred_check_branch
    %1766 = sbr.rel (0) target = $region41
  $region40: #{db_downsample_forward.3} parent=0 // pred_region
    _
  $region41: #{db_downsample_forward.3} parent=0 // pred_fallthru
    _
  // Predicated region
  $region42: #{db_downsample_forward.3} parent=0 // pred_check
    _
  $region43: #{db_downsample_forward.3} parent=0 // pred_check_branch
    %1768 = sbr.rel (0) target = $region45
  $region44: #{db_downsample_forward.3} parent=0 // pred_region
    _
  $region45: #{db_downsample_forward.3} parent=0 // pred_fallthru
    _
  // Predicated region
  $region46: #{db_downsample_forward.3} parent=0 // pred_check
    _
  $region47: #{db_downsample_forward.3} parent=0 // pred_check_branch
    %1770 = sbr.rel (0) target = $region49
  $region48: #{db_downsample_forward.3} parent=0 // pred_region
    _
  $region49: #{db_downsample_forward.3} parent=0 // pred_fallthru
    _

// kernel: db_downsample_forward.4
$region0: #{db_downsample_forward.4}
  #allocation0 [shape = 'u32[]', space=smem, size = 0x4, offset = 0x4, fixed_abs, tag = 'smem constant byte address 0x4 - core index']
  #allocation1 [shape = 'u32[144,128]{1,0:T(1,128)}', space=vmem, size = 0x12000, scoped, tag = 'internal scratch']
  %s0 = inlined_call_operand.vmem [shape: bf16[9,8,128], index: 0, kind: input, shape index: {}]
  %s1 = inlined_call_operand.vmem [shape: bf16[9,32,8], index: 1, kind: input, shape index: {}]
  %s2 = inlined_call_operand.vmem [shape: f32[32,1], index: 2, kind: input, shape index: {}]
  %s3 = inlined_call_operand.vmem [shape: f32[8,1], index: 3, kind: input, shape index: {}]
  %s4 = inlined_call_operand.vmem [shape: f32[8,1], index: 4, kind: input, shape index: {}]
  %s5 = inlined_call_operand.vmem [shape: f32[4,8,128], index: 5, kind: input, shape index: {}]
  %s6 = inlined_call_operand.vmem [shape: bf16[4,8,128], index: 6, kind: output, shape index: {}]
  %s7 = sld [smem:[#allocation0]]
  $region34: #{db_downsample_forward.4} parent=0
    _
  %s9 = ssub.s32 1, %s7
  %s10 = scalar_select 0, %s9, %s7
  // Predicated region
  $region2: #{db_downsample_forward.4} parent=0 // pred_check
    _
  $region3: #{db_downsample_forward.4} parent=0 // pred_check_branch
    %12 = sbr.rel (0) target = $region5
  $region4: #{db_downsample_forward.4} parent=0 // pred_region
    _
  $region5: #{db_downsample_forward.4} parent=0 // pred_fallthru
    _
  // Predicated region
  $region6: #{db_downsample_forward.4} parent=0 // pred_check
    _
  $region7: #{db_downsample_forward.4} parent=0 // pred_check_branch
    %14 = sbr.rel (0) target = $region9
  $region8: #{db_downsample_forward.4} parent=0 // pred_region
    _
  $region9: #{db_downsample_forward.4} parent=0 // pred_fallthru
    _
  // Predicated region
  $region10: #{db_downsample_forward.4} parent=0 // pred_check
    _
  $region11: #{db_downsample_forward.4} parent=0 // pred_check_branch
    %16 = sbr.rel (0) target = $region13
  $region12: #{db_downsample_forward.4} parent=0 // pred_region
    _
  $region13: #{db_downsample_forward.4} parent=0 // pred_fallthru
    _
  // Predicated region
  $region14: #{db_downsample_forward.4} parent=0 // pred_check
    _
  $region15: #{db_downsample_forward.4} parent=0 // pred_check_branch
    %18 = sbr.rel (0) target = $region17
  $region16: #{db_downsample_forward.4} parent=0 // pred_region
    _
  $region17: #{db_downsample_forward.4} parent=0 // pred_fallthru
    _
  // Predicated region
  $region18: #{db_downsample_forward.4} parent=0 // pred_check
    _
  $region19: #{db_downsample_forward.4} parent=0 // pred_check_branch
    %20 = sbr.rel (0) target = $region21
  $region20: #{db_downsample_forward.4} parent=0 // pred_region
    _
  $region21: #{db_downsample_forward.4} parent=0 // pred_fallthru
    _
  // Predicated region
  $region22: #{db_downsample_forward.4} parent=0 // pred_check
    _
  $region23: #{db_downsample_forward.4} parent=0 // pred_check_branch
    %22 = sbr.rel (0) target = $region25
  $region24: #{db_downsample_forward.4} parent=0 // pred_region
    _
  $region25: #{db_downsample_forward.4} parent=0 // pred_fallthru
    _
  %v24 = vld [vmem:[%s1] sm:$0xf]
  %v25 = vld [vmem:[%s1 + $0x4] sm:$0xf]
  %v26 = vld [vmem:[%s1 + $0x8] sm:$0xf]
  %v27 = vld [vmem:[%s1 + $0xc] sm:$0xf]
  %v28 = vld [vmem:[%s0] sm:$0xf]
  %s29 = scalar_lea.vmem %s1, 16
  %v30 = vld [vmem:[%s29] sm:$0xf]
  %v31 = vld [vmem:[%s29 + $0x4] sm:$0xf]
  %v32 = vld [vmem:[%s29 + $0x8] sm:$0xf]
  %v33 = vld [vmem:[%s29 + $0xc] sm:$0xf]
  %s34 = scalar_lea.vmem %s0, 4
  %v35 = vld [vmem:[%s34] sm:$0xf]
  %v40 = vunpack.c.l.b16 %v30
  %v41 = vunpack.c.l.b16 %v31
  %v42 = vunpack.c.l.b16 %v32
  %v43 = vunpack.c.l.b16 %v33
  %v44 = vpack.c.b16 %v41, %v40
  %v45 = vpack.c.b16 %v43, %v42
  %vm46 = vcmask 64512
  %v48 = vsel %vm46, %v44, 0
  %v51 = vsel %vm46, %v45, 0
  %vm53 = vcmask 1043456
  %v55 = vsel %vm53, %v35, 0
  %57 = vmatprep.subr.bf16.mxu0 0
  %58 = vmatpush1.bf16.msra.mxu0 0
  %59 = vmatprep.subr.bf16.mxu0 0
  %60 = vmatpush1.bf16.msra.mxu0 0
  %61 = vmatprep.subr.bf16.mxu0 0
  %62 = vmatpush1.bf16.msra.mxu0 0
  %63 = vmatprep.subr.bf16.mxu0 0
  %64 = vmatpush1.bf16.msra.mxu0 0
  %65 = vmatprep.subr.bf16.mxu0 0
  %66 = vmatpush1.bf16.msra.mxu0 0
  %67 = vmatprep.subr.bf16.mxu0 0
  %68 = vmatpush1.bf16.msra.mxu0 0
  %69 = vmatprep.subr.bf16.mxu0 0
  %70 = vmatpush1.bf16.msra.mxu0 0
  %71 = vmatprep.subr.bf16.mxu0 0
  %72 = vmatpush1.bf16.msra.mxu0 %v55
  %73 = vmatprep.subr.bf16.mxu0 0
  %74 = vmatpush2.bf16.msra.mxu0 0
  %75 = vmatprep.subr.bf16.mxu0 0
  %76 = vmatpush2.bf16.msra.mxu0 0
  %77 = vmatprep.subr.bf16.mxu0 0
  %78 = vmatpush2.bf16.msra.mxu0 0
  %79 = vmatprep.subr.bf16.mxu0 0
  %80 = vmatpush2.bf16.msra.mxu0 0
  %81 = vmatprep.subr.bf16.mxu0 0
  %82 = vmatpush2.bf16.msra.mxu0 0
  %83 = vmatprep.subr.bf16.mxu0 0
  %84 = vmatpush2.bf16.msra.mxu0 0
  %85 = vmatprep.subr.bf16.mxu0 0
  %86 = vmatpush2.bf16.msra.mxu0 0
  %87 = vmatprep.subr.bf16.mxu0 0
  %88 = vmatpush2.bf16.msra.mxu0 0
  %89 = vmatprep.mubr.bf16.mxu0 0
  %90 = vmatmul.mubr.bf16.gmra.mxu0 %v48
  %v91 = vpop.f32.mrf.mxu0
  %v92 = vadd.f32 0.0, %v91
  %v93 = vpop.f32.mrf.mxu0
  %v94 = vpop.f32.mrf.mxu0
  %v95 = vadd.f32 0.0, %v94
  %v96 = vpop.f32.mrf.mxu0
  %97 = vmatprep.mubr.bf16.mxu0 0
  %98 = vmatmul.mubr.bf16.gmra.mxu0 %v51
  %v99 = vpop.f32.mrf.mxu0
  %v100 = vadd.f32 0.0, %v99
  %v101 = vpop.f32.mrf.mxu0
  %v102 = vpop.f32.mrf.mxu0
  %v103 = vadd.f32 0.0, %v102
  %v104 = vpop.f32.mrf.mxu0
  %105 = vdwg.mxu0
  %v110 = vunpack.c.l.b16 %v24
  %v111 = vunpack.c.l.b16 %v25
  %v112 = vunpack.c.l.b16 %v26
  %v113 = vunpack.c.l.b16 %v27
  %v114 = vpack.c.b16 %v111, %v110
  %v115 = vpack.c.b16 %v113, %v112
  %v117 = vsel %vm46, %v114, 0
  %v120 = vsel %vm46, %v115, 0
  %v123 = vsel %vm53, %v28, 0
  %125 = vmatprep.subr.bf16.mxu0 0
  %126 = vmatpush1.bf16.msra.mxu0 0
  %127 = vmatprep.subr.bf16.mxu0 0
  %128 = vmatpush1.bf16.msra.mxu0 0
  %129 = vmatprep.subr.bf16.mxu0 0
  %130 = vmatpush1.bf16.msra.mxu0 0
  %131 = vmatprep.subr.bf16.mxu0 0
  %132 = vmatpush1.bf16.msra.mxu0 0
  %133 = vmatprep.subr.bf16.mxu0 0
  %134 = vmatpush1.bf16.msra.mxu0 0
  %135 = vmatprep.subr.bf16.mxu0 0
  %136 = vmatpush1.bf16.msra.mxu0 0
  %137 = vmatprep.subr.bf16.mxu0 0
  %138 = vmatpush1.bf16.msra.mxu0 0
  %139 = vmatprep.subr.bf16.mxu0 0
  %140 = vmatpush1.bf16.msra.mxu0 %v123
  %141 = vmatprep.subr.bf16.mxu0 0
  %142 = vmatpush2.bf16.msra.mxu0 0
  %143 = vmatprep.subr.bf16.mxu0 0
  %144 = vmatpush2.bf16.msra.mxu0 0
  %145 = vmatprep.subr.bf16.mxu0 0
  %146 = vmatpush2.bf16.msra.mxu0 0
  %147 = vmatprep.subr.bf16.mxu0 0
  %148 = vmatpush2.bf16.msra.mxu0 0
  %149 = vmatprep.subr.bf16.mxu0 0
  %150 = vmatpush2.bf16.msra.mxu0 0
  %151 = vmatprep.subr.bf16.mxu0 0
  %152 = vmatpush2.bf16.msra.mxu0 0
  %153 = vmatprep.subr.bf16.mxu0 0
  %154 = vmatpush2.bf16.msra.mxu0 0
  %155 = vmatprep.subr.bf16.mxu0 0
  %156 = vmatpush2.bf16.msra.mxu0 0
  %157 = vmatprep.mubr.bf16.mxu0 0
  %158 = vmatmul.mubr.bf16.gmra.mxu0 %v117
  %v159 = vpop.f32.mrf.mxu0
  %v160 = vadd.f32 %v92, %v159
  %v161 = vpop.f32.mrf.mxu0
  %v162 = vpop.f32.mrf.mxu0
  %v163 = vadd.f32 %v95, %v162
  %v164 = vpop.f32.mrf.mxu0
  %165 = vmatprep.mubr.bf16.mxu0 0
  %166 = vmatmul.mubr.bf16.gmra.mxu0 %v120
  %v167 = vpop.f32.mrf.mxu0
  %v168 = vadd.f32 %v100, %v167
  %v169 = vpop.f32.mrf.mxu0
  %v170 = vpop.f32.mrf.mxu0
  %v171 = vadd.f32 %v103, %v170
  %v172 = vpop.f32.mrf.mxu0
  %173 = vdwg.mxu0
  %s174 = scalar_lea.vmem %s1, 32
  %v175 = vld [vmem:[%s174] sm:$0xf]
  %v176 = vld [vmem:[%s174 + $0x4] sm:$0xf]
  %v177 = vld [vmem:[%s174 + $0x8] sm:$0xf]
  %v178 = vld [vmem:[%s174 + $0xc] sm:$0xf]
  %s179 = scalar_lea.vmem %s0, 8
  %v180 = vld [vmem:[%s179] sm:$0xf]
  %v185 = vunpack.c.l.b16 %v175
  %v186 = vunpack.c.l.b16 %v176
  %v187 = vunpack.c.l.b16 %v177
  %v188 = vunpack.c.l.b16 %v178
  %v189 = vpack.c.b16 %v186, %v185
  %v190 = vpack.c.b16 %v188, %v187
  %v192 = vsel %vm46, %v189, 0
  %v195 = vsel %vm46, %v190, 0
  %v198 = vsel %vm53, %v180, 0
  %200 = vmatprep.subr.bf16.mxu0 0
  %201 = vmatpush1.bf16.msra.mxu0 0
  %202 = vmatprep.subr.bf16.mxu0 0
  %203 = vmatpush1.bf16.msra.mxu0 0
  %204 = vmatprep.subr.bf16.mxu0 0
  %205 = vmatpush1.bf16.msra.mxu0 0
  %206 = vmatprep.subr.bf16.mxu0 0
  %207 = vmatpush1.bf16.msra.mxu0 0
  %208 = vmatprep.subr.bf16.mxu0 0
  %209 = vmatpush1.bf16.msra.mxu0 0
  %210 = vmatprep.subr.bf16.mxu0 0
  %211 = vmatpush1.bf16.msra.mxu0 0
  %212 = vmatprep.subr.bf16.mxu0 0
  %213 = vmatpush1.bf16.msra.mxu0 0
  %214 = vmatprep.subr.bf16.mxu0 0
  %215 = vmatpush1.bf16.msra.mxu0 %v198
  %216 = vmatprep.subr.bf16.mxu0 0
  %217 = vmatpush2.bf16.msra.mxu0 0
  %218 = vmatprep.subr.bf16.mxu0 0
  %219 = vmatpush2.bf16.msra.mxu0 0
  %220 = vmatprep.subr.bf16.mxu0 0
  %221 = vmatpush2.bf16.msra.mxu0 0
  %222 = vmatprep.subr.bf16.mxu0 0
  %223 = vmatpush2.bf16.msra.mxu0 0
  %224 = vmatprep.subr.bf16.mxu0 0
  %225 = vmatpush2.bf16.msra.mxu0 0
  %226 = vmatprep.subr.bf16.mxu0 0
  %227 = vmatpush2.bf16.msra.mxu0 0
  %228 = vmatprep.subr.bf16.mxu0 0
  %229 = vmatpush2.bf16.msra.mxu0 0
  %230 = vmatprep.subr.bf16.mxu0 0
  %231 = vmatpush2.bf16.msra.mxu0 0
  %232 = vmatprep.mubr.bf16.mxu0 0
  %233 = vmatmul.mubr.bf16.gmra.mxu0 %v192
  %v234 = vpop.f32.mrf.mxu0
  %v235 = vadd.f32 0.0, %v234
  %v236 = vpop.f32.mrf.mxu0
  %v237 = vpop.f32.mrf.mxu0
  %v238 = vadd.f32 0.0, %v237
  %v239 = vpop.f32.mrf.mxu0
  %240 = vmatprep.mubr.bf16.mxu0 0
  %241 = vmatmul.mubr.bf16.gmra.mxu0 %v195
  %v242 = vpop.f32.mrf.mxu0
  %v243 = vadd.f32 0.0, %v242
  %v244 = vpop.f32.mrf.mxu0
  %v245 = vpop.f32.mrf.mxu0
  %v246 = vadd.f32 0.0, %v245
  %v247 = vpop.f32.mrf.mxu0
  %248 = vdwg.mxu0
  %v249 = vadd.f32 %v160, %v235
  %v250 = vadd.f32 %v163, %v238
  %v251 = vadd.f32 %v168, %v243
  %v252 = vadd.f32 %v171, %v246
  %s253 = scalar_lea.vmem %s1, 48
  %v254 = vld [vmem:[%s253] sm:$0xf]
  %v255 = vld [vmem:[%s253 + $0x4] sm:$0xf]
  %v256 = vld [vmem:[%s253 + $0x8] sm:$0xf]
  %v257 = vld [vmem:[%s253 + $0xc] sm:$0xf]
  %s258 = scalar_lea.vmem %s0, 12
  %v259 = vld [vmem:[%s258] sm:$0xf]
  %v264 = vunpack.c.l.b16 %v254
  %v265 = vunpack.c.l.b16 %v255
  %v266 = vunpack.c.l.b16 %v256
  %v267 = vunpack.c.l.b16 %v257
  %v268 = vpack.c.b16 %v265, %v264
  %v269 = vpack.c.b16 %v267, %v266
  %v271 = vsel %vm46, %v268, 0
  %v274 = vsel %vm46, %v269, 0
  %v277 = vsel %vm53, %v259, 0
  %279 = vmatprep.subr.bf16.mxu0 0
  %280 = vmatpush1.bf16.msra.mxu0 0
  %281 = vmatprep.subr.bf16.mxu0 0
  %282 = vmatpush1.bf16.msra.mxu0 0
  %283 = vmatprep.subr.bf16.mxu0 0
  %284 = vmatpush1.bf16.msra.mxu0 0
  %285 = vmatprep.subr.bf16.mxu0 0
  %286 = vmatpush1.bf16.msra.mxu0 0
  %287 = vmatprep.subr.bf16.mxu0 0
  %288 = vmatpush1.bf16.msra.mxu0 0
  %289 = vmatprep.subr.bf16.mxu0 0
  %290 = vmatpush1.bf16.msra.mxu0 0
  %291 = vmatprep.subr.bf16.mxu0 0
  %292 = vmatpush1.bf16.msra.mxu0 0
  %293 = vmatprep.subr.bf16.mxu0 0
  %294 = vmatpush1.bf16.msra.mxu0 %v277
  %295 = vmatprep.subr.bf16.mxu0 0
  %296 = vmatpush2.bf16.msra.mxu0 0
  %297 = vmatprep.subr.bf16.mxu0 0
  %298 = vmatpush2.bf16.msra.mxu0 0
  %299 = vmatprep.subr.bf16.mxu0 0
  %300 = vmatpush2.bf16.msra.mxu0 0
  %301 = vmatprep.subr.bf16.mxu0 0
  %302 = vmatpush2.bf16.msra.mxu0 0
  %303 = vmatprep.subr.bf16.mxu0 0
  %304 = vmatpush2.bf16.msra.mxu0 0
  %305 = vmatprep.subr.bf16.mxu0 0
  %306 = vmatpush2.bf16.msra.mxu0 0
  %307 = vmatprep.subr.bf16.mxu0 0
  %308 = vmatpush2.bf16.msra.mxu0 0
  %309 = vmatprep.subr.bf16.mxu0 0
  %310 = vmatpush2.bf16.msra.mxu0 0
  %311 = vmatprep.mubr.bf16.mxu0 0
  %312 = vmatmul.mubr.bf16.gmra.mxu0 %v271
  %v313 = vpop.f32.mrf.mxu0
  %v314 = vadd.f32 0.0, %v313
  %v315 = vpop.f32.mrf.mxu0
  %v316 = vpop.f32.mrf.mxu0
  %v317 = vadd.f32 0.0, %v316
  %v318 = vpop.f32.mrf.mxu0
  %319 = vmatprep.mubr.bf16.mxu0 0
  %320 = vmatmul.mubr.bf16.gmra.mxu0 %v274
  %v321 = vpop.f32.mrf.mxu0
  %v322 = vadd.f32 0.0, %v321
  %v323 = vpop.f32.mrf.mxu0
  %v324 = vpop.f32.mrf.mxu0
  %v325 = vadd.f32 0.0, %v324
  %v326 = vpop.f32.mrf.mxu0
  %327 = vdwg.mxu0
  %v328 = vadd.f32 %v249, %v314
  %v329 = vadd.f32 %v250, %v317
  %v330 = vadd.f32 %v251, %v322
  %v331 = vadd.f32 %v252, %v325
  %s332 = scalar_lea.vmem %s1, 64
  %v333 = vld [vmem:[%s332] sm:$0xf]
  %v334 = vld [vmem:[%s332 + $0x4] sm:$0xf]
  %v335 = vld [vmem:[%s332 + $0x8] sm:$0xf]
  %v336 = vld [vmem:[%s332 + $0xc] sm:$0xf]
  %s337 = scalar_lea.vmem %s0, 16
  %v338 = vld [vmem:[%s337] sm:$0xf]
  %v343 = vunpack.c.l.b16 %v333
  %v344 = vunpack.c.l.b16 %v334
  %v345 = vunpack.c.l.b16 %v335
  %v346 = vunpack.c.l.b16 %v336
  %v347 = vpack.c.b16 %v344, %v343
  %v348 = vpack.c.b16 %v346, %v345
  %v350 = vsel %vm46, %v347, 0
  %v353 = vsel %vm46, %v348, 0
  %v356 = vsel %vm53, %v338, 0
  %358 = vmatprep.subr.bf16.mxu0 0
  %359 = vmatpush1.bf16.msra.mxu0 0
  %360 = vmatprep.subr.bf16.mxu0 0
  %361 = vmatpush1.bf16.msra.mxu0 0
  %362 = vmatprep.subr.bf16.mxu0 0
  %363 = vmatpush1.bf16.msra.mxu0 0
  %364 = vmatprep.subr.bf16.mxu0 0
  %365 = vmatpush1.bf16.msra.mxu0 0
  %366 = vmatprep.subr.bf16.mxu0 0
  %367 = vmatpush1.bf16.msra.mxu0 0
  %368 = vmatprep.subr.bf16.mxu0 0
  %369 = vmatpush1.bf16.msra.mxu0 0
  %370 = vmatprep.subr.bf16.mxu0 0
  %371 = vmatpush1.bf16.msra.mxu0 0
  %372 = vmatprep.subr.bf16.mxu0 0
  %373 = vmatpush1.bf16.msra.mxu0 %v356
  %374 = vmatprep.subr.bf16.mxu0 0
  %375 = vmatpush2.bf16.msra.mxu0 0
  %376 = vmatprep.subr.bf16.mxu0 0
  %377 = vmatpush2.bf16.msra.mxu0 0
  %378 = vmatprep.subr.bf16.mxu0 0
  %379 = vmatpush2.bf16.msra.mxu0 0
  %380 = vmatprep.subr.bf16.mxu0 0
  %381 = vmatpush2.bf16.msra.mxu0 0
  %382 = vmatprep.subr.bf16.mxu0 0
  %383 = vmatpush2.bf16.msra.mxu0 0
  %384 = vmatprep.subr.bf16.mxu0 0
  %385 = vmatpush2.bf16.msra.mxu0 0
  %386 = vmatprep.subr.bf16.mxu0 0
  %387 = vmatpush2.bf16.msra.mxu0 0
  %388 = vmatprep.subr.bf16.mxu0 0
  %389 = vmatpush2.bf16.msra.mxu0 0
  %390 = vmatprep.mubr.bf16.mxu0 0
  %391 = vmatmul.mubr.bf16.gmra.mxu0 %v350
  %v392 = vpop.f32.mrf.mxu0
  %v393 = vadd.f32 0.0, %v392
  %v394 = vpop.f32.mrf.mxu0
  %v395 = vpop.f32.mrf.mxu0
  %v396 = vadd.f32 0.0, %v395
  %v397 = vpop.f32.mrf.mxu0
  %398 = vmatprep.mubr.bf16.mxu0 0
  %399 = vmatmul.mubr.bf16.gmra.mxu0 %v353
  %v400 = vpop.f32.mrf.mxu0
  %v401 = vadd.f32 0.0, %v400
  %v402 = vpop.f32.mrf.mxu0
  %v403 = vpop.f32.mrf.mxu0
  %v404 = vadd.f32 0.0, %v403
  %v405 = vpop.f32.mrf.mxu0
  %406 = vdwg.mxu0
  %v407 = vadd.f32 %v328, %v393
  %v408 = vadd.f32 %v329, %v396
  %v409 = vadd.f32 %v330, %v401
  %v410 = vadd.f32 %v331, %v404
  %s411 = scalar_lea.vmem %s1, 80
  %v412 = vld [vmem:[%s411] sm:$0xf]
  %v413 = vld [vmem:[%s411 + $0x4] sm:$0xf]
  %v414 = vld [vmem:[%s411 + $0x8] sm:$0xf]
  %v415 = vld [vmem:[%s411 + $0xc] sm:$0xf]
  %s416 = scalar_lea.vmem %s0, 20
  %v417 = vld [vmem:[%s416] sm:$0xf]
  %v422 = vunpack.c.l.b16 %v412
  %v423 = vunpack.c.l.b16 %v413
  %v424 = vunpack.c.l.b16 %v414
  %v425 = vunpack.c.l.b16 %v415
  %v426 = vpack.c.b16 %v423, %v422
  %v427 = vpack.c.b16 %v425, %v424
  %v429 = vsel %vm46, %v426, 0
  %v432 = vsel %vm46, %v427, 0
  %v435 = vsel %vm53, %v417, 0
  %437 = vmatprep.subr.bf16.mxu0 0
  %438 = vmatpush1.bf16.msra.mxu0 0
  %439 = vmatprep.subr.bf16.mxu0 0
  %440 = vmatpush1.bf16.msra.mxu0 0
  %441 = vmatprep.subr.bf16.mxu0 0
  %442 = vmatpush1.bf16.msra.mxu0 0
  %443 = vmatprep.subr.bf16.mxu0 0
  %444 = vmatpush1.bf16.msra.mxu0 0
  %445 = vmatprep.subr.bf16.mxu0 0
  %446 = vmatpush1.bf16.msra.mxu0 0
  %447 = vmatprep.subr.bf16.mxu0 0
  %448 = vmatpush1.bf16.msra.mxu0 0
  %449 = vmatprep.subr.bf16.mxu0 0
  %450 = vmatpush1.bf16.msra.mxu0 0
  %451 = vmatprep.subr.bf16.mxu0 0
  %452 = vmatpush1.bf16.msra.mxu0 %v435
  %453 = vmatprep.subr.bf16.mxu0 0
  %454 = vmatpush2.bf16.msra.mxu0 0
  %455 = vmatprep.subr.bf16.mxu0 0
  %456 = vmatpush2.bf16.msra.mxu0 0
  %457 = vmatprep.subr.bf16.mxu0 0
  %458 = vmatpush2.bf16.msra.mxu0 0
  %459 = vmatprep.subr.bf16.mxu0 0
  %460 = vmatpush2.bf16.msra.mxu0 0
  %461 = vmatprep.subr.bf16.mxu0 0
  %462 = vmatpush2.bf16.msra.mxu0 0
  %463 = vmatprep.subr.bf16.mxu0 0
  %464 = vmatpush2.bf16.msra.mxu0 0
  %465 = vmatprep.subr.bf16.mxu0 0
  %466 = vmatpush2.bf16.msra.mxu0 0
  %467 = vmatprep.subr.bf16.mxu0 0
  %468 = vmatpush2.bf16.msra.mxu0 0
  %469 = vmatprep.mubr.bf16.mxu0 0
  %470 = vmatmul.mubr.bf16.gmra.mxu0 %v429
  %v471 = vpop.f32.mrf.mxu0
  %v472 = vadd.f32 0.0, %v471
  %v473 = vpop.f32.mrf.mxu0
  %v474 = vpop.f32.mrf.mxu0
  %v475 = vadd.f32 0.0, %v474
  %v476 = vpop.f32.mrf.mxu0
  %477 = vmatprep.mubr.bf16.mxu0 0
  %478 = vmatmul.mubr.bf16.gmra.mxu0 %v432
  %v479 = vpop.f32.mrf.mxu0
  %v480 = vadd.f32 0.0, %v479
  %v481 = vpop.f32.mrf.mxu0
  %v482 = vpop.f32.mrf.mxu0
  %v483 = vadd.f32 0.0, %v482
  %v484 = vpop.f32.mrf.mxu0
  %485 = vdwg.mxu0
  %v486 = vadd.f32 %v407, %v472
  %v487 = vadd.f32 %v408, %v475
  %v488 = vadd.f32 %v409, %v480
  %v489 = vadd.f32 %v410, %v483
  %s490 = scalar_lea.vmem %s1, 96
  %v491 = vld [vmem:[%s490] sm:$0xf]
  %v492 = vld [vmem:[%s490 + $0x4] sm:$0xf]
  %v493 = vld [vmem:[%s490 + $0x8] sm:$0xf]
  %v494 = vld [vmem:[%s490 + $0xc] sm:$0xf]
  %s495 = scalar_lea.vmem %s0, 24
  %v496 = vld [vmem:[%s495] sm:$0xf]
  %v501 = vunpack.c.l.b16 %v491
  %v502 = vunpack.c.l.b16 %v492
  %v503 = vunpack.c.l.b16 %v493
  %v504 = vunpack.c.l.b16 %v494
  %v505 = vpack.c.b16 %v502, %v501
  %v506 = vpack.c.b16 %v504, %v503
  %v508 = vsel %vm46, %v505, 0
  %v511 = vsel %vm46, %v506, 0
  %v514 = vsel %vm53, %v496, 0
  %516 = vmatprep.subr.bf16.mxu0 0
  %517 = vmatpush1.bf16.msra.mxu0 0
  %518 = vmatprep.subr.bf16.mxu0 0
  %519 = vmatpush1.bf16.msra.mxu0 0
  %520 = vmatprep.subr.bf16.mxu0 0
  %521 = vmatpush1.bf16.msra.mxu0 0
  %522 = vmatprep.subr.bf16.mxu0 0
  %523 = vmatpush1.bf16.msra.mxu0 0
  %524 = vmatprep.subr.bf16.mxu0 0
  %525 = vmatpush1.bf16.msra.mxu0 0
  %526 = vmatprep.subr.bf16.mxu0 0
  %527 = vmatpush1.bf16.msra.mxu0 0
  %528 = vmatprep.subr.bf16.mxu0 0
  %529 = vmatpush1.bf16.msra.mxu0 0
  %530 = vmatprep.subr.bf16.mxu0 0
  %531 = vmatpush1.bf16.msra.mxu0 %v514
  %532 = vmatprep.subr.bf16.mxu0 0
  %533 = vmatpush2.bf16.msra.mxu0 0
  %534 = vmatprep.subr.bf16.mxu0 0
  %535 = vmatpush2.bf16.msra.mxu0 0
  %536 = vmatprep.subr.bf16.mxu0 0
  %537 = vmatpush2.bf16.msra.mxu0 0
  %538 = vmatprep.subr.bf16.mxu0 0
  %539 = vmatpush2.bf16.msra.mxu0 0
  %540 = vmatprep.subr.bf16.mxu0 0
  %541 = vmatpush2.bf16.msra.mxu0 0
  %542 = vmatprep.subr.bf16.mxu0 0
  %543 = vmatpush2.bf16.msra.mxu0 0
  %544 = vmatprep.subr.bf16.mxu0 0
  %545 = vmatpush2.bf16.msra.mxu0 0
  %546 = vmatprep.subr.bf16.mxu0 0
  %547 = vmatpush2.bf16.msra.mxu0 0
  %548 = vmatprep.mubr.bf16.mxu0 0
  %549 = vmatmul.mubr.bf16.gmra.mxu0 %v508
  %v550 = vpop.f32.mrf.mxu0
  %v551 = vadd.f32 0.0, %v550
  %v552 = vpop.f32.mrf.mxu0
  %v553 = vpop.f32.mrf.mxu0
  %v554 = vadd.f32 0.0, %v553
  %v555 = vpop.f32.mrf.mxu0
  %556 = vmatprep.mubr.bf16.mxu0 0
  %557 = vmatmul.mubr.bf16.gmra.mxu0 %v511
  %v558 = vpop.f32.mrf.mxu0
  %v559 = vadd.f32 0.0, %v558
  %v560 = vpop.f32.mrf.mxu0
  %v561 = vpop.f32.mrf.mxu0
  %v562 = vadd.f32 0.0, %v561
  %v563 = vpop.f32.mrf.mxu0
  %564 = vdwg.mxu0
  %v565 = vadd.f32 %v486, %v551
  %v566 = vadd.f32 %v487, %v554
  %v567 = vadd.f32 %v488, %v559
  %v568 = vadd.f32 %v489, %v562
  %s569 = scalar_lea.vmem %s1, 112
  %v570 = vld [vmem:[%s569] sm:$0xf]
  %v571 = vld [vmem:[%s569 + $0x4] sm:$0xf]
  %v572 = vld [vmem:[%s569 + $0x8] sm:$0xf]
  %v573 = vld [vmem:[%s569 + $0xc] sm:$0xf]
  %s574 = scalar_lea.vmem %s0, 28
  %v575 = vld [vmem:[%s574] sm:$0xf]
  %v580 = vunpack.c.l.b16 %v570
  %v581 = vunpack.c.l.b16 %v571
  %v582 = vunpack.c.l.b16 %v572
  %v583 = vunpack.c.l.b16 %v573
  %v584 = vpack.c.b16 %v581, %v580
  %v585 = vpack.c.b16 %v583, %v582
  %v587 = vsel %vm46, %v584, 0
  %v590 = vsel %vm46, %v585, 0
  %v593 = vsel %vm53, %v575, 0
  %595 = vmatprep.subr.bf16.mxu0 0
  %596 = vmatpush1.bf16.msra.mxu0 0
  %597 = vmatprep.subr.bf16.mxu0 0
  %598 = vmatpush1.bf16.msra.mxu0 0
  %599 = vmatprep.subr.bf16.mxu0 0
  %600 = vmatpush1.bf16.msra.mxu0 0
  %601 = vmatprep.subr.bf16.mxu0 0
  %602 = vmatpush1.bf16.msra.mxu0 0
  %603 = vmatprep.subr.bf16.mxu0 0
  %604 = vmatpush1.bf16.msra.mxu0 0
  %605 = vmatprep.subr.bf16.mxu0 0
  %606 = vmatpush1.bf16.msra.mxu0 0
  %607 = vmatprep.subr.bf16.mxu0 0
  %608 = vmatpush1.bf16.msra.mxu0 0
  %609 = vmatprep.subr.bf16.mxu0 0
  %610 = vmatpush1.bf16.msra.mxu0 %v593
  %611 = vmatprep.subr.bf16.mxu0 0
  %612 = vmatpush2.bf16.msra.mxu0 0
  %613 = vmatprep.subr.bf16.mxu0 0
  %614 = vmatpush2.bf16.msra.mxu0 0
  %615 = vmatprep.subr.bf16.mxu0 0
  %616 = vmatpush2.bf16.msra.mxu0 0
  %617 = vmatprep.subr.bf16.mxu0 0
  %618 = vmatpush2.bf16.msra.mxu0 0
  %619 = vmatprep.subr.bf16.mxu0 0
  %620 = vmatpush2.bf16.msra.mxu0 0
  %621 = vmatprep.subr.bf16.mxu0 0
  %622 = vmatpush2.bf16.msra.mxu0 0
  %623 = vmatprep.subr.bf16.mxu0 0
  %624 = vmatpush2.bf16.msra.mxu0 0
  %625 = vmatprep.subr.bf16.mxu0 0
  %626 = vmatpush2.bf16.msra.mxu0 0
  %627 = vmatprep.mubr.bf16.mxu0 0
  %628 = vmatmul.mubr.bf16.gmra.mxu0 %v587
  %v629 = vpop.f32.mrf.mxu0
  %v630 = vadd.f32 0.0, %v629
  %v631 = vpop.f32.mrf.mxu0
  %v632 = vpop.f32.mrf.mxu0
  %v633 = vadd.f32 0.0, %v632
  %v634 = vpop.f32.mrf.mxu0
  %635 = vmatprep.mubr.bf16.mxu0 0
  %636 = vmatmul.mubr.bf16.gmra.mxu0 %v590
  %v637 = vpop.f32.mrf.mxu0
  %v638 = vadd.f32 0.0, %v637
  %v639 = vpop.f32.mrf.mxu0
  %v640 = vpop.f32.mrf.mxu0
  %v641 = vadd.f32 0.0, %v640
  %v642 = vpop.f32.mrf.mxu0
  %643 = vdwg.mxu0
  %v644 = vadd.f32 %v565, %v630
  %v645 = vadd.f32 %v566, %v633
  %v646 = vadd.f32 %v567, %v638
  %v647 = vadd.f32 %v568, %v641
  %s648 = scalar_lea.vmem %s1, 128
  %v649 = vld [vmem:[%s648] sm:$0xf]
  %v650 = vld [vmem:[%s648 + $0x4] sm:$0xf]
  %v651 = vld [vmem:[%s648 + $0x8] sm:$0xf]
  %v652 = vld [vmem:[%s648 + $0xc] sm:$0xf]
  %s653 = scalar_lea.vmem %s0, 32
  %v654 = vld [vmem:[%s653] sm:$0xf]
  %v659 = vunpack.c.l.b16 %v649
  %v660 = vunpack.c.l.b16 %v650
  %v661 = vunpack.c.l.b16 %v651
  %v662 = vunpack.c.l.b16 %v652
  %v663 = vpack.c.b16 %v660, %v659
  %v664 = vpack.c.b16 %v662, %v661
  %v666 = vsel %vm46, %v663, 0
  %v669 = vsel %vm46, %v664, 0
  %v672 = vsel %vm53, %v654, 0
  %674 = vmatprep.subr.bf16.mxu0 0
  %675 = vmatpush1.bf16.msra.mxu0 0
  %676 = vmatprep.subr.bf16.mxu0 0
  %677 = vmatpush1.bf16.msra.mxu0 0
  %678 = vmatprep.subr.bf16.mxu0 0
  %679 = vmatpush1.bf16.msra.mxu0 0
  %680 = vmatprep.subr.bf16.mxu0 0
  %681 = vmatpush1.bf16.msra.mxu0 0
  %682 = vmatprep.subr.bf16.mxu0 0
  %683 = vmatpush1.bf16.msra.mxu0 0
  %684 = vmatprep.subr.bf16.mxu0 0
  %685 = vmatpush1.bf16.msra.mxu0 0
  %686 = vmatprep.subr.bf16.mxu0 0
  %687 = vmatpush1.bf16.msra.mxu0 0
  %688 = vmatprep.subr.bf16.mxu0 0
  %689 = vmatpush1.bf16.msra.mxu0 %v672
  %690 = vmatprep.subr.bf16.mxu0 0
  %691 = vmatpush2.bf16.msra.mxu0 0
  %692 = vmatprep.subr.bf16.mxu0 0
  %693 = vmatpush2.bf16.msra.mxu0 0
  %694 = vmatprep.subr.bf16.mxu0 0
  %695 = vmatpush2.bf16.msra.mxu0 0
  %696 = vmatprep.subr.bf16.mxu0 0
  %697 = vmatpush2.bf16.msra.mxu0 0
  %698 = vmatprep.subr.bf16.mxu0 0
  %699 = vmatpush2.bf16.msra.mxu0 0
  %700 = vmatprep.subr.bf16.mxu0 0
  %701 = vmatpush2.bf16.msra.mxu0 0
  %702 = vmatprep.subr.bf16.mxu0 0
  %703 = vmatpush2.bf16.msra.mxu0 0
  %704 = vmatprep.subr.bf16.mxu0 0
  %705 = vmatpush2.bf16.msra.mxu0 0
  %706 = vmatprep.mubr.bf16.mxu0 0
  %707 = vmatmul.mubr.bf16.gmra.mxu0 %v666
  %v708 = vpop.f32.mrf.mxu0
  %v709 = vadd.f32 0.0, %v708
  %v710 = vpop.f32.mrf.mxu0
  %v711 = vpop.f32.mrf.mxu0
  %v712 = vadd.f32 0.0, %v711
  %v713 = vpop.f32.mrf.mxu0
  %714 = vmatprep.mubr.bf16.mxu0 0
  %715 = vmatmul.mubr.bf16.gmra.mxu0 %v669
  %v716 = vpop.f32.mrf.mxu0
  %v717 = vadd.f32 0.0, %v716
  %v718 = vpop.f32.mrf.mxu0
  %v719 = vpop.f32.mrf.mxu0
  %v720 = vadd.f32 0.0, %v719
  %v721 = vpop.f32.mrf.mxu0
  %722 = vdwg.mxu0
  %v723 = vadd.f32 %v644, %v709
  %v724 = vadd.f32 %v645, %v712
  %v725 = vadd.f32 %v646, %v717
  %v726 = vadd.f32 %v647, %v720
  %v727 = vld [vmem:[%s2] sm:$0xff]
  %v728 = vld [vmem:[%s2 + $0x8] sm:$0xff]
  %v729 = vld [vmem:[%s2 + $0x10] sm:$0xff]
  %v730 = vld [vmem:[%s2 + $0x18] sm:$0xff]
  %732 = vset.pattern.permute.xlu0 0
  %733 = vperm.xlu0 %732, %v727
  %v734 = vpop.permute.xlu0 %733
  %737 = vset.pattern.permute.xlu0 0
  %738 = vperm.xlu0 %737, %v728
  %v739 = vpop.permute.xlu0 %738
  %742 = vset.pattern.permute.xlu0 0
  %743 = vperm.xlu0 %742, %v729
  %v744 = vpop.permute.xlu0 %743
  %747 = vset.pattern.permute.xlu0 0
  %748 = vperm.xlu0 %747, %v730
  %v749 = vpop.permute.xlu0 %748
  %v751 = vadd.f32 %v723, %v734
  %v752 = vadd.f32 %v724, %v739
  %v753 = vadd.f32 %v725, %v744
  %v754 = vadd.f32 %v726, %v749
  %v755 = vadd.f32 %v751, %v752
  %v756 = vadd.f32 %v755, %v753
  %v757 = vadd.f32 %v756, %v754
  %758 = vadd.xlane.f32.xlu0 %v757
  %v759 = vpop.xlane.xlu0 %758
  %v760 = vrcp.pop 512.0
  %v761 = vmul.f32 %v759, %v760
  %v762 = vsub.f32 %v751, %v761
  %v763 = vsub.f32 %v752, %v761
  %v764 = vsub.f32 %v753, %v761
  %v765 = vsub.f32 %v754, %v761
  %v766 = vmul.f32 %v762, %v762
  %v767 = vmul.f32 %v763, %v763
  %v768 = vmul.f32 %v764, %v764
  %v769 = vmul.f32 %v765, %v765
  %v770 = vadd.f32 %v766, %v767
  %v771 = vadd.f32 %v770, %v768
  %v772 = vadd.f32 %v771, %v769
  %773 = vadd.xlane.f32.xlu0 %v772
  %v774 = vpop.xlane.xlu0 %773
  %v775 = vmul.f32 %v774, %v760
  %v776 = vadd.f32 %v775, 1e-05
  %v777 = vrsqrt.pop %v776
  %v778 = vmul.f32 %v762, %v777
  %v779 = vmul.f32 %v763, %v777
  %v780 = vmul.f32 %v764, %v777
  %v781 = vmul.f32 %v765, %v777
  %v782 = vld [vmem:[%s3] sm:$0xff]
  %784 = vset.pattern.permute.xlu0 0
  %785 = vperm.xlu0 %784, %v782
  %v786 = vpop.permute.xlu0 %785
  %v788 = vmul.f32 %v778, %v786
  %v789 = vmul.f32 %v779, %v786
  %v790 = vmul.f32 %v780, %v786
  %v791 = vmul.f32 %v781, %v786
  %v792 = vld [vmem:[%s4] sm:$0xff]
  %794 = vset.pattern.permute.xlu0 0
  %795 = vperm.xlu0 %794, %v792
  %v796 = vpop.permute.xlu0 %795
  %v798 = vadd.f32 %v788, %v796
  %v799 = vadd.f32 %v789, %v796
  %v800 = vadd.f32 %v790, %v796
  %v801 = vadd.f32 %v791, %v796
  %v802 = vmax.f32 %v798, 0.0
  %v803 = vmax.f32 %v799, 0.0
  %v804 = vmax.f32 %v800, 0.0
  %v805 = vmax.f32 %v801, 0.0
  %v806 = vld [vmem:[%s5] sm:$0xff]
  %v807 = vld [vmem:[%s5 + $0x8] sm:$0xff]
  %v808 = vld [vmem:[%s5 + $0x10] sm:$0xff]
  %v809 = vld [vmem:[%s5 + $0x18] sm:$0xff]
  %v810 = vsub.f32 %v802, %v806
  %v811 = vsub.f32 %v803, %v807
  %v812 = vsub.f32 %v804, %v808
  %v813 = vsub.f32 %v805, %v809
  %v814 = vpack.c.bf16 %v810, %v810
  %v815 = vpack.c.bf16 %v811, %v811
  %v816 = vpack.c.bf16 %v812, %v812
  %v817 = vpack.c.bf16 %v813, %v813
  %818 = vst [vmem:[%s6] sm:$0xf] %v814
  %819 = vst [vmem:[%s6 + $0x4] sm:$0xf] %v815
  %820 = vst [vmem:[%s6 + $0x8] sm:$0xf] %v816
  %821 = vst [vmem:[%s6 + $0xc] sm:$0xf] %v817
  // Predicated region
  $region26: #{db_downsample_forward.4} parent=0 // pred_check
    _
  $region27: #{db_downsample_forward.4} parent=0 // pred_check_branch
    %823 = sbr.rel (0) target = $region29
  $region28: #{db_downsample_forward.4} parent=0 // pred_region
    _
  $region29: #{db_downsample_forward.4} parent=0 // pred_fallthru
    _
  // Predicated region
  $region30: #{db_downsample_forward.4} parent=0 // pred_check
    _
  $region31: #{db_downsample_forward.4} parent=0 // pred_check_branch
    %825 = sbr.rel (0) target = $region33
  $region32: #{db_downsample_forward.4} parent=0 // pred_region
    _
  $region33: #{db_downsample_forward.4} parent=0 // pred_fallthru
    _

// kernel: db_downsample_forward.5
$region0: #{db_downsample_forward.5}
  #allocation0 [shape = 'u32[]', space=smem, size = 0x4, offset = 0x4, fixed_abs, tag = 'smem constant byte address 0x4 - core index']
  #allocation1 [shape = 'u32[144,128]{1,0:T(1,128)}', space=vmem, size = 0x12000, scoped, tag = 'internal scratch']
  %s0 = inlined_call_operand.vmem [shape: bf16[16,8,128], index: 0, kind: input, shape index: {}]
  %s1 = inlined_call_operand.vmem [shape: bf16[16,8,8], index: 1, kind: input, shape index: {}]
  %s2 = inlined_call_operand.vmem [shape: f32[8,1], index: 2, kind: input, shape index: {}]
  %s3 = inlined_call_operand.vmem [shape: f32[8,1], index: 3, kind: input, shape index: {}]
  %s4 = inlined_call_operand.vmem [shape: f32[8,1], index: 4, kind: input, shape index: {}]
  %s5 = inlined_call_operand.vmem [shape: f32[8,128], index: 5, kind: input, shape index: {}]
  %s6 = inlined_call_operand.vmem [shape: f32[8,128], index: 6, kind: output, shape index: {}]
  %s7 = sld [smem:[#allocation0]]
  $region34: #{db_downsample_forward.5} parent=0
    _
  %s9 = ssub.s32 1, %s7
  %s10 = scalar_select 0, %s9, %s7
  // Predicated region
  $region2: #{db_downsample_forward.5} parent=0 // pred_check
    _
  $region3: #{db_downsample_forward.5} parent=0 // pred_check_branch
    %12 = sbr.rel (0) target = $region5
  $region4: #{db_downsample_forward.5} parent=0 // pred_region
    _
  $region5: #{db_downsample_forward.5} parent=0 // pred_fallthru
    _
  // Predicated region
  $region6: #{db_downsample_forward.5} parent=0 // pred_check
    _
  $region7: #{db_downsample_forward.5} parent=0 // pred_check_branch
    %14 = sbr.rel (0) target = $region9
  $region8: #{db_downsample_forward.5} parent=0 // pred_region
    _
  $region9: #{db_downsample_forward.5} parent=0 // pred_fallthru
    _
  // Predicated region
  $region10: #{db_downsample_forward.5} parent=0 // pred_check
    _
  $region11: #{db_downsample_forward.5} parent=0 // pred_check_branch
    %16 = sbr.rel (0) target = $region13
  $region12: #{db_downsample_forward.5} parent=0 // pred_region
    _
  $region13: #{db_downsample_forward.5} parent=0 // pred_fallthru
    _
  // Predicated region
  $region14: #{db_downsample_forward.5} parent=0 // pred_check
    _
  $region15: #{db_downsample_forward.5} parent=0 // pred_check_branch
    %18 = sbr.rel (0) target = $region17
  $region16: #{db_downsample_forward.5} parent=0 // pred_region
    _
  $region17: #{db_downsample_forward.5} parent=0 // pred_fallthru
    _
  // Predicated region
  $region18: #{db_downsample_forward.5} parent=0 // pred_check
    _
  $region19: #{db_downsample_forward.5} parent=0 // pred_check_branch
    %20 = sbr.rel (0) target = $region21
  $region20: #{db_downsample_forward.5} parent=0 // pred_region
    _
  $region21: #{db_downsample_forward.5} parent=0 // pred_fallthru
    _
  // Predicated region
  $region22: #{db_downsample_forward.5} parent=0 // pred_check
    _
  $region23: #{db_downsample_forward.5} parent=0 // pred_check_branch
    %22 = sbr.rel (0) target = $region25
  $region24: #{db_downsample_forward.5} parent=0 // pred_region
    _
  $region25: #{db_downsample_forward.5} parent=0 // pred_fallthru
    _
  %v24 = vld [vmem:[%s1] sm:$0xf]
  %v25 = vld [vmem:[%s0] sm:$0xf]
  %s26 = scalar_lea.vmem %s1, 4
  %v27 = vld [vmem:[%s26] sm:$0xf]
  %s28 = scalar_lea.vmem %s0, 4
  %v29 = vld [vmem:[%s28] sm:$0xf]
  %vm30 = vcmask 64512
  %v32 = vsel %vm30, %v27, 0
  %vm34 = vcmask 1043456
  %v36 = vsel %vm34, %v29, 0
  %38 = vmatprep.subr.bf16.mxu0 0
  %39 = vmatpush1.bf16.msra.mxu0 0
  %40 = vmatprep.subr.bf16.mxu0 0
  %41 = vmatpush1.bf16.msra.mxu0 0
  %42 = vmatprep.subr.bf16.mxu0 0
  %43 = vmatpush1.bf16.msra.mxu0 0
  %44 = vmatprep.subr.bf16.mxu0 0
  %45 = vmatpush1.bf16.msra.mxu0 0
  %46 = vmatprep.subr.bf16.mxu0 0
  %47 = vmatpush1.bf16.msra.mxu0 0
  %48 = vmatprep.subr.bf16.mxu0 0
  %49 = vmatpush1.bf16.msra.mxu0 0
  %50 = vmatprep.subr.bf16.mxu0 0
  %51 = vmatpush1.bf16.msra.mxu0 0
  %52 = vmatprep.subr.bf16.mxu0 0
  %53 = vmatpush1.bf16.msra.mxu0 %v36
  %54 = vmatprep.subr.bf16.mxu0 0
  %55 = vmatpush2.bf16.msra.mxu0 0
  %56 = vmatprep.subr.bf16.mxu0 0
  %57 = vmatpush2.bf16.msra.mxu0 0
  %58 = vmatprep.subr.bf16.mxu0 0
  %59 = vmatpush2.bf16.msra.mxu0 0
  %60 = vmatprep.subr.bf16.mxu0 0
  %61 = vmatpush2.bf16.msra.mxu0 0
  %62 = vmatprep.subr.bf16.mxu0 0
  %63 = vmatpush2.bf16.msra.mxu0 0
  %64 = vmatprep.subr.bf16.mxu0 0
  %65 = vmatpush2.bf16.msra.mxu0 0
  %66 = vmatprep.subr.bf16.mxu0 0
  %67 = vmatpush2.bf16.msra.mxu0 0
  %68 = vmatprep.subr.bf16.mxu0 0
  %69 = vmatpush2.bf16.msra.mxu0 0
  %70 = vmatprep.mubr.bf16.mxu0 0
  %71 = vmatmul.mubr.bf16.gmra.mxu0 %v32
  %v72 = vpop.f32.mrf.mxu0
  %v73 = vadd.f32 0.0, %v72
  %v74 = vpop.f32.mrf.mxu0
  %v75 = vpop.f32.mrf.mxu0
  %v76 = vpop.f32.mrf.mxu0
  %77 = vdwg.mxu0
  %v79 = vsel %vm30, %v24, 0
  %v82 = vsel %vm34, %v25, 0
  %84 = vmatprep.subr.bf16.mxu0 0
  %85 = vmatpush1.bf16.msra.mxu0 0
  %86 = vmatprep.subr.bf16.mxu0 0
  %87 = vmatpush1.bf16.msra.mxu0 0
  %88 = vmatprep.subr.bf16.mxu0 0
  %89 = vmatpush1.bf16.msra.mxu0 0
  %90 = vmatprep.subr.bf16.mxu0 0
  %91 = vmatpush1.bf16.msra.mxu0 0
  %92 = vmatprep.subr.bf16.mxu0 0
  %93 = vmatpush1.bf16.msra.mxu0 0
  %94 = vmatprep.subr.bf16.mxu0 0
  %95 = vmatpush1.bf16.msra.mxu0 0
  %96 = vmatprep.subr.bf16.mxu0 0
  %97 = vmatpush1.bf16.msra.mxu0 0
  %98 = vmatprep.subr.bf16.mxu0 0
  %99 = vmatpush1.bf16.msra.mxu0 %v82
  %100 = vmatprep.subr.bf16.mxu0 0
  %101 = vmatpush2.bf16.msra.mxu0 0
  %102 = vmatprep.subr.bf16.mxu0 0
  %103 = vmatpush2.bf16.msra.mxu0 0
  %104 = vmatprep.subr.bf16.mxu0 0
  %105 = vmatpush2.bf16.msra.mxu0 0
  %106 = vmatprep.subr.bf16.mxu0 0
  %107 = vmatpush2.bf16.msra.mxu0 0
  %108 = vmatprep.subr.bf16.mxu0 0
  %109 = vmatpush2.bf16.msra.mxu0 0
  %110 = vmatprep.subr.bf16.mxu0 0
  %111 = vmatpush2.bf16.msra.mxu0 0
  %112 = vmatprep.subr.bf16.mxu0 0
  %113 = vmatpush2.bf16.msra.mxu0 0
  %114 = vmatprep.subr.bf16.mxu0 0
  %115 = vmatpush2.bf16.msra.mxu0 0
  %116 = vmatprep.mubr.bf16.mxu0 0
  %117 = vmatmul.mubr.bf16.gmra.mxu0 %v79
  %v118 = vpop.f32.mrf.mxu0
  %v119 = vadd.f32 %v73, %v118
  %v120 = vpop.f32.mrf.mxu0
  %v121 = vpop.f32.mrf.mxu0
  %v122 = vpop.f32.mrf.mxu0
  %123 = vdwg.mxu0
  %s124 = scalar_lea.vmem %s1, 8
  %v125 = vld [vmem:[%s124] sm:$0xf]
  %s126 = scalar_lea.vmem %s0, 8
  %v127 = vld [vmem:[%s126] sm:$0xf]
  %v129 = vsel %vm30, %v125, 0
  %v132 = vsel %vm34, %v127, 0
  %134 = vmatprep.subr.bf16.mxu0 0
  %135 = vmatpush1.bf16.msra.mxu0 0
  %136 = vmatprep.subr.bf16.mxu0 0
  %137 = vmatpush1.bf16.msra.mxu0 0
  %138 = vmatprep.subr.bf16.mxu0 0
  %139 = vmatpush1.bf16.msra.mxu0 0
  %140 = vmatprep.subr.bf16.mxu0 0
  %141 = vmatpush1.bf16.msra.mxu0 0
  %142 = vmatprep.subr.bf16.mxu0 0
  %143 = vmatpush1.bf16.msra.mxu0 0
  %144 = vmatprep.subr.bf16.mxu0 0
  %145 = vmatpush1.bf16.msra.mxu0 0
  %146 = vmatprep.subr.bf16.mxu0 0
  %147 = vmatpush1.bf16.msra.mxu0 0
  %148 = vmatprep.subr.bf16.mxu0 0
  %149 = vmatpush1.bf16.msra.mxu0 %v132
  %150 = vmatprep.subr.bf16.mxu0 0
  %151 = vmatpush2.bf16.msra.mxu0 0
  %152 = vmatprep.subr.bf16.mxu0 0
  %153 = vmatpush2.bf16.msra.mxu0 0
  %154 = vmatprep.subr.bf16.mxu0 0
  %155 = vmatpush2.bf16.msra.mxu0 0
  %156 = vmatprep.subr.bf16.mxu0 0
  %157 = vmatpush2.bf16.msra.mxu0 0
  %158 = vmatprep.subr.bf16.mxu0 0
  %159 = vmatpush2.bf16.msra.mxu0 0
  %160 = vmatprep.subr.bf16.mxu0 0
  %161 = vmatpush2.bf16.msra.mxu0 0
  %162 = vmatprep.subr.bf16.mxu0 0
  %163 = vmatpush2.bf16.msra.mxu0 0
  %164 = vmatprep.subr.bf16.mxu0 0
  %165 = vmatpush2.bf16.msra.mxu0 0
  %166 = vmatprep.mubr.bf16.mxu0 0
  %167 = vmatmul.mubr.bf16.gmra.mxu0 %v129
  %v168 = vpop.f32.mrf.mxu0
  %v169 = vadd.f32 0.0, %v168
  %v170 = vpop.f32.mrf.mxu0
  %v171 = vpop.f32.mrf.mxu0
  %v172 = vpop.f32.mrf.mxu0
  %173 = vdwg.mxu0
  %v174 = vadd.f32 %v119, %v169
  %s175 = scalar_lea.vmem %s1, 12
  %v176 = vld [vmem:[%s175] sm:$0xf]
  %s177 = scalar_lea.vmem %s0, 12
  %v178 = vld [vmem:[%s177] sm:$0xf]
  %v180 = vsel %vm30, %v176, 0
  %v183 = vsel %vm34, %v178, 0
  %185 = vmatprep.subr.bf16.mxu0 0
  %186 = vmatpush1.bf16.msra.mxu0 0
  %187 = vmatprep.subr.bf16.mxu0 0
  %188 = vmatpush1.bf16.msra.mxu0 0
  %189 = vmatprep.subr.bf16.mxu0 0
  %190 = vmatpush1.bf16.msra.mxu0 0
  %191 = vmatprep.subr.bf16.mxu0 0
  %192 = vmatpush1.bf16.msra.mxu0 0
  %193 = vmatprep.subr.bf16.mxu0 0
  %194 = vmatpush1.bf16.msra.mxu0 0
  %195 = vmatprep.subr.bf16.mxu0 0
  %196 = vmatpush1.bf16.msra.mxu0 0
  %197 = vmatprep.subr.bf16.mxu0 0
  %198 = vmatpush1.bf16.msra.mxu0 0
  %199 = vmatprep.subr.bf16.mxu0 0
  %200 = vmatpush1.bf16.msra.mxu0 %v183
  %201 = vmatprep.subr.bf16.mxu0 0
  %202 = vmatpush2.bf16.msra.mxu0 0
  %203 = vmatprep.subr.bf16.mxu0 0
  %204 = vmatpush2.bf16.msra.mxu0 0
  %205 = vmatprep.subr.bf16.mxu0 0
  %206 = vmatpush2.bf16.msra.mxu0 0
  %207 = vmatprep.subr.bf16.mxu0 0
  %208 = vmatpush2.bf16.msra.mxu0 0
  %209 = vmatprep.subr.bf16.mxu0 0
  %210 = vmatpush2.bf16.msra.mxu0 0
  %211 = vmatprep.subr.bf16.mxu0 0
  %212 = vmatpush2.bf16.msra.mxu0 0
  %213 = vmatprep.subr.bf16.mxu0 0
  %214 = vmatpush2.bf16.msra.mxu0 0
  %215 = vmatprep.subr.bf16.mxu0 0
  %216 = vmatpush2.bf16.msra.mxu0 0
  %217 = vmatprep.mubr.bf16.mxu0 0
  %218 = vmatmul.mubr.bf16.gmra.mxu0 %v180
  %v219 = vpop.f32.mrf.mxu0
  %v220 = vadd.f32 0.0, %v219
  %v221 = vpop.f32.mrf.mxu0
  %v222 = vpop.f32.mrf.mxu0
  %v223 = vpop.f32.mrf.mxu0
  %224 = vdwg.mxu0
  %v225 = vadd.f32 %v174, %v220
  %s226 = scalar_lea.vmem %s1, 16
  %v227 = vld [vmem:[%s226] sm:$0xf]
  %s228 = scalar_lea.vmem %s0, 16
  %v229 = vld [vmem:[%s228] sm:$0xf]
  %v231 = vsel %vm30, %v227, 0
  %v234 = vsel %vm34, %v229, 0
  %236 = vmatprep.subr.bf16.mxu0 0
  %237 = vmatpush1.bf16.msra.mxu0 0
  %238 = vmatprep.subr.bf16.mxu0 0
  %239 = vmatpush1.bf16.msra.mxu0 0
  %240 = vmatprep.subr.bf16.mxu0 0
  %241 = vmatpush1.bf16.msra.mxu0 0
  %242 = vmatprep.subr.bf16.mxu0 0
  %243 = vmatpush1.bf16.msra.mxu0 0
  %244 = vmatprep.subr.bf16.mxu0 0
  %245 = vmatpush1.bf16.msra.mxu0 0
  %246 = vmatprep.subr.bf16.mxu0 0
  %247 = vmatpush1.bf16.msra.mxu0 0
  %248 = vmatprep.subr.bf16.mxu0 0
  %249 = vmatpush1.bf16.msra.mxu0 0
  %250 = vmatprep.subr.bf16.mxu0 0
  %251 = vmatpush1.bf16.msra.mxu0 %v234
  %252 = vmatprep.subr.bf16.mxu0 0
  %253 = vmatpush2.bf16.msra.mxu0 0
  %254 = vmatprep.subr.bf16.mxu0 0
  %255 = vmatpush2.bf16.msra.mxu0 0
  %256 = vmatprep.subr.bf16.mxu0 0
  %257 = vmatpush2.bf16.msra.mxu0 0
  %258 = vmatprep.subr.bf16.mxu0 0
  %259 = vmatpush2.bf16.msra.mxu0 0
  %260 = vmatprep.subr.bf16.mxu0 0
  %261 = vmatpush2.bf16.msra.mxu0 0
  %262 = vmatprep.subr.bf16.mxu0 0
  %263 = vmatpush2.bf16.msra.mxu0 0
  %264 = vmatprep.subr.bf16.mxu0 0
  %265 = vmatpush2.bf16.msra.mxu0 0
  %266 = vmatprep.subr.bf16.mxu0 0
  %267 = vmatpush2.bf16.msra.mxu0 0
  %268 = vmatprep.mubr.bf16.mxu0 0
  %269 = vmatmul.mubr.bf16.gmra.mxu0 %v231
  %v270 = vpop.f32.mrf.mxu0
  %v271 = vadd.f32 0.0, %v270
  %v272 = vpop.f32.mrf.mxu0
  %v273 = vpop.f32.mrf.mxu0
  %v274 = vpop.f32.mrf.mxu0
  %275 = vdwg.mxu0
  %v276 = vadd.f32 %v225, %v271
  %s277 = scalar_lea.vmem %s1, 20
  %v278 = vld [vmem:[%s277] sm:$0xf]
  %s279 = scalar_lea.vmem %s0, 20
  %v280 = vld [vmem:[%s279] sm:$0xf]
  %v282 = vsel %vm30, %v278, 0
  %v285 = vsel %vm34, %v280, 0
  %287 = vmatprep.subr.bf16.mxu0 0
  %288 = vmatpush1.bf16.msra.mxu0 0
  %289 = vmatprep.subr.bf16.mxu0 0
  %290 = vmatpush1.bf16.msra.mxu0 0
  %291 = vmatprep.subr.bf16.mxu0 0
  %292 = vmatpush1.bf16.msra.mxu0 0
  %293 = vmatprep.subr.bf16.mxu0 0
  %294 = vmatpush1.bf16.msra.mxu0 0
  %295 = vmatprep.subr.bf16.mxu0 0
  %296 = vmatpush1.bf16.msra.mxu0 0
  %297 = vmatprep.subr.bf16.mxu0 0
  %298 = vmatpush1.bf16.msra.mxu0 0
  %299 = vmatprep.subr.bf16.mxu0 0
  %300 = vmatpush1.bf16.msra.mxu0 0
  %301 = vmatprep.subr.bf16.mxu0 0
  %302 = vmatpush1.bf16.msra.mxu0 %v285
  %303 = vmatprep.subr.bf16.mxu0 0
  %304 = vmatpush2.bf16.msra.mxu0 0
  %305 = vmatprep.subr.bf16.mxu0 0
  %306 = vmatpush2.bf16.msra.mxu0 0
  %307 = vmatprep.subr.bf16.mxu0 0
  %308 = vmatpush2.bf16.msra.mxu0 0
  %309 = vmatprep.subr.bf16.mxu0 0
  %310 = vmatpush2.bf16.msra.mxu0 0
  %311 = vmatprep.subr.bf16.mxu0 0
  %312 = vmatpush2.bf16.msra.mxu0 0
  %313 = vmatprep.subr.bf16.mxu0 0
  %314 = vmatpush2.bf16.msra.mxu0 0
  %315 = vmatprep.subr.bf16.mxu0 0
  %316 = vmatpush2.bf16.msra.mxu0 0
  %317 = vmatprep.subr.bf16.mxu0 0
  %318 = vmatpush2.bf16.msra.mxu0 0
  %319 = vmatprep.mubr.bf16.mxu0 0
  %320 = vmatmul.mubr.bf16.gmra.mxu0 %v282
  %v321 = vpop.f32.mrf.mxu0
  %v322 = vadd.f32 0.0, %v321
  %v323 = vpop.f32.mrf.mxu0
  %v324 = vpop.f32.mrf.mxu0
  %v325 = vpop.f32.mrf.mxu0
  %326 = vdwg.mxu0
  %v327 = vadd.f32 %v276, %v322
  %s328 = scalar_lea.vmem %s1, 24
  %v329 = vld [vmem:[%s328] sm:$0xf]
  %s330 = scalar_lea.vmem %s0, 24
  %v331 = vld [vmem:[%s330] sm:$0xf]
  %v333 = vsel %vm30, %v329, 0
  %v336 = vsel %vm34, %v331, 0
  %338 = vmatprep.subr.bf16.mxu0 0
  %339 = vmatpush1.bf16.msra.mxu0 0
  %340 = vmatprep.subr.bf16.mxu0 0
  %341 = vmatpush1.bf16.msra.mxu0 0
  %342 = vmatprep.subr.bf16.mxu0 0
  %343 = vmatpush1.bf16.msra.mxu0 0
  %344 = vmatprep.subr.bf16.mxu0 0
  %345 = vmatpush1.bf16.msra.mxu0 0
  %346 = vmatprep.subr.bf16.mxu0 0
  %347 = vmatpush1.bf16.msra.mxu0 0
  %348 = vmatprep.subr.bf16.mxu0 0
  %349 = vmatpush1.bf16.msra.mxu0 0
  %350 = vmatprep.subr.bf16.mxu0 0
  %351 = vmatpush1.bf16.msra.mxu0 0
  %352 = vmatprep.subr.bf16.mxu0 0
  %353 = vmatpush1.bf16.msra.mxu0 %v336
  %354 = vmatprep.subr.bf16.mxu0 0
  %355 = vmatpush2.bf16.msra.mxu0 0
  %356 = vmatprep.subr.bf16.mxu0 0
  %357 = vmatpush2.bf16.msra.mxu0 0
  %358 = vmatprep.subr.bf16.mxu0 0
  %359 = vmatpush2.bf16.msra.mxu0 0
  %360 = vmatprep.subr.bf16.mxu0 0
  %361 = vmatpush2.bf16.msra.mxu0 0
  %362 = vmatprep.subr.bf16.mxu0 0
  %363 = vmatpush2.bf16.msra.mxu0 0
  %364 = vmatprep.subr.bf16.mxu0 0
  %365 = vmatpush2.bf16.msra.mxu0 0
  %366 = vmatprep.subr.bf16.mxu0 0
  %367 = vmatpush2.bf16.msra.mxu0 0
  %368 = vmatprep.subr.bf16.mxu0 0
  %369 = vmatpush2.bf16.msra.mxu0 0
  %370 = vmatprep.mubr.bf16.mxu0 0
  %371 = vmatmul.mubr.bf16.gmra.mxu0 %v333
  %v372 = vpop.f32.mrf.mxu0
  %v373 = vadd.f32 0.0, %v372
  %v374 = vpop.f32.mrf.mxu0
  %v375 = vpop.f32.mrf.mxu0
  %v376 = vpop.f32.mrf.mxu0
  %377 = vdwg.mxu0
  %v378 = vadd.f32 %v327, %v373
  %s379 = scalar_lea.vmem %s1, 28
  %v380 = vld [vmem:[%s379] sm:$0xf]
  %s381 = scalar_lea.vmem %s0, 28
  %v382 = vld [vmem:[%s381] sm:$0xf]
  %v384 = vsel %vm30, %v380, 0
  %v387 = vsel %vm34, %v382, 0
  %389 = vmatprep.subr.bf16.mxu0 0
  %390 = vmatpush1.bf16.msra.mxu0 0
  %391 = vmatprep.subr.bf16.mxu0 0
  %392 = vmatpush1.bf16.msra.mxu0 0
  %393 = vmatprep.subr.bf16.mxu0 0
  %394 = vmatpush1.bf16.msra.mxu0 0
  %395 = vmatprep.subr.bf16.mxu0 0
  %396 = vmatpush1.bf16.msra.mxu0 0
  %397 = vmatprep.subr.bf16.mxu0 0
  %398 = vmatpush1.bf16.msra.mxu0 0
  %399 = vmatprep.subr.bf16.mxu0 0
  %400 = vmatpush1.bf16.msra.mxu0 0
  %401 = vmatprep.subr.bf16.mxu0 0
  %402 = vmatpush1.bf16.msra.mxu0 0
  %403 = vmatprep.subr.bf16.mxu0 0
  %404 = vmatpush1.bf16.msra.mxu0 %v387
  %405 = vmatprep.subr.bf16.mxu0 0
  %406 = vmatpush2.bf16.msra.mxu0 0
  %407 = vmatprep.subr.bf16.mxu0 0
  %408 = vmatpush2.bf16.msra.mxu0 0
  %409 = vmatprep.subr.bf16.mxu0 0
  %410 = vmatpush2.bf16.msra.mxu0 0
  %411 = vmatprep.subr.bf16.mxu0 0
  %412 = vmatpush2.bf16.msra.mxu0 0
  %413 = vmatprep.subr.bf16.mxu0 0
  %414 = vmatpush2.bf16.msra.mxu0 0
  %415 = vmatprep.subr.bf16.mxu0 0
  %416 = vmatpush2.bf16.msra.mxu0 0
  %417 = vmatprep.subr.bf16.mxu0 0
  %418 = vmatpush2.bf16.msra.mxu0 0
  %419 = vmatprep.subr.bf16.mxu0 0
  %420 = vmatpush2.bf16.msra.mxu0 0
  %421 = vmatprep.mubr.bf16.mxu0 0
  %422 = vmatmul.mubr.bf16.gmra.mxu0 %v384
  %v423 = vpop.f32.mrf.mxu0
  %v424 = vadd.f32 0.0, %v423
  %v425 = vpop.f32.mrf.mxu0
  %v426 = vpop.f32.mrf.mxu0
  %v427 = vpop.f32.mrf.mxu0
  %428 = vdwg.mxu0
  %v429 = vadd.f32 %v378, %v424
  %s430 = scalar_lea.vmem %s1, 32
  %v431 = vld [vmem:[%s430] sm:$0xf]
  %s432 = scalar_lea.vmem %s0, 32
  %v433 = vld [vmem:[%s432] sm:$0xf]
  %v435 = vsel %vm30, %v431, 0
  %v438 = vsel %vm34, %v433, 0
  %440 = vmatprep.subr.bf16.mxu0 0
  %441 = vmatpush1.bf16.msra.mxu0 0
  %442 = vmatprep.subr.bf16.mxu0 0
  %443 = vmatpush1.bf16.msra.mxu0 0
  %444 = vmatprep.subr.bf16.mxu0 0
  %445 = vmatpush1.bf16.msra.mxu0 0
  %446 = vmatprep.subr.bf16.mxu0 0
  %447 = vmatpush1.bf16.msra.mxu0 0
  %448 = vmatprep.subr.bf16.mxu0 0
  %449 = vmatpush1.bf16.msra.mxu0 0
  %450 = vmatprep.subr.bf16.mxu0 0
  %451 = vmatpush1.bf16.msra.mxu0 0
  %452 = vmatprep.subr.bf16.mxu0 0
  %453 = vmatpush1.bf16.msra.mxu0 0
  %454 = vmatprep.subr.bf16.mxu0 0
  %455 = vmatpush1.bf16.msra.mxu0 %v438
  %456 = vmatprep.subr.bf16.mxu0 0
  %457 = vmatpush2.bf16.msra.mxu0 0
  %458 = vmatprep.subr.bf16.mxu0 0
  %459 = vmatpush2.bf16.msra.mxu0 0
  %460 = vmatprep.subr.bf16.mxu0 0
  %461 = vmatpush2.bf16.msra.mxu0 0
  %462 = vmatprep.subr.bf16.mxu0 0
  %463 = vmatpush2.bf16.msra.mxu0 0
  %464 = vmatprep.subr.bf16.mxu0 0
  %465 = vmatpush2.bf16.msra.mxu0 0
  %466 = vmatprep.subr.bf16.mxu0 0
  %467 = vmatpush2.bf16.msra.mxu0 0
  %468 = vmatprep.subr.bf16.mxu0 0
  %469 = vmatpush2.bf16.msra.mxu0 0
  %470 = vmatprep.subr.bf16.mxu0 0
  %471 = vmatpush2.bf16.msra.mxu0 0
  %472 = vmatprep.mubr.bf16.mxu0 0
  %473 = vmatmul.mubr.bf16.gmra.mxu0 %v435
  %v474 = vpop.f32.mrf.mxu0
  %v475 = vadd.f32 0.0, %v474
  %v476 = vpop.f32.mrf.mxu0
  %v477 = vpop.f32.mrf.mxu0
  %v478 = vpop.f32.mrf.mxu0
  %479 = vdwg.mxu0
  %v480 = vadd.f32 %v429, %v475
  %s481 = scalar_lea.vmem %s1, 36
  %v482 = vld [vmem:[%s481] sm:$0xf]
  %s483 = scalar_lea.vmem %s0, 36
  %v484 = vld [vmem:[%s483] sm:$0xf]
  %v486 = vsel %vm30, %v482, 0
  %v489 = vsel %vm34, %v484, 0
  %491 = vmatprep.subr.bf16.mxu0 0
  %492 = vmatpush1.bf16.msra.mxu0 0
  %493 = vmatprep.subr.bf16.mxu0 0
  %494 = vmatpush1.bf16.msra.mxu0 0
  %495 = vmatprep.subr.bf16.mxu0 0
  %496 = vmatpush1.bf16.msra.mxu0 0
  %497 = vmatprep.subr.bf16.mxu0 0
  %498 = vmatpush1.bf16.msra.mxu0 0
  %499 = vmatprep.subr.bf16.mxu0 0
  %500 = vmatpush1.bf16.msra.mxu0 0
  %501 = vmatprep.subr.bf16.mxu0 0
  %502 = vmatpush1.bf16.msra.mxu0 0
  %503 = vmatprep.subr.bf16.mxu0 0
  %504 = vmatpush1.bf16.msra.mxu0 0
  %505 = vmatprep.subr.bf16.mxu0 0
  %506 = vmatpush1.bf16.msra.mxu0 %v489
  %507 = vmatprep.subr.bf16.mxu0 0
  %508 = vmatpush2.bf16.msra.mxu0 0
  %509 = vmatprep.subr.bf16.mxu0 0
  %510 = vmatpush2.bf16.msra.mxu0 0
  %511 = vmatprep.subr.bf16.mxu0 0
  %512 = vmatpush2.bf16.msra.mxu0 0
  %513 = vmatprep.subr.bf16.mxu0 0
  %514 = vmatpush2.bf16.msra.mxu0 0
  %515 = vmatprep.subr.bf16.mxu0 0
  %516 = vmatpush2.bf16.msra.mxu0 0
  %517 = vmatprep.subr.bf16.mxu0 0
  %518 = vmatpush2.bf16.msra.mxu0 0
  %519 = vmatprep.subr.bf16.mxu0 0
  %520 = vmatpush2.bf16.msra.mxu0 0
  %521 = vmatprep.subr.bf16.mxu0 0
  %522 = vmatpush2.bf16.msra.mxu0 0
  %523 = vmatprep.mubr.bf16.mxu0 0
  %524 = vmatmul.mubr.bf16.gmra.mxu0 %v486
  %v525 = vpop.f32.mrf.mxu0
  %v526 = vadd.f32 0.0, %v525
  %v527 = vpop.f32.mrf.mxu0
  %v528 = vpop.f32.mrf.mxu0
  %v529 = vpop.f32.mrf.mxu0
  %530 = vdwg.mxu0
  %v531 = vadd.f32 %v480, %v526
  %s532 = scalar_lea.vmem %s1, 40
  %v533 = vld [vmem:[%s532] sm:$0xf]
  %s534 = scalar_lea.vmem %s0, 40
  %v535 = vld [vmem:[%s534] sm:$0xf]
  %v537 = vsel %vm30, %v533, 0
  %v540 = vsel %vm34, %v535, 0
  %542 = vmatprep.subr.bf16.mxu0 0
  %543 = vmatpush1.bf16.msra.mxu0 0
  %544 = vmatprep.subr.bf16.mxu0 0
  %545 = vmatpush1.bf16.msra.mxu0 0
  %546 = vmatprep.subr.bf16.mxu0 0
  %547 = vmatpush1.bf16.msra.mxu0 0
  %548 = vmatprep.subr.bf16.mxu0 0
  %549 = vmatpush1.bf16.msra.mxu0 0
  %550 = vmatprep.subr.bf16.mxu0 0
  %551 = vmatpush1.bf16.msra.mxu0 0
  %552 = vmatprep.subr.bf16.mxu0 0
  %553 = vmatpush1.bf16.msra.mxu0 0
  %554 = vmatprep.subr.bf16.mxu0 0
  %555 = vmatpush1.bf16.msra.mxu0 0
  %556 = vmatprep.subr.bf16.mxu0 0
  %557 = vmatpush1.bf16.msra.mxu0 %v540
  %558 = vmatprep.subr.bf16.mxu0 0
  %559 = vmatpush2.bf16.msra.mxu0 0
  %560 = vmatprep.subr.bf16.mxu0 0
  %561 = vmatpush2.bf16.msra.mxu0 0
  %562 = vmatprep.subr.bf16.mxu0 0
  %563 = vmatpush2.bf16.msra.mxu0 0
  %564 = vmatprep.subr.bf16.mxu0 0
  %565 = vmatpush2.bf16.msra.mxu0 0
  %566 = vmatprep.subr.bf16.mxu0 0
  %567 = vmatpush2.bf16.msra.mxu0 0
  %568 = vmatprep.subr.bf16.mxu0 0
  %569 = vmatpush2.bf16.msra.mxu0 0
  %570 = vmatprep.subr.bf16.mxu0 0
  %571 = vmatpush2.bf16.msra.mxu0 0
  %572 = vmatprep.subr.bf16.mxu0 0
  %573 = vmatpush2.bf16.msra.mxu0 0
  %574 = vmatprep.mubr.bf16.mxu0 0
  %575 = vmatmul.mubr.bf16.gmra.mxu0 %v537
  %v576 = vpop.f32.mrf.mxu0
  %v577 = vadd.f32 0.0, %v576
  %v578 = vpop.f32.mrf.mxu0
  %v579 = vpop.f32.mrf.mxu0
  %v580 = vpop.f32.mrf.mxu0
  %581 = vdwg.mxu0
  %v582 = vadd.f32 %v531, %v577
  %s583 = scalar_lea.vmem %s1, 44
  %v584 = vld [vmem:[%s583] sm:$0xf]
  %s585 = scalar_lea.vmem %s0, 44
  %v586 = vld [vmem:[%s585] sm:$0xf]
  %v588 = vsel %vm30, %v584, 0
  %v591 = vsel %vm34, %v586, 0
  %593 = vmatprep.subr.bf16.mxu0 0
  %594 = vmatpush1.bf16.msra.mxu0 0
  %595 = vmatprep.subr.bf16.mxu0 0
  %596 = vmatpush1.bf16.msra.mxu0 0
  %597 = vmatprep.subr.bf16.mxu0 0
  %598 = vmatpush1.bf16.msra.mxu0 0
  %599 = vmatprep.subr.bf16.mxu0 0
  %600 = vmatpush1.bf16.msra.mxu0 0
  %601 = vmatprep.subr.bf16.mxu0 0
  %602 = vmatpush1.bf16.msra.mxu0 0
  %603 = vmatprep.subr.bf16.mxu0 0
  %604 = vmatpush1.bf16.msra.mxu0 0
  %605 = vmatprep.subr.bf16.mxu0 0
  %606 = vmatpush1.bf16.msra.mxu0 0
  %607 = vmatprep.subr.bf16.mxu0 0
  %608 = vmatpush1.bf16.msra.mxu0 %v591
  %609 = vmatprep.subr.bf16.mxu0 0
  %610 = vmatpush2.bf16.msra.mxu0 0
  %611 = vmatprep.subr.bf16.mxu0 0
  %612 = vmatpush2.bf16.msra.mxu0 0
  %613 = vmatprep.subr.bf16.mxu0 0
  %614 = vmatpush2.bf16.msra.mxu0 0
  %615 = vmatprep.subr.bf16.mxu0 0
  %616 = vmatpush2.bf16.msra.mxu0 0
  %617 = vmatprep.subr.bf16.mxu0 0
  %618 = vmatpush2.bf16.msra.mxu0 0
  %619 = vmatprep.subr.bf16.mxu0 0
  %620 = vmatpush2.bf16.msra.mxu0 0
  %621 = vmatprep.subr.bf16.mxu0 0
  %622 = vmatpush2.bf16.msra.mxu0 0
  %623 = vmatprep.subr.bf16.mxu0 0
  %624 = vmatpush2.bf16.msra.mxu0 0
  %625 = vmatprep.mubr.bf16.mxu0 0
  %626 = vmatmul.mubr.bf16.gmra.mxu0 %v588
  %v627 = vpop.f32.mrf.mxu0
  %v628 = vadd.f32 0.0, %v627
  %v629 = vpop.f32.mrf.mxu0
  %v630 = vpop.f32.mrf.mxu0
  %v631 = vpop.f32.mrf.mxu0
  %632 = vdwg.mxu0
  %v633 = vadd.f32 %v582, %v628
  %s634 = scalar_lea.vmem %s1, 48
  %v635 = vld [vmem:[%s634] sm:$0xf]
  %s636 = scalar_lea.vmem %s0, 48
  %v637 = vld [vmem:[%s636] sm:$0xf]
  %v639 = vsel %vm30, %v635, 0
  %v642 = vsel %vm34, %v637, 0
  %644 = vmatprep.subr.bf16.mxu0 0
  %645 = vmatpush1.bf16.msra.mxu0 0
  %646 = vmatprep.subr.bf16.mxu0 0
  %647 = vmatpush1.bf16.msra.mxu0 0
  %648 = vmatprep.subr.bf16.mxu0 0
  %649 = vmatpush1.bf16.msra.mxu0 0
  %650 = vmatprep.subr.bf16.mxu0 0
  %651 = vmatpush1.bf16.msra.mxu0 0
  %652 = vmatprep.subr.bf16.mxu0 0
  %653 = vmatpush1.bf16.msra.mxu0 0
  %654 = vmatprep.subr.bf16.mxu0 0
  %655 = vmatpush1.bf16.msra.mxu0 0
  %656 = vmatprep.subr.bf16.mxu0 0
  %657 = vmatpush1.bf16.msra.mxu0 0
  %658 = vmatprep.subr.bf16.mxu0 0
  %659 = vmatpush1.bf16.msra.mxu0 %v642
  %660 = vmatprep.subr.bf16.mxu0 0
  %661 = vmatpush2.bf16.msra.mxu0 0
  %662 = vmatprep.subr.bf16.mxu0 0
  %663 = vmatpush2.bf16.msra.mxu0 0
  %664 = vmatprep.subr.bf16.mxu0 0
  %665 = vmatpush2.bf16.msra.mxu0 0
  %666 = vmatprep.subr.bf16.mxu0 0
  %667 = vmatpush2.bf16.msra.mxu0 0
  %668 = vmatprep.subr.bf16.mxu0 0
  %669 = vmatpush2.bf16.msra.mxu0 0
  %670 = vmatprep.subr.bf16.mxu0 0
  %671 = vmatpush2.bf16.msra.mxu0 0
  %672 = vmatprep.subr.bf16.mxu0 0
  %673 = vmatpush2.bf16.msra.mxu0 0
  %674 = vmatprep.subr.bf16.mxu0 0
  %675 = vmatpush2.bf16.msra.mxu0 0
  %676 = vmatprep.mubr.bf16.mxu0 0
  %677 = vmatmul.mubr.bf16.gmra.mxu0 %v639
  %v678 = vpop.f32.mrf.mxu0
  %v679 = vadd.f32 0.0, %v678
  %v680 = vpop.f32.mrf.mxu0
  %v681 = vpop.f32.mrf.mxu0
  %v682 = vpop.f32.mrf.mxu0
  %683 = vdwg.mxu0
  %v684 = vadd.f32 %v633, %v679
  %s685 = scalar_lea.vmem %s1, 52
  %v686 = vld [vmem:[%s685] sm:$0xf]
  %s687 = scalar_lea.vmem %s0, 52
  %v688 = vld [vmem:[%s687] sm:$0xf]
  %v690 = vsel %vm30, %v686, 0
  %v693 = vsel %vm34, %v688, 0
  %695 = vmatprep.subr.bf16.mxu0 0
  %696 = vmatpush1.bf16.msra.mxu0 0
  %697 = vmatprep.subr.bf16.mxu0 0
  %698 = vmatpush1.bf16.msra.mxu0 0
  %699 = vmatprep.subr.bf16.mxu0 0
  %700 = vmatpush1.bf16.msra.mxu0 0
  %701 = vmatprep.subr.bf16.mxu0 0
  %702 = vmatpush1.bf16.msra.mxu0 0
  %703 = vmatprep.subr.bf16.mxu0 0
  %704 = vmatpush1.bf16.msra.mxu0 0
  %705 = vmatprep.subr.bf16.mxu0 0
  %706 = vmatpush1.bf16.msra.mxu0 0
  %707 = vmatprep.subr.bf16.mxu0 0
  %708 = vmatpush1.bf16.msra.mxu0 0
  %709 = vmatprep.subr.bf16.mxu0 0
  %710 = vmatpush1.bf16.msra.mxu0 %v693
  %711 = vmatprep.subr.bf16.mxu0 0
  %712 = vmatpush2.bf16.msra.mxu0 0
  %713 = vmatprep.subr.bf16.mxu0 0
  %714 = vmatpush2.bf16.msra.mxu0 0
  %715 = vmatprep.subr.bf16.mxu0 0
  %716 = vmatpush2.bf16.msra.mxu0 0
  %717 = vmatprep.subr.bf16.mxu0 0
  %718 = vmatpush2.bf16.msra.mxu0 0
  %719 = vmatprep.subr.bf16.mxu0 0
  %720 = vmatpush2.bf16.msra.mxu0 0
  %721 = vmatprep.subr.bf16.mxu0 0
  %722 = vmatpush2.bf16.msra.mxu0 0
  %723 = vmatprep.subr.bf16.mxu0 0
  %724 = vmatpush2.bf16.msra.mxu0 0
  %725 = vmatprep.subr.bf16.mxu0 0
  %726 = vmatpush2.bf16.msra.mxu0 0
  %727 = vmatprep.mubr.bf16.mxu0 0
  %728 = vmatmul.mubr.bf16.gmra.mxu0 %v690
  %v729 = vpop.f32.mrf.mxu0
  %v730 = vadd.f32 0.0, %v729
  %v731 = vpop.f32.mrf.mxu0
  %v732 = vpop.f32.mrf.mxu0
  %v733 = vpop.f32.mrf.mxu0
  %734 = vdwg.mxu0
  %v735 = vadd.f32 %v684, %v730
  %s736 = scalar_lea.vmem %s1, 56
  %v737 = vld [vmem:[%s736] sm:$0xf]
  %s738 = scalar_lea.vmem %s0, 56
  %v739 = vld [vmem:[%s738] sm:$0xf]
  %v741 = vsel %vm30, %v737, 0
  %v744 = vsel %vm34, %v739, 0
  %746 = vmatprep.subr.bf16.mxu0 0
  %747 = vmatpush1.bf16.msra.mxu0 0
  %748 = vmatprep.subr.bf16.mxu0 0
  %749 = vmatpush1.bf16.msra.mxu0 0
  %750 = vmatprep.subr.bf16.mxu0 0
  %751 = vmatpush1.bf16.msra.mxu0 0
  %752 = vmatprep.subr.bf16.mxu0 0
  %753 = vmatpush1.bf16.msra.mxu0 0
  %754 = vmatprep.subr.bf16.mxu0 0
  %755 = vmatpush1.bf16.msra.mxu0 0
  %756 = vmatprep.subr.bf16.mxu0 0
  %757 = vmatpush1.bf16.msra.mxu0 0
  %758 = vmatprep.subr.bf16.mxu0 0
  %759 = vmatpush1.bf16.msra.mxu0 0
  %760 = vmatprep.subr.bf16.mxu0 0
  %761 = vmatpush1.bf16.msra.mxu0 %v744
  %762 = vmatprep.subr.bf16.mxu0 0
  %763 = vmatpush2.bf16.msra.mxu0 0
  %764 = vmatprep.subr.bf16.mxu0 0
  %765 = vmatpush2.bf16.msra.mxu0 0
  %766 = vmatprep.subr.bf16.mxu0 0
  %767 = vmatpush2.bf16.msra.mxu0 0
  %768 = vmatprep.subr.bf16.mxu0 0
  %769 = vmatpush2.bf16.msra.mxu0 0
  %770 = vmatprep.subr.bf16.mxu0 0
  %771 = vmatpush2.bf16.msra.mxu0 0
  %772 = vmatprep.subr.bf16.mxu0 0
  %773 = vmatpush2.bf16.msra.mxu0 0
  %774 = vmatprep.subr.bf16.mxu0 0
  %775 = vmatpush2.bf16.msra.mxu0 0
  %776 = vmatprep.subr.bf16.mxu0 0
  %777 = vmatpush2.bf16.msra.mxu0 0
  %778 = vmatprep.mubr.bf16.mxu0 0
  %779 = vmatmul.mubr.bf16.gmra.mxu0 %v741
  %v780 = vpop.f32.mrf.mxu0
  %v781 = vadd.f32 0.0, %v780
  %v782 = vpop.f32.mrf.mxu0
  %v783 = vpop.f32.mrf.mxu0
  %v784 = vpop.f32.mrf.mxu0
  %785 = vdwg.mxu0
  %v786 = vadd.f32 %v735, %v781
  %s787 = scalar_lea.vmem %s1, 60
  %v788 = vld [vmem:[%s787] sm:$0xf]
  %s789 = scalar_lea.vmem %s0, 60
  %v790 = vld [vmem:[%s789] sm:$0xf]
  %v792 = vsel %vm30, %v788, 0
  %v795 = vsel %vm34, %v790, 0
  %797 = vmatprep.subr.bf16.mxu0 0
  %798 = vmatpush1.bf16.msra.mxu0 0
  %799 = vmatprep.subr.bf16.mxu0 0
  %800 = vmatpush1.bf16.msra.mxu0 0
  %801 = vmatprep.subr.bf16.mxu0 0
  %802 = vmatpush1.bf16.msra.mxu0 0
  %803 = vmatprep.subr.bf16.mxu0 0
  %804 = vmatpush1.bf16.msra.mxu0 0
  %805 = vmatprep.subr.bf16.mxu0 0
  %806 = vmatpush1.bf16.msra.mxu0 0
  %807 = vmatprep.subr.bf16.mxu0 0
  %808 = vmatpush1.bf16.msra.mxu0 0
  %809 = vmatprep.subr.bf16.mxu0 0
  %810 = vmatpush1.bf16.msra.mxu0 0
  %811 = vmatprep.subr.bf16.mxu0 0
  %812 = vmatpush1.bf16.msra.mxu0 %v795
  %813 = vmatprep.subr.bf16.mxu0 0
  %814 = vmatpush2.bf16.msra.mxu0 0
  %815 = vmatprep.subr.bf16.mxu0 0
  %816 = vmatpush2.bf16.msra.mxu0 0
  %817 = vmatprep.subr.bf16.mxu0 0
  %818 = vmatpush2.bf16.msra.mxu0 0
  %819 = vmatprep.subr.bf16.mxu0 0
  %820 = vmatpush2.bf16.msra.mxu0 0
  %821 = vmatprep.subr.bf16.mxu0 0
  %822 = vmatpush2.bf16.msra.mxu0 0
  %823 = vmatprep.subr.bf16.mxu0 0
  %824 = vmatpush2.bf16.msra.mxu0 0
  %825 = vmatprep.subr.bf16.mxu0 0
  %826 = vmatpush2.bf16.msra.mxu0 0
  %827 = vmatprep.subr.bf16.mxu0 0
  %828 = vmatpush2.bf16.msra.mxu0 0
  %829 = vmatprep.mubr.bf16.mxu0 0
  %830 = vmatmul.mubr.bf16.gmra.mxu0 %v792
  %v831 = vpop.f32.mrf.mxu0
  %v832 = vadd.f32 0.0, %v831
  %v833 = vpop.f32.mrf.mxu0
  %v834 = vpop.f32.mrf.mxu0
  %v835 = vpop.f32.mrf.mxu0
  %836 = vdwg.mxu0
  %v837 = vadd.f32 %v786, %v832
  %v838 = vld [vmem:[%s2] sm:$0xff]
  %840 = vset.pattern.permute.xlu0 0
  %841 = vperm.xlu0 %840, %v838
  %v842 = vpop.permute.xlu0 %841
  %v844 = vadd.f32 %v837, %v842
  %v845 = vld [vmem:[%s3] sm:$0xff]
  %v846 = vld [vmem:[%s4] sm:$0xff]
  %847 = vadd.xlane.f32.xlu0 %v844
  %v848 = vpop.xlane.xlu0 %847
  %v849 = vrcp.pop 128.0
  %v850 = vmul.f32 %v848, %v849
  %v851 = vsub.f32 %v844, %v850
  %v852 = vmul.f32 %v851, %v851
  %853 = vadd.xlane.f32.xlu0 %v852
  %v854 = vpop.xlane.xlu0 %853
  %v855 = vmul.f32 %v854, %v849
  %v856 = vadd.f32 %v855, 1e-05
  %v857 = vrsqrt.pop %v856
  %v858 = vmul.f32 %v851, %v857
  %860 = vset.pattern.permute.xlu0 0
  %861 = vperm.xlu0 %860, %v845
  %v862 = vpop.permute.xlu0 %861
  %v864 = vmul.f32 %v858, %v862
  %866 = vset.pattern.permute.xlu0 0
  %867 = vperm.xlu0 %866, %v846
  %v868 = vpop.permute.xlu0 %867
  %v870 = vadd.f32 %v864, %v868
  %v871 = vmax.f32 %v870, 0.0
  %v872 = vld [vmem:[%s5] sm:$0xff]
  %v873 = vadd.f32 %v871, %v872
  %874 = vst [vmem:[%s6] sm:$0xff] %v873
  // Predicated region
  $region26: #{db_downsample_forward.5} parent=0 // pred_check
    _
  $region27: #{db_downsample_forward.5} parent=0 // pred_check_branch
    %876 = sbr.rel (0) target = $region29
  $region28: #{db_downsample_forward.5} parent=0 // pred_region
    _
  $region29: #{db_downsample_forward.5} parent=0 // pred_fallthru
    _
  // Predicated region
  $region30: #{db_downsample_forward.5} parent=0 // pred_check
    _
  $region31: #{db_downsample_forward.5} parent=0 // pred_check_branch
    %878 = sbr.rel (0) target = $region33
  $region32: #{db_downsample_forward.5} parent=0 // pred_region
    _
  $region33: #{db_downsample_forward.5} parent=0 // pred_fallthru
    _

</llo_original>
